<compile_context>
chip_gen: v5e
topology: v5e:2x2
jax: 0.10.0
libtpu: 0.0.40
codegen_flags: <defaults>
</compile_context>

<pallas_src>
import numpy as np
import jax
import jax.numpy as jnp
from jax.experimental import pallas as pl
from jax.experimental.pallas import tpu as pltpu

NUM_CLASSES = 4
ENC_CH = (8, 16, 32)      # channels at levels 0/1/2  (W*C == 128 at every level)
H0, W0 = 16, 16           # level-0 spatial size
LANES = 128

# branch ids (index into the packed banded-weight tensor)
B_ENC0, B_ENC1, B_ENC2 = 0, 1, 2
B_D01A, B_D01B = 3, 4
B_D11A, B_D11B = 5, 6
B_D02A, B_D02B, B_D02C = 7, 8, 9
B_HEAD = 10
NUM_BRANCHES = 11
# conv ids (index into the packed bias tensor)
C_ENC0, C_ENC1, C_ENC2, C_D01, C_D11, C_D02, C_HEAD = range(7)
NUM_CONVS = 7


# ----------------------------------------------------------------------------
# Fused whole-network kernel
# ----------------------------------------------------------------------------
def _unetpp_kernel(x_ref, w_ref, b_ref, o_ref,
                   a00, a10, a20, a01, a11, a02, up_a, up_b, up_c):
    zrow = jnp.zeros((1, LANES), jnp.float32)

    def conv(h_out, branches, conv_idx, relu):
        """3x3 conv (pad=1) over one or more skip inputs as banded matmuls.

        branches: list of (src_ref, branch_idx, h_stride).  src rows are the
        1-padded image rows (storage row j == padded row j); each row packs
        W positions x C channels into 128 lanes.  dx taps / w-stride /
        w-upsample are folded into the (128,128) weights, only dy remains.
        """
        acc = jnp.zeros((h_out, LANES), jnp.float32)
        for src, bidx, h_stride in branches:
            for dy in range(3):
                if h_stride == 1:
                    lhs = src[pl.ds(dy, h_out), :]
                else:  # stride-2 in h: rows dy, dy+2, ... (only needed rows)
                    lhs = src[pl.ds(dy, h_out, stride=2), :]
                acc = acc + jnp.dot(lhs, w_ref[bidx, dy, :, :],
                                    preferred_element_type=jnp.float32)
        acc = acc + b_ref[pl.ds(conv_idx, 1), :]
        return jnp.maximum(acc, 0.0) if relu else acc

    def store(dst, acc, h):
        # rows 1..h = data, rows 0 and h+1 = zero halo (so consumers need no pad)
        dst[pl.ds(1, h), :] = acc
        dst[pl.ds(0, 1), :] = zrow
        dst[pl.ds(h + 1, 1), :] = zrow

    def up_rows(dst, src, h_coarse):
        # nearest-neighbor 2x upsample in h: duplicate every coarse row.
        # (the 2x upsample in w is folded into the _band_up weight matrices)
        dst[pl.ds(0, 1), :] = zrow
        dst[pl.ds(2 * h_coarse + 1, 1), :] = zrow
        for r in range(h_coarse):
            row = src[pl.ds(r + 1, 1), :]
            dst[pl.ds(2 * r + 1, 2), :] = jnp.broadcast_to(row, (2, LANES))

    # ---------------- encoder (BatchNorm folded; conv + ReLU) ----------------
    store(a00, conv(16, [(x_ref, B_ENC0, 1)], C_ENC0, True), 16)   # x0_0 16x16x8
    store(a10, conv(8,  [(a00,  B_ENC1, 2)], C_ENC1, True), 8)     # x1_0  8x 8x16
    store(a20, conv(4,  [(a10,  B_ENC2, 2)], C_ENC2, True), 4)     # x2_0  4x 4x32

    # ---------------- nested (UNet++) decoder -------------------------------
    up_rows(up_a, a10, 8)                                           # up(x1_0)
    store(a01, conv(16, [(a00, B_D01A, 1), (up_a, B_D01B, 1)], C_D01, True), 16)

    up_rows(up_b, a20, 4)                                           # up(x2_0)
    store(a11, conv(8,  [(a10, B_D11A, 1), (up_b, B_D11B, 1)], C_D11, True), 8)

    up_rows(up_c, a11, 8)                                           # up(x1_1)
    store(a02, conv(16, [(a00, B_D02A, 1), (a01, B_D02B, 1),
                         (up_c, B_D02C, 1)], C_D02, True), 16)

    # ---------------- segmentation head (activation=None) -------------------
    o_ref[...] = conv(16, [(a02, B_HEAD, 1)], C_HEAD, False)


def unetpp_forward(params, x_nchw):
    N = x_nchw.shape[0]
    cpp0 = LANES // W0                                  # 8 lanes per position
    # Boundary layout glue only: NCHW -> row-as-lanes packing with halo rows.
    x = jnp.transpose(x_nchw, (0, 2, 3, 1))                         # NHWC
    x = jnp.pad(x, ((0, 0), (0, 0), (0, 0), (0, cpp0 - x.shape[-1])))
    x = x.reshape(N, H0, LANES)
    x = jnp.pad(x, ((0, 0), (1, 1), (0, 0)))                        # zero halo rows

    out_wide = pl.pallas_call(
        _unetpp_kernel,
        out_shape=jax.ShapeDtypeStruct((N, H0, LANES), jnp.float32),
        grid=(N,),
        in_specs=[
            pl.BlockSpec((None, H0 + 2, LANES), lambda n: (n, 0, 0)),
            pl.BlockSpec((NUM_BRANCHES, 3, LANES, LANES), lambda n: (0, 0, 0, 0)),
            pl.BlockSpec((NUM_CONVS, LANES), lambda n: (0, 0)),
        ],
        out_specs=pl.BlockSpec((None, H0, LANES), lambda n: (n, 0, 0)),
        scratch_shapes=[
            pltpu.VMEM((H0 + 2, LANES), jnp.float32),   # a00  (x0_0)
            pltpu.VMEM((10, LANES), jnp.float32),       # a10  (x1_0)
            pltpu.VMEM((6, LANES), jnp.float32),        # a20  (x2_0)
            pltpu.VMEM((H0 + 2, LANES), jnp.float32),   # a01  (x0_1)
            pltpu.VMEM((10, LANES), jnp.float32),       # a11  (x1_1)
            pltpu.VMEM((H0 + 2, LANES), jnp.float32),   # a02  (x0_2)
            pltpu.VMEM((H0 + 2, LANES), jnp.float32),   # up_a (up x1_0)
            pltpu.VMEM((10, LANES), jnp.float32),       # up_b (up x2_0)
            pltpu.VMEM((H0 + 2, LANES), jnp.float32),   # up_c (up x1_1)
        ],
        compiler_params=pltpu.CompilerParams(
            dimension_semantics=("parallel",)),
    )(x, params["w"], params["b"])

    # (N,16,128) -> (N,16,16,8) -> keep the NUM_CLASSES real channels -> NCHW
    logits = out_wide.reshape(N, H0, W0, cpp0)[..., :NUM_CLASSES]
    return jnp.transpose(logits, (0, 3, 1, 2))


# ----------------------------------------------------------------------------
# Host-side (init-time) weight preparation: fold dx taps / stride / upsample
# into banded (128,128) matrices, one per dy, per conv branch.
# ----------------------------------------------------------------------------
def _band_s1(K, W, cpp_in, cpp_out):
    """Stride-1 3x3 conv, pad=1.  K: (3,3,cin,cout)."""
    cin, cout = K.shape[2], K.shape[3]
    B = np.zeros((3, LANES, LANES), np.float32)
    for dy in range(3):
        for wo in range(W):
            for dx in range(3):
                wi = wo + dx - 1
                if 0 <= wi < W:
                    B[dy, wi * cpp_in:wi * cpp_in + cin,
                          wo * cpp_out:wo * cpp_out + cout] = K[dy, dx]
    return B


def _band_s2(K, W_in, cpp_in, cpp_out):
    """Stride-2 3x3 conv, pad=1 (stride-2 in w folded here; in h handled in-kernel)."""
    cin, cout = K.shape[2], K.shape[3]
    B = np.zeros((3, LANES, LANES), np.float32)
    for dy in range(3):
        for wo in range(W_in // 2):
            for dx in range(3):
                wi = 2 * wo + dx - 1
                if 0 <= wi < W_in:
                    B[dy, wi * cpp_in:wi * cpp_in + cin,
                          wo * cpp_out:wo * cpp_out + cout] = K[dy, dx]
    return B


def _band_up(K, W_out, cpp_coarse, cpp_out):
    """3x3 conv over a nearest-neighbor 2x-upsampled input; the w-upsample is
    folded into the weights (coarse row -> fine output row)."""
    cin, cout = K.shape[2], K.shape[3]
    B = np.zeros((3, LANES, LANES), np.float32)
    for dy in range(3):
        for wo in range(W_out):
            for dx in range(3):
                q = wo + dx - 1                    # fine input position
                if 0 <= q < W_out:
                    wc = q // 2                    # coarse source position
                    B[dy, wc * cpp_coarse:wc * cpp_coarse + cin,
                          wo * cpp_out:wo * cpp_out + cout] += K[dy, dx]
    return B


def _bias_row(b, W, cpp):
    row = np.zeros((LANES,), np.float32)
    for w in range(W):
        row[w * cpp:w * cpp + b.shape[0]] = b
    return row


def init_params(key):
    c0, c1, c2 = ENC_CH
    convs = [                       # (name, per-branch cins, cout)
        ("enc0",  [3],          c0),
        ("enc1",  [c0],         c1),
        ("enc2",  [c1],         c2),
        ("dec01", [c0, c1],     c0),
        ("dec11", [c1, c2],     c1),
        ("dec02", [c0, c0, c1], c0),
        ("head",  [c0],         NUM_CLASSES),
    ]
    keys = jax.random.split(key, len(convs) + 1)
    kernels, biases = {}, {}
    for (name, cins, cout), k in zip(convs, keys[:-1]):
        bkeys = jax.random.split(k, len(cins))
        scale = (9.0 * float(sum(cins))) ** -0.5
        kernels[name] = [np.asarray(jax.random.normal(bk, (3, 3, cin, cout),
                                                      jnp.float32)) * scale
                         for bk, cin in zip(bkeys, cins)]
    for (name, _, cout), bk in zip(convs, jax.random.split(keys[-1], len(convs))):
        biases[name] = np.asarray(jax.random.normal(bk, (cout,),
                                                    jnp.float32)) * 0.01

    W_all = np.zeros((NUM_BRANCHES, 3, LANES, LANES), np.float32)
    W_all[B_ENC0] = _band_s1(kernels["enc0"][0],  W=16, cpp_in=8,  cpp_out=8)
    W_all[B_ENC1] = _band_s2(kernels["enc1"][0],  W_in=16, cpp_in=8,  cpp_out=16)
    W_all[B_ENC2] = _band_s2(kernels["enc2"][0],  W_in=8,  cpp_in=16, cpp_out=32)
    W_all[B_D01A] = _band_s1(kernels["dec01"][0], W=16, cpp_in=8,  cpp_out=8)
    W_all[B_D01B] = _band_up(kernels["dec01"][1], W_out=16, cpp_coarse=16, cpp_out=8)
    W_all[B_D11A] = _band_s1(kernels["dec11"][0], W=8,  cpp_in=16, cpp_out=16)
    W_all[B_D11B] = _band_up(kernels["dec11"][1], W_out=8,  cpp_coarse=32, cpp_out=16)
    W_all[B_D02A] = _band_s1(kernels["dec02"][0], W=16, cpp_in=8,  cpp_out=8)
    W_all[B_D02B] = _band_s1(kernels["dec02"][1], W=16, cpp_in=8,  cpp_out=8)
    W_all[B_D02C] = _band_up(kernels["dec02"][2], W_out=16, cpp_coarse=16, cpp_out=8)
    W_all[B_HEAD] = _band_s1(kernels["head"][0],  W=16, cpp_in=8,  cpp_out=8)

    B_all = np.zeros((NUM_CONVS, LANES), np.float32)
    B_all[C_ENC0] = _bias_row(biases["enc0"],  16, 8)
    B_all[C_ENC1] = _bias_row(biases["enc1"],  8, 16)
    B_all[C_ENC2] = _bias_row(biases["enc2"],  4, 32)
    B_all[C_D01]  = _bias_row(biases["dec01"], 16, 8)
    B_all[C_D11]  = _bias_row(biases["dec11"], 8, 16)
    B_all[C_D02]  = _bias_row(biases["dec02"], 16, 8)
    B_all[C_HEAD] = _bias_row(biases["head"],  16, 8)

    return {"w": jnp.asarray(W_all), "b": jnp.asarray(B_all)}


if __name__ == "__main__":
    key = jax.random.PRNGKey(0)
    pkey, xkey = jax.random.split(key)

    params = init_params(pkey)
    x = jax.random.normal(xkey, (2, 3, 16, 16), jnp.float32)   # NCHW, in_channels=3

    fwd = jax.jit(unetpp_forward)
    out = jax.block_until_ready(fwd(params, x))

    assert out.shape == (2, NUM_CLASSES, 16, 16), out.shape
    assert out.dtype == jnp.float32
    assert bool(jnp.all(jnp.isfinite(out)))
    print("KERNEL_OK")
</pallas_src>

<mosaic_0001>
module attributes {stable_mosaic.version = 11 : i64} {
  func.func @_unetpp_kernel(%arg0: i32, %arg1: memref<1x18x128xf32, #tpu.memory_space<vmem>>, %arg2: memref<11x3x128x128xf32, #tpu.memory_space<vmem>>, %arg3: memref<7x128xf32, #tpu.memory_space<vmem>>, %arg4: memref<1x16x128xf32, #tpu.memory_space<vmem>>, %arg5: memref<18x128xf32, #tpu.memory_space<vmem>>, %arg6: memref<10x128xf32, #tpu.memory_space<vmem>>, %arg7: memref<6x128xf32, #tpu.memory_space<vmem>>, %arg8: memref<18x128xf32, #tpu.memory_space<vmem>>, %arg9: memref<10x128xf32, #tpu.memory_space<vmem>>, %arg10: memref<18x128xf32, #tpu.memory_space<vmem>>, %arg11: memref<18x128xf32, #tpu.memory_space<vmem>>, %arg12: memref<10x128xf32, #tpu.memory_space<vmem>>, %arg13: memref<18x128xf32, #tpu.memory_space<vmem>>) attributes {dimension_semantics = [#tpu.dimension_semantics<parallel>], iteration_bounds = array<i64: 2>, scalar_prefetch = 0 : i64, scratch_operands = 9 : i64, tpu.core_type = #tpu.core_type<tc>, window_params = [{transform_indices = @transform_0, window_bounds = array<i64: 1, 18, 128>}, {pipeline_mode = #tpu.pipeline_mode<synchronous>, transform_indices = @transform_1, window_bounds = array<i64: 11, 3, 128, 128>}, {pipeline_mode = #tpu.pipeline_mode<synchronous>, transform_indices = @transform_2, window_bounds = array<i64: 7, 128>}, {transform_indices = @transform_3, window_bounds = array<i64: 1, 16, 128>}]} {
    %cst = arith.constant 0.000000e+00 : f32
    %0 = vector.broadcast %cst : f32 to vector<1x128xf32>
    %cst_0 = arith.constant 0.000000e+00 : f32
    %1 = vector.broadcast %cst_0 : f32 to vector<16x128xf32>
    %c0 = arith.constant 0 : index
    %c0_1 = arith.constant 0 : index
    %c0_2 = arith.constant 0 : index
    %2 = vector.load %arg1[%c0, %c0_1, %c0_2] : memref<1x18x128xf32, #tpu.memory_space<vmem>>, vector<1x16x128xf32>
    %3 = vector.shape_cast %2 : vector<1x16x128xf32> to vector<16x128xf32>
    %c0_3 = arith.constant 0 : index
    %c0_4 = arith.constant 0 : index
    %c0_5 = arith.constant 0 : index
    %c0_6 = arith.constant 0 : index
    %4 = vector.load %arg2[%c0_3, %c0_4, %c0_5, %c0_6] : memref<11x3x128x128xf32, #tpu.memory_space<vmem>>, vector<1x1x128x128xf32>
    %5 = vector.shape_cast %4 : vector<1x1x128x128xf32> to vector<128x128xf32>
    %cst_7 = arith.constant dense<0.000000e+00> : vector<16x128xf32>
    %6 = tpu.matmul %3, %5, %cst_7 {dimension_numbers = #tpu.dot_dimension_numbers<[1], [0], [0], [1], [0, 0, 1, 1], [], []>} : vector<16x128xf32>, vector<128x128xf32>, vector<16x128xf32> -> vector<16x128xf32>
    %7 = arith.addf %1, %6 : vector<16x128xf32>
    %c0_8 = arith.constant 0 : index
    %c1 = arith.constant 1 : index
    %c0_9 = arith.constant 0 : index
    %8 = vector.load %arg1[%c0_8, %c1, %c0_9] : memref<1x18x128xf32, #tpu.memory_space<vmem>>, vector<1x16x128xf32>
    %9 = vector.shape_cast %8 : vector<1x16x128xf32> to vector<16x128xf32>
    %c0_10 = arith.constant 0 : index
    %c1_11 = arith.constant 1 : index
    %c0_12 = arith.constant 0 : index
    %c0_13 = arith.constant 0 : index
    %10 = vector.load %arg2[%c0_10, %c1_11, %c0_12, %c0_13] : memref<11x3x128x128xf32, #tpu.memory_space<vmem>>, vector<1x1x128x128xf32>
    %11 = vector.shape_cast %10 : vector<1x1x128x128xf32> to vector<128x128xf32>
    %cst_14 = arith.constant dense<0.000000e+00> : vector<16x128xf32>
    %12 = tpu.matmul %9, %11, %cst_14 {dimension_numbers = #tpu.dot_dimension_numbers<[1], [0], [0], [1], [0, 0, 1, 1], [], []>} : vector<16x128xf32>, vector<128x128xf32>, vector<16x128xf32> -> vector<16x128xf32>
    %13 = arith.addf %7, %12 : vector<16x128xf32>
    %c0_15 = arith.constant 0 : index
    %c2 = arith.constant 2 : index
    %c0_16 = arith.constant 0 : index
    %14 = vector.load %arg1[%c0_15, %c2, %c0_16] : memref<1x18x128xf32, #tpu.memory_space<vmem>>, vector<1x16x128xf32>
    %15 = vector.shape_cast %14 : vector<1x16x128xf32> to vector<16x128xf32>
    %c0_17 = arith.constant 0 : index
    %c2_18 = arith.constant 2 : index
    %c0_19 = arith.constant 0 : index
    %c0_20 = arith.constant 0 : index
    %16 = vector.load %arg2[%c0_17, %c2_18, %c0_19, %c0_20] : memref<11x3x128x128xf32, #tpu.memory_space<vmem>>, vector<1x1x128x128xf32>
    %17 = vector.shape_cast %16 : vector<1x1x128x128xf32> to vector<128x128xf32>
    %cst_21 = arith.constant dense<0.000000e+00> : vector<16x128xf32>
    %18 = tpu.matmul %15, %17, %cst_21 {dimension_numbers = #tpu.dot_dimension_numbers<[1], [0], [0], [1], [0, 0, 1, 1], [], []>} : vector<16x128xf32>, vector<128x128xf32>, vector<16x128xf32> -> vector<16x128xf32>
    %19 = arith.addf %13, %18 : vector<16x128xf32>
    %c0_22 = arith.constant 0 : index
    %c0_23 = arith.constant 0 : index
    %20 = vector.load %arg3[%c0_22, %c0_23] : memref<7x128xf32, #tpu.memory_space<vmem>>, vector<1x128xf32>
    %21 = vector.broadcast %20 : vector<1x128xf32> to vector<16x128xf32>
    %22 = arith.addf %19, %21 : vector<16x128xf32>
    %cst_24 = arith.constant 0.000000e+00 : f32
    %23 = vector.broadcast %cst_24 : f32 to vector<16x128xf32>
    %24 = arith.maximumf %22, %23 : vector<16x128xf32>
    %c1_25 = arith.constant 1 : index
    %c0_26 = arith.constant 0 : index
    %25 = vector.load %arg5[%c1_25, %c0_26] : memref<18x128xf32, #tpu.memory_space<vmem>>, vector<16x128xf32>
    tpu.vector_store %arg5[%c1_25, %c0_26], %24 {strides = array<i32>} : memref<18x128xf32, #tpu.memory_space<vmem>>, vector<16x128xf32>,
    %c0_27 = arith.constant 0 : index
    %c0_28 = arith.constant 0 : index
    %26 = vector.load %arg5[%c0_27, %c0_28] : memref<18x128xf32, #tpu.memory_space<vmem>>, vector<1x128xf32>
    tpu.vector_store %arg5[%c0_27, %c0_28], %0 {strides = array<i32>} : memref<18x128xf32, #tpu.memory_space<vmem>>, vector<1x128xf32>,
    %c17 = arith.constant 17 : index
    %c0_29 = arith.constant 0 : index
    %27 = vector.load %arg5[%c17, %c0_29] : memref<18x128xf32, #tpu.memory_space<vmem>>, vector<1x128xf32>
    tpu.vector_store %arg5[%c17, %c0_29], %0 {strides = array<i32>} : memref<18x128xf32, #tpu.memory_space<vmem>>, vector<1x128xf32>,
    %cst_30 = arith.constant 0.000000e+00 : f32
    %28 = vector.broadcast %cst_30 : f32 to vector<8x128xf32>
    %c0_31 = arith.constant 0 : index
    %c0_32 = arith.constant 0 : index
    %29 = tpu.strided_load %arg5[%c0_31, %c0_32] {strides = array<i32: 2, 1>} : memref<18x128xf32, #tpu.memory_space<vmem>>, vector<8x128xf32>
    %c1_33 = arith.constant 1 : index
    %c0_34 = arith.constant 0 : index
    %c0_35 = arith.constant 0 : index
    %c0_36 = arith.constant 0 : index
    %30 = vector.load %arg2[%c1_33, %c0_34, %c0_35, %c0_36] : memref<11x3x128x128xf32, #tpu.memory_space<vmem>>, vector<1x1x128x128xf32>
    %31 = vector.shape_cast %30 : vector<1x1x128x128xf32> to vector<128x128xf32>
    %cst_37 = arith.constant dense<0.000000e+00> : vector<8x128xf32>
    %32 = tpu.matmul %29, %31, %cst_37 {dimension_numbers = #tpu.dot_dimension_numbers<[1], [0], [0], [1], [0, 0, 1, 1], [], []>} : vector<8x128xf32>, vector<128x128xf32>, vector<8x128xf32> -> vector<8x128xf32>
    %33 = arith.addf %28, %32 : vector<8x128xf32>
    %c1_38 = arith.constant 1 : index
    %c0_39 = arith.constant 0 : index
    %34 = tpu.strided_load %arg5[%c1_38, %c0_39] {strides = array<i32: 2, 1>} : memref<18x128xf32, #tpu.memory_space<vmem>>, vector<8x128xf32>
    %c1_40 = arith.constant 1 : index
    %c1_41 = arith.constant 1 : index
    %c0_42 = arith.constant 0 : index
    %c0_43 = arith.constant 0 : index
    %35 = vector.load %arg2[%c1_40, %c1_41, %c0_42, %c0_43] : memref<11x3x128x128xf32, #tpu.memory_space<vmem>>, vector<1x1x128x128xf32>
    %36 = vector.shape_cast %35 : vector<1x1x128x128xf32> to vector<128x128xf32>
    %cst_44 = arith.constant dense<0.000000e+00> : vector<8x128xf32>
    %37 = tpu.matmul %34, %36, %cst_44 {dimension_numbers = #tpu.dot_dimension_numbers<[1], [0], [0], [1], [0, 0, 1, 1], [], []>} : vector<8x128xf32>, vector<128x128xf32>, vector<8x128xf32> -> vector<8x128xf32>
    %38 = arith.addf %33, %37 : vector<8x128xf32>
    %c2_45 = arith.constant 2 : index
    %c0_46 = arith.constant 0 : index
    %39 = tpu.strided_load %arg5[%c2_45, %c0_46] {strides = array<i32: 2, 1>} : memref<18x128xf32, #tpu.memory_space<vmem>>, vector<8x128xf32>
    %c1_47 = arith.constant 1 : index
    %c2_48 = arith.constant 2 : index
    %c0_49 = arith.constant 0 : index
    %c0_50 = arith.constant 0 : index
    %40 = vector.load %arg2[%c1_47, %c2_48, %c0_49, %c0_50] : memref<11x3x128x128xf32, #tpu.memory_space<vmem>>, vector<1x1x128x128xf32>
    %41 = vector.shape_cast %40 : vector<1x1x128x128xf32> to vector<128x128xf32>
    %cst_51 = arith.constant dense<0.000000e+00> : vector<8x128xf32>
    %42 = tpu.matmul %39, %41, %cst_51 {dimension_numbers = #tpu.dot_dimension_numbers<[1], [0], [0], [1], [0, 0, 1, 1], [], []>} : vector<8x128xf32>, vector<128x128xf32>, vector<8x128xf32> -> vector<8x128xf32>
    %43 = arith.addf %38, %42 : vector<8x128xf32>
    %c1_52 = arith.constant 1 : index
    %c0_53 = arith.constant 0 : index
    %44 = vector.load %arg3[%c1_52, %c0_53] : memref<7x128xf32, #tpu.memory_space<vmem>>, vector<1x128xf32>
    %45 = vector.broadcast %44 : vector<1x128xf32> to vector<8x128xf32>
    %46 = arith.addf %43, %45 : vector<8x128xf32>
    %cst_54 = arith.constant 0.000000e+00 : f32
    %47 = vector.broadcast %cst_54 : f32 to vector<8x128xf32>
    %48 = arith.maximumf %46, %47 : vector<8x128xf32>
    %c1_55 = arith.constant 1 : index
    %c0_56 = arith.constant 0 : index
    %49 = vector.load %arg6[%c1_55, %c0_56] : memref<10x128xf32, #tpu.memory_space<vmem>>, vector<8x128xf32>
    tpu.vector_store %arg6[%c1_55, %c0_56], %48 {strides = array<i32>} : memref<10x128xf32, #tpu.memory_space<vmem>>, vector<8x128xf32>,
    %c0_57 = arith.constant 0 : index
    %c0_58 = arith.constant 0 : index
    %50 = vector.load %arg6[%c0_57, %c0_58] : memref<10x128xf32, #tpu.memory_space<vmem>>, vector<1x128xf32>
    tpu.vector_store %arg6[%c0_57, %c0_58], %0 {strides = array<i32>} : memref<10x128xf32, #tpu.memory_space<vmem>>, vector<1x128xf32>,
    %c9 = arith.constant 9 : index
    %c0_59 = arith.constant 0 : index
    %51 = vector.load %arg6[%c9, %c0_59] : memref<10x128xf32, #tpu.memory_space<vmem>>, vector<1x128xf32>
    tpu.vector_store %arg6[%c9, %c0_59], %0 {strides = array<i32>} : memref<10x128xf32, #tpu.memory_space<vmem>>, vector<1x128xf32>,
    %cst_60 = arith.constant 0.000000e+00 : f32
    %52 = vector.broadcast %cst_60 : f32 to vector<4x128xf32>
    %c0_61 = arith.constant 0 : index
    %c0_62 = arith.constant 0 : index
    %53 = tpu.strided_load %arg6[%c0_61, %c0_62] {strides = array<i32: 2, 1>} : memref<10x128xf32, #tpu.memory_space<vmem>>, vector<4x128xf32>
    %c2_63 = arith.constant 2 : index
    %c0_64 = arith.constant 0 : index
    %c0_65 = arith.constant 0 : index
    %c0_66 = arith.constant 0 : index
    %54 = vector.load %arg2[%c2_63, %c0_64, %c0_65, %c0_66] : memref<11x3x128x128xf32, #tpu.memory_space<vmem>>, vector<1x1x128x128xf32>
    %55 = vector.shape_cast %54 : vector<1x1x128x128xf32> to vector<128x128xf32>
    %cst_67 = arith.constant dense<0.000000e+00> : vector<4x128xf32>
    %56 = tpu.matmul %53, %55, %cst_67 {dimension_numbers = #tpu.dot_dimension_numbers<[1], [0], [0], [1], [0, 0, 1, 1], [], []>} : vector<4x128xf32>, vector<128x128xf32>, vector<4x128xf32> -> vector<4x128xf32>
    %57 = arith.addf %52, %56 : vector<4x128xf32>
    %c1_68 = arith.constant 1 : index
    %c0_69 = arith.constant 0 : index
    %58 = tpu.strided_load %arg6[%c1_68, %c0_69] {strides = array<i32: 2, 1>} : memref<10x128xf32, #tpu.memory_space<vmem>>, vector<4x128xf32>
    %c2_70 = arith.constant 2 : index
    %c1_71 = arith.constant 1 : index
    %c0_72 = arith.constant 0 : index
    %c0_73 = arith.constant 0 : index
    %59 = vector.load %arg2[%c2_70, %c1_71, %c0_72, %c0_73] : memref<11x3x128x128xf32, #tpu.memory_space<vmem>>, vector<1x1x128x128xf32>
    %60 = vector.shape_cast %59 : vector<1x1x128x128xf32> to vector<128x128xf32>
    %cst_74 = arith.constant dense<0.000000e+00> : vector<4x128xf32>
    %61 = tpu.matmul %58, %60, %cst_74 {dimension_numbers = #tpu.dot_dimension_numbers<[1], [0], [0], [1], [0, 0, 1, 1], [], []>} : vector<4x128xf32>, vector<128x128xf32>, vector<4x128xf32> -> vector<4x128xf32>
    %62 = arith.addf %57, %61 : vector<4x128xf32>
    %c2_75 = arith.constant 2 : index
    %c0_76 = arith.constant 0 : index
    %63 = tpu.strided_load %arg6[%c2_75, %c0_76] {strides = array<i32: 2, 1>} : memref<10x128xf32, #tpu.memory_space<vmem>>, vector<4x128xf32>
    %c2_77 = arith.constant 2 : index
    %c2_78 = arith.constant 2 : index
    %c0_79 = arith.constant 0 : index
    %c0_80 = arith.constant 0 : index
    %64 = vector.load %arg2[%c2_77, %c2_78, %c0_79, %c0_80] : memref<11x3x128x128xf32, #tpu.memory_space<vmem>>, vector<1x1x128x128xf32>
    %65 = vector.shape_cast %64 : vector<1x1x128x128xf32> to vector<128x128xf32>
    %cst_81 = arith.constant dense<0.000000e+00> : vector<4x128xf32>
    %66 = tpu.matmul %63, %65, %cst_81 {dimension_numbers = #tpu.dot_dimension_numbers<[1], [0], [0], [1], [0, 0, 1, 1], [], []>} : vector<4x128xf32>, vector<128x128xf32>, vector<4x128xf32> -> vector<4x128xf32>
    %67 = arith.addf %62, %66 : vector<4x128xf32>
    %c2_82 = arith.constant 2 : index
    %c0_83 = arith.constant 0 : index
    %68 = vector.load %arg3[%c2_82, %c0_83] : memref<7x128xf32, #tpu.memory_space<vmem>>, vector<1x128xf32>
    %69 = vector.broadcast %68 : vector<1x128xf32> to vector<4x128xf32>
    %70 = arith.addf %67, %69 : vector<4x128xf32>
    %cst_84 = arith.constant 0.000000e+00 : f32
    %71 = vector.broadcast %cst_84 : f32 to vector<4x128xf32>
    %72 = arith.maximumf %70, %71 : vector<4x128xf32>
    %c1_85 = arith.constant 1 : index
    %c0_86 = arith.constant 0 : index
    %73 = vector.load %arg7[%c1_85, %c0_86] : memref<6x128xf32, #tpu.memory_space<vmem>>, vector<4x128xf32>
    tpu.vector_store %arg7[%c1_85, %c0_86], %72 {strides = array<i32>} : memref<6x128xf32, #tpu.memory_space<vmem>>, vector<4x128xf32>,
    %c0_87 = arith.constant 0 : index
    %c0_88 = arith.constant 0 : index
    %74 = vector.load %arg7[%c0_87, %c0_88] : memref<6x128xf32, #tpu.memory_space<vmem>>, vector<1x128xf32>
    tpu.vector_store %arg7[%c0_87, %c0_88], %0 {strides = array<i32>} : memref<6x128xf32, #tpu.memory_space<vmem>>, vector<1x128xf32>,
    %c5 = arith.constant 5 : index
    %c0_89 = arith.constant 0 : index
    %75 = vector.load %arg7[%c5, %c0_89] : memref<6x128xf32, #tpu.memory_space<vmem>>, vector<1x128xf32>
    tpu.vector_store %arg7[%c5, %c0_89], %0 {strides = array<i32>} : memref<6x128xf32, #tpu.memory_space<vmem>>, vector<1x128xf32>,
    %c0_90 = arith.constant 0 : index
    %c0_91 = arith.constant 0 : index
    %76 = vector.load %arg11[%c0_90, %c0_91] : memref<18x128xf32, #tpu.memory_space<vmem>>, vector<1x128xf32>
    tpu.vector_store %arg11[%c0_90, %c0_91], %0 {strides = array<i32>} : memref<18x128xf32, #tpu.memory_space<vmem>>, vector<1x128xf32>,
    %c17_92 = arith.constant 17 : index
    %c0_93 = arith.constant 0 : index
    %77 = vector.load %arg11[%c17_92, %c0_93] : memref<18x128xf32, #tpu.memory_space<vmem>>, vector<1x128xf32>
    tpu.vector_store %arg11[%c17_92, %c0_93], %0 {strides = array<i32>} : memref<18x128xf32, #tpu.memory_space<vmem>>, vector<1x128xf32>,
    %c1_94 = arith.constant 1 : index
    %c0_95 = arith.constant 0 : index
    %78 = vector.load %arg6[%c1_94, %c0_95] : memref<10x128xf32, #tpu.memory_space<vmem>>, vector<1x128xf32>
    %79 = vector.shape_cast %78 : vector<1x128xf32> to vector<1x128xf32>
    %80 = vector.broadcast %79 : vector<1x128xf32> to vector<2x128xf32>
    %c1_96 = arith.constant 1 : index
    %c0_97 = arith.constant 0 : index
    %81 = vector.load %arg11[%c1_96, %c0_97] : memref<18x128xf32, #tpu.memory_space<vmem>>, vector<2x128xf32>
    tpu.vector_store %arg11[%c1_96, %c0_97], %80 {strides = array<i32>} : memref<18x128xf32, #tpu.memory_space<vmem>>, vector<2x128xf32>,
    %c2_98 = arith.constant 2 : index
    %c0_99 = arith.constant 0 : index
    %82 = vector.load %arg6[%c2_98, %c0_99] : memref<10x128xf32, #tpu.memory_space<vmem>>, vector<1x128xf32>
    %83 = vector.shape_cast %82 : vector<1x128xf32> to vector<1x128xf32>
    %84 = vector.broadcast %83 : vector<1x128xf32> to vector<2x128xf32>
    %c3 = arith.constant 3 : index
    %c0_100 = arith.constant 0 : index
    %85 = vector.load %arg11[%c3, %c0_100] : memref<18x128xf32, #tpu.memory_space<vmem>>, vector<2x128xf32>
    tpu.vector_store %arg11[%c3, %c0_100], %84 {strides = array<i32>} : memref<18x128xf32, #tpu.memory_space<vmem>>, vector<2x128xf32>,
    %c3_101 = arith.constant 3 : index
    %c0_102 = arith.constant 0 : index
    %86 = vector.load %arg6[%c3_101, %c0_102] : memref<10x128xf32, #tpu.memory_space<vmem>>, vector<1x128xf32>
    %87 = vector.shape_cast %86 : vector<1x128xf32> to vector<1x128xf32>
    %88 = vector.broadcast %87 : vector<1x128xf32> to vector<2x128xf32>
    %c5_103 = arith.constant 5 : index
    %c0_104 = arith.constant 0 : index
    %89 = vector.load %arg11[%c5_103, %c0_104] : memref<18x128xf32, #tpu.memory_space<vmem>>, vector<2x128xf32>
    tpu.vector_store %arg11[%c5_103, %c0_104], %88 {strides = array<i32>} : memref<18x128xf32, #tpu.memory_space<vmem>>, vector<2x128xf32>,
    %c4 = arith.constant 4 : index
    %c0_105 = arith.constant 0 : index
    %90 = vector.load %arg6[%c4, %c0_105] : memref<10x128xf32, #tpu.memory_space<vmem>>, vector<1x128xf32>
    %91 = vector.shape_cast %90 : vector<1x128xf32> to vector<1x128xf32>
    %92 = vector.broadcast %91 : vector<1x128xf32> to vector<2x128xf32>
    %c7 = arith.constant 7 : index
    %c0_106 = arith.constant 0 : index
    %93 = vector.load %arg11[%c7, %c0_106] : memref<18x128xf32, #tpu.memory_space<vmem>>, vector<2x128xf32>
    tpu.vector_store %arg11[%c7, %c0_106], %92 {strides = array<i32>} : memref<18x128xf32, #tpu.memory_space<vmem>>, vector<2x128xf32>,
    %c5_107 = arith.constant 5 : index
    %c0_108 = arith.constant 0 : index
    %94 = vector.load %arg6[%c5_107, %c0_108] : memref<10x128xf32, #tpu.memory_space<vmem>>, vector<1x128xf32>
    %95 = vector.shape_cast %94 : vector<1x128xf32> to vector<1x128xf32>
    %96 = vector.broadcast %95 : vector<1x128xf32> to vector<2x128xf32>
    %c9_109 = arith.constant 9 : index
    %c0_110 = arith.constant 0 : index
    %97 = vector.load %arg11[%c9_109, %c0_110] : memref<18x128xf32, #tpu.memory_space<vmem>>, vector<2x128xf32>
    tpu.vector_store %arg11[%c9_109, %c0_110], %96 {strides = array<i32>} : memref<18x128xf32, #tpu.memory_space<vmem>>, vector<2x128xf32>,
    %c6 = arith.constant 6 : index
    %c0_111 = arith.constant 0 : index
    %98 = vector.load %arg6[%c6, %c0_111] : memref<10x128xf32, #tpu.memory_space<vmem>>, vector<1x128xf32>
    %99 = vector.shape_cast %98 : vector<1x128xf32> to vector<1x128xf32>
    %100 = vector.broadcast %99 : vector<1x128xf32> to vector<2x128xf32>
    %c11 = arith.constant 11 : index
    %c0_112 = arith.constant 0 : index
    %101 = vector.load %arg11[%c11, %c0_112] : memref<18x128xf32, #tpu.memory_space<vmem>>, vector<2x128xf32>
    tpu.vector_store %arg11[%c11, %c0_112], %100 {strides = array<i32>} : memref<18x128xf32, #tpu.memory_space<vmem>>, vector<2x128xf32>,
    %c7_113 = arith.constant 7 : index
    %c0_114 = arith.constant 0 : index
    %102 = vector.load %arg6[%c7_113, %c0_114] : memref<10x128xf32, #tpu.memory_space<vmem>>, vector<1x128xf32>
    %103 = vector.shape_cast %102 : vector<1x128xf32> to vector<1x128xf32>
    %104 = vector.broadcast %103 : vector<1x128xf32> to vector<2x128xf32>
    %c13 = arith.constant 13 : index
    %c0_115 = arith.constant 0 : index
    %105 = vector.load %arg11[%c13, %c0_115] : memref<18x128xf32, #tpu.memory_space<vmem>>, vector<2x128xf32>
    tpu.vector_store %arg11[%c13, %c0_115], %104 {strides = array<i32>} : memref<18x128xf32, #tpu.memory_space<vmem>>, vector<2x128xf32>,
    %c8 = arith.constant 8 : index
    %c0_116 = arith.constant 0 : index
    %106 = vector.load %arg6[%c8, %c0_116] : memref<10x128xf32, #tpu.memory_space<vmem>>, vector<1x128xf32>
    %107 = vector.shape_cast %106 : vector<1x128xf32> to vector<1x128xf32>
    %108 = vector.broadcast %107 : vector<1x128xf32> to vector<2x128xf32>
    %c15 = arith.constant 15 : index
    %c0_117 = arith.constant 0 : index
    %109 = vector.load %arg11[%c15, %c0_117] : memref<18x128xf32, #tpu.memory_space<vmem>>, vector<2x128xf32>
    tpu.vector_store %arg11[%c15, %c0_117], %108 {strides = array<i32>} : memref<18x128xf32, #tpu.memory_space<vmem>>, vector<2x128xf32>,
    %cst_118 = arith.constant 0.000000e+00 : f32
    %110 = vector.broadcast %cst_118 : f32 to vector<16x128xf32>
    %c0_119 = arith.constant 0 : index
    %c0_120 = arith.constant 0 : index
    %111 = vector.load %arg5[%c0_119, %c0_120] : memref<18x128xf32, #tpu.memory_space<vmem>>, vector<16x128xf32>
    %c3_121 = arith.constant 3 : index
    %c0_122 = arith.constant 0 : index
    %c0_123 = arith.constant 0 : index
    %c0_124 = arith.constant 0 : index
    %112 = vector.load %arg2[%c3_121, %c0_122, %c0_123, %c0_124] : memref<11x3x128x128xf32, #tpu.memory_space<vmem>>, vector<1x1x128x128xf32>
    %113 = vector.shape_cast %112 : vector<1x1x128x128xf32> to vector<128x128xf32>
    %cst_125 = arith.constant dense<0.000000e+00> : vector<16x128xf32>
    %114 = tpu.matmul %111, %113, %cst_125 {dimension_numbers = #tpu.dot_dimension_numbers<[1], [0], [0], [1], [0, 0, 1, 1], [], []>} : vector<16x128xf32>, vector<128x128xf32>, vector<16x128xf32> -> vector<16x128xf32>
    %115 = arith.addf %110, %114 : vector<16x128xf32>
    %c1_126 = arith.constant 1 : index
    %c0_127 = arith.constant 0 : index
    %116 = vector.load %arg5[%c1_126, %c0_127] : memref<18x128xf32, #tpu.memory_space<vmem>>, vector<16x128xf32>
    %c3_128 = arith.constant 3 : index
    %c1_129 = arith.constant 1 : index
    %c0_130 = arith.constant 0 : index
    %c0_131 = arith.constant 0 : index
    %117 = vector.load %arg2[%c3_128, %c1_129, %c0_130, %c0_131] : memref<11x3x128x128xf32, #tpu.memory_space<vmem>>, vector<1x1x128x128xf32>
    %118 = vector.shape_cast %117 : vector<1x1x128x128xf32> to vector<128x128xf32>
    %cst_132 = arith.constant dense<0.000000e+00> : vector<16x128xf32>
    %119 = tpu.matmul %116, %118, %cst_132 {dimension_numbers = #tpu.dot_dimension_numbers<[1], [0], [0], [1], [0, 0, 1, 1], [], []>} : vector<16x128xf32>, vector<128x128xf32>, vector<16x128xf32> -> vector<16x128xf32>
    %120 = arith.addf %115, %119 : vector<16x128xf32>
    %c2_133 = arith.constant 2 : index
    %c0_134 = arith.constant 0 : index
    %121 = vector.load %arg5[%c2_133, %c0_134] : memref<18x128xf32, #tpu.memory_space<vmem>>, vector<16x128xf32>
    %c3_135 = arith.constant 3 : index
    %c2_136 = arith.constant 2 : index
    %c0_137 = arith.constant 0 : index
    %c0_138 = arith.constant 0 : index
    %122 = vector.load %arg2[%c3_135, %c2_136, %c0_137, %c0_138] : memref<11x3x128x128xf32, #tpu.memory_space<vmem>>, vector<1x1x128x128xf32>
    %123 = vector.shape_cast %122 : vector<1x1x128x128xf32> to vector<128x128xf32>
    %cst_139 = arith.constant dense<0.000000e+00> : vector<16x128xf32>
    %124 = tpu.matmul %121, %123, %cst_139 {dimension_numbers = #tpu.dot_dimension_numbers<[1], [0], [0], [1], [0, 0, 1, 1], [], []>} : vector<16x128xf32>, vector<128x128xf32>, vector<16x128xf32> -> vector<16x128xf32>
    %125 = arith.addf %120, %124 : vector<16x128xf32>
    %c0_140 = arith.constant 0 : index
    %c0_141 = arith.constant 0 : index
    %126 = vector.load %arg11[%c0_140, %c0_141] : memref<18x128xf32, #tpu.memory_space<vmem>>, vector<16x128xf32>
    %c4_142 = arith.constant 4 : index
    %c0_143 = arith.constant 0 : index
    %c0_144 = arith.constant 0 : index
    %c0_145 = arith.constant 0 : index
    %127 = vector.load %arg2[%c4_142, %c0_143, %c0_144, %c0_145] : memref<11x3x128x128xf32, #tpu.memory_space<vmem>>, vector<1x1x128x128xf32>
    %128 = vector.shape_cast %127 : vector<1x1x128x128xf32> to vector<128x128xf32>
    %cst_146 = arith.constant dense<0.000000e+00> : vector<16x128xf32>
    %129 = tpu.matmul %126, %128, %cst_146 {dimension_numbers = #tpu.dot_dimension_numbers<[1], [0], [0], [1], [0, 0, 1, 1], [], []>} : vector<16x128xf32>, vector<128x128xf32>, vector<16x128xf32> -> vector<16x128xf32>
    %130 = arith.addf %125, %129 : vector<16x128xf32>
    %c1_147 = arith.constant 1 : index
    %c0_148 = arith.constant 0 : index
    %131 = vector.load %arg11[%c1_147, %c0_148] : memref<18x128xf32, #tpu.memory_space<vmem>>, vector<16x128xf32>
    %c4_149 = arith.constant 4 : index
    %c1_150 = arith.constant 1 : index
    %c0_151 = arith.constant 0 : index
    %c0_152 = arith.constant 0 : index
    %132 = vector.load %arg2[%c4_149, %c1_150, %c0_151, %c0_152] : memref<11x3x128x128xf32, #tpu.memory_space<vmem>>, vector<1x1x128x128xf32>
    %133 = vector.shape_cast %132 : vector<1x1x128x128xf32> to vector<128x128xf32>
    %cst_153 = arith.constant dense<0.000000e+00> : vector<16x128xf32>
    %134 = tpu.matmul %131, %133, %cst_153 {dimension_numbers = #tpu.dot_dimension_numbers<[1], [0], [0], [1], [0, 0, 1, 1], [], []>} : vector<16x128xf32>, vector<128x128xf32>, vector<16x128xf32> -> vector<16x128xf32>
    %135 = arith.addf %130, %134 : vector<16x128xf32>
    %c2_154 = arith.constant 2 : index
    %c0_155 = arith.constant 0 : index
    %136 = vector.load %arg11[%c2_154, %c0_155] : memref<18x128xf32, #tpu.memory_space<vmem>>, vector<16x128xf32>
    %c4_156 = arith.constant 4 : index
    %c2_157 = arith.constant 2 : index
    %c0_158 = arith.constant 0 : index
    %c0_159 = arith.constant 0 : index
    %137 = vector.load %arg2[%c4_156, %c2_157, %c0_158, %c0_159] : memref<11x3x128x128xf32, #tpu.memory_space<vmem>>, vector<1x1x128x128xf32>
    %138 = vector.shape_cast %137 : vector<1x1x128x128xf32> to vector<128x128xf32>
    %cst_160 = arith.constant dense<0.000000e+00> : vector<16x128xf32>
    %139 = tpu.matmul %136, %138, %cst_160 {dimension_numbers = #tpu.dot_dimension_numbers<[1], [0], [0], [1], [0, 0, 1, 1], [], []>} : vector<16x128xf32>, vector<128x128xf32>, vector<16x128xf32> -> vector<16x128xf32>
    %140 = arith.addf %135, %139 : vector<16x128xf32>
    %c3_161 = arith.constant 3 : index
    %c0_162 = arith.constant 0 : index
    %141 = vector.load %arg3[%c3_161, %c0_162] : memref<7x128xf32, #tpu.memory_space<vmem>>, vector<1x128xf32>
    %142 = vector.broadcast %141 : vector<1x128xf32> to vector<16x128xf32>
    %143 = arith.addf %140, %142 : vector<16x128xf32>
    %cst_163 = arith.constant 0.000000e+00 : f32
    %144 = vector.broadcast %cst_163 : f32 to vector<16x128xf32>
    %145 = arith.maximumf %143, %144 : vector<16x128xf32>
    %c1_164 = arith.constant 1 : index
    %c0_165 = arith.constant 0 : index
    %146 = vector.load %arg8[%c1_164, %c0_165] : memref<18x128xf32, #tpu.memory_space<vmem>>, vector<16x128xf32>
    tpu.vector_store %arg8[%c1_164, %c0_165], %145 {strides = array<i32>} : memref<18x128xf32, #tpu.memory_space<vmem>>, vector<16x128xf32>,
    %c0_166 = arith.constant 0 : index
    %c0_167 = arith.constant 0 : index
    %147 = vector.load %arg8[%c0_166, %c0_167] : memref<18x128xf32, #tpu.memory_space<vmem>>, vector<1x128xf32>
    tpu.vector_store %arg8[%c0_166, %c0_167], %0 {strides = array<i32>} : memref<18x128xf32, #tpu.memory_space<vmem>>, vector<1x128xf32>,
    %c17_168 = arith.constant 17 : index
    %c0_169 = arith.constant 0 : index
    %148 = vector.load %arg8[%c17_168, %c0_169] : memref<18x128xf32, #tpu.memory_space<vmem>>, vector<1x128xf32>
    tpu.vector_store %arg8[%c17_168, %c0_169], %0 {strides = array<i32>} : memref<18x128xf32, #tpu.memory_space<vmem>>, vector<1x128xf32>,
    %c0_170 = arith.constant 0 : index
    %c0_171 = arith.constant 0 : index
    %149 = vector.load %arg12[%c0_170, %c0_171] : memref<10x128xf32, #tpu.memory_space<vmem>>, vector<1x128xf32>
    tpu.vector_store %arg12[%c0_170, %c0_171], %0 {strides = array<i32>} : memref<10x128xf32, #tpu.memory_space<vmem>>, vector<1x128xf32>,
    %c9_172 = arith.constant 9 : index
    %c0_173 = arith.constant 0 : index
    %150 = vector.load %arg12[%c9_172, %c0_173] : memref<10x128xf32, #tpu.memory_space<vmem>>, vector<1x128xf32>
    tpu.vector_store %arg12[%c9_172, %c0_173], %0 {strides = array<i32>} : memref<10x128xf32, #tpu.memory_space<vmem>>, vector<1x128xf32>,
    %c1_174 = arith.constant 1 : index
    %c0_175 = arith.constant 0 : index
    %151 = vector.load %arg7[%c1_174, %c0_175] : memref<6x128xf32, #tpu.memory_space<vmem>>, vector<1x128xf32>
    %152 = vector.shape_cast %151 : vector<1x128xf32> to vector<1x128xf32>
    %153 = vector.broadcast %152 : vector<1x128xf32> to vector<2x128xf32>
    %c1_176 = arith.constant 1 : index
    %c0_177 = arith.constant 0 : index
    %154 = vector.load %arg12[%c1_176, %c0_177] : memref<10x128xf32, #tpu.memory_space<vmem>>, vector<2x128xf32>
    tpu.vector_store %arg12[%c1_176, %c0_177], %153 {strides = array<i32>} : memref<10x128xf32, #tpu.memory_space<vmem>>, vector<2x128xf32>,
    %c2_178 = arith.constant 2 : index
    %c0_179 = arith.constant 0 : index
    %155 = vector.load %arg7[%c2_178, %c0_179] : memref<6x128xf32, #tpu.memory_space<vmem>>, vector<1x128xf32>
    %156 = vector.shape_cast %155 : vector<1x128xf32> to vector<1x128xf32>
    %157 = vector.broadcast %156 : vector<1x128xf32> to vector<2x128xf32>
    %c3_180 = arith.constant 3 : index
    %c0_181 = arith.constant 0 : index
    %158 = vector.load %arg12[%c3_180, %c0_181] : memref<10x128xf32, #tpu.memory_space<vmem>>, vector<2x128xf32>
    tpu.vector_store %arg12[%c3_180, %c0_181], %157 {strides = array<i32>} : memref<10x128xf32, #tpu.memory_space<vmem>>, vector<2x128xf32>,
    %c3_182 = arith.constant 3 : index
    %c0_183 = arith.constant 0 : index
    %159 = vector.load %arg7[%c3_182, %c0_183] : memref<6x128xf32, #tpu.memory_space<vmem>>, vector<1x128xf32>
    %160 = vector.shape_cast %159 : vector<1x128xf32> to vector<1x128xf32>
    %161 = vector.broadcast %160 : vector<1x128xf32> to vector<2x128xf32>
    %c5_184 = arith.constant 5 : index
    %c0_185 = arith.constant 0 : index
    %162 = vector.load %arg12[%c5_184, %c0_185] : memref<10x128xf32, #tpu.memory_space<vmem>>, vector<2x128xf32>
    tpu.vector_store %arg12[%c5_184, %c0_185], %161 {strides = array<i32>} : memref<10x128xf32, #tpu.memory_space<vmem>>, vector<2x128xf32>,
    %c4_186 = arith.constant 4 : index
    %c0_187 = arith.constant 0 : index
    %163 = vector.load %arg7[%c4_186, %c0_187] : memref<6x128xf32, #tpu.memory_space<vmem>>, vector<1x128xf32>
    %164 = vector.shape_cast %163 : vector<1x128xf32> to vector<1x128xf32>
    %165 = vector.broadcast %164 : vector<1x128xf32> to vector<2x128xf32>
    %c7_188 = arith.constant 7 : index
    %c0_189 = arith.constant 0 : index
    %166 = vector.load %arg12[%c7_188, %c0_189] : memref<10x128xf32, #tpu.memory_space<vmem>>, vector<2x128xf32>
    tpu.vector_store %arg12[%c7_188, %c0_189], %165 {strides = array<i32>} : memref<10x128xf32, #tpu.memory_space<vmem>>, vector<2x128xf32>,
    %cst_190 = arith.constant 0.000000e+00 : f32
    %167 = vector.broadcast %cst_190 : f32 to vector<8x128xf32>
    %c0_191 = arith.constant 0 : index
    %c0_192 = arith.constant 0 : index
    %168 = vector.load %arg6[%c0_191, %c0_192] : memref<10x128xf32, #tpu.memory_space<vmem>>, vector<8x128xf32>
    %c5_193 = arith.constant 5 : index
    %c0_194 = arith.constant 0 : index
    %c0_195 = arith.constant 0 : index
    %c0_196 = arith.constant 0 : index
    %169 = vector.load %arg2[%c5_193, %c0_194, %c0_195, %c0_196] : memref<11x3x128x128xf32, #tpu.memory_space<vmem>>, vector<1x1x128x128xf32>
    %170 = vector.shape_cast %169 : vector<1x1x128x128xf32> to vector<128x128xf32>
    %cst_197 = arith.constant dense<0.000000e+00> : vector<8x128xf32>
    %171 = tpu.matmul %168, %170, %cst_197 {dimension_numbers = #tpu.dot_dimension_numbers<[1], [0], [0], [1], [0, 0, 1, 1], [], []>} : vector<8x128xf32>, vector<128x128xf32>, vector<8x128xf32> -> vector<8x128xf32>
    %172 = arith.addf %167, %171 : vector<8x128xf32>
    %c1_198 = arith.constant 1 : index
    %c0_199 = arith.constant 0 : index
    %173 = vector.load %arg6[%c1_198, %c0_199] : memref<10x128xf32, #tpu.memory_space<vmem>>, vector<8x128xf32>
    %c5_200 = arith.constant 5 : index
    %c1_201 = arith.constant 1 : index
    %c0_202 = arith.constant 0 : index
    %c0_203 = arith.constant 0 : index
    %174 = vector.load %arg2[%c5_200, %c1_201, %c0_202, %c0_203] : memref<11x3x128x128xf32, #tpu.memory_space<vmem>>, vector<1x1x128x128xf32>
    %175 = vector.shape_cast %174 : vector<1x1x128x128xf32> to vector<128x128xf32>
    %cst_204 = arith.constant dense<0.000000e+00> : vector<8x128xf32>
    %176 = tpu.matmul %173, %175, %cst_204 {dimension_numbers = #tpu.dot_dimension_numbers<[1], [0], [0], [1], [0, 0, 1, 1], [], []>} : vector<8x128xf32>, vector<128x128xf32>, vector<8x128xf32> -> vector<8x128xf32>
    %177 = arith.addf %172, %176 : vector<8x128xf32>
    %c2_205 = arith.constant 2 : index
    %c0_206 = arith.constant 0 : index
    %178 = vector.load %arg6[%c2_205, %c0_206] : memref<10x128xf32, #tpu.memory_space<vmem>>, vector<8x128xf32>
    %c5_207 = arith.constant 5 : index
    %c2_208 = arith.constant 2 : index
    %c0_209 = arith.constant 0 : index
    %c0_210 = arith.constant 0 : index
    %179 = vector.load %arg2[%c5_207, %c2_208, %c0_209, %c0_210] : memref<11x3x128x128xf32, #tpu.memory_space<vmem>>, vector<1x1x128x128xf32>
    %180 = vector.shape_cast %179 : vector<1x1x128x128xf32> to vector<128x128xf32>
    %cst_211 = arith.constant dense<0.000000e+00> : vector<8x128xf32>
    %181 = tpu.matmul %178, %180, %cst_211 {dimension_numbers = #tpu.dot_dimension_numbers<[1], [0], [0], [1], [0, 0, 1, 1], [], []>} : vector<8x128xf32>, vector<128x128xf32>, vector<8x128xf32> -> vector<8x128xf32>
    %182 = arith.addf %177, %181 : vector<8x128xf32>
    %c0_212 = arith.constant 0 : index
    %c0_213 = arith.constant 0 : index
    %183 = vector.load %arg12[%c0_212, %c0_213] : memref<10x128xf32, #tpu.memory_space<vmem>>, vector<8x128xf32>
    %c6_214 = arith.constant 6 : index
    %c0_215 = arith.constant 0 : index
    %c0_216 = arith.constant 0 : index
    %c0_217 = arith.constant 0 : index
    %184 = vector.load %arg2[%c6_214, %c0_215, %c0_216, %c0_217] : memref<11x3x128x128xf32, #tpu.memory_space<vmem>>, vector<1x1x128x128xf32>
    %185 = vector.shape_cast %184 : vector<1x1x128x128xf32> to vector<128x128xf32>
    %cst_218 = arith.constant dense<0.000000e+00> : vector<8x128xf32>
    %186 = tpu.matmul %183, %185, %cst_218 {dimension_numbers = #tpu.dot_dimension_numbers<[1], [0], [0], [1], [0, 0, 1, 1], [], []>} : vector<8x128xf32>, vector<128x128xf32>, vector<8x128xf32> -> vector<8x128xf32>
    %187 = arith.addf %182, %186 : vector<8x128xf32>
    %c1_219 = arith.constant 1 : index
    %c0_220 = arith.constant 0 : index
    %188 = vector.load %arg12[%c1_219, %c0_220] : memref<10x128xf32, #tpu.memory_space<vmem>>, vector<8x128xf32>
    %c6_221 = arith.constant 6 : index
    %c1_222 = arith.constant 1 : index
    %c0_223 = arith.constant 0 : index
    %c0_224 = arith.constant 0 : index
    %189 = vector.load %arg2[%c6_221, %c1_222, %c0_223, %c0_224] : memref<11x3x128x128xf32, #tpu.memory_space<vmem>>, vector<1x1x128x128xf32>
    %190 = vector.shape_cast %189 : vector<1x1x128x128xf32> to vector<128x128xf32>
    %cst_225 = arith.constant dense<0.000000e+00> : vector<8x128xf32>
    %191 = tpu.matmul %188, %190, %cst_225 {dimension_numbers = #tpu.dot_dimension_numbers<[1], [0], [0], [1], [0, 0, 1, 1], [], []>} : vector<8x128xf32>, vector<128x128xf32>, vector<8x128xf32> -> vector<8x128xf32>
    %192 = arith.addf %187, %191 : vector<8x128xf32>
    %c2_226 = arith.constant 2 : index
    %c0_227 = arith.constant 0 : index
    %193 = vector.load %arg12[%c2_226, %c0_227] : memref<10x128xf32, #tpu.memory_space<vmem>>, vector<8x128xf32>
    %c6_228 = arith.constant 6 : index
    %c2_229 = arith.constant 2 : index
    %c0_230 = arith.constant 0 : index
    %c0_231 = arith.constant 0 : index
    %194 = vector.load %arg2[%c6_228, %c2_229, %c0_230, %c0_231] : memref<11x3x128x128xf32, #tpu.memory_space<vmem>>, vector<1x1x128x128xf32>
    %195 = vector.shape_cast %194 : vector<1x1x128x128xf32> to vector<128x128xf32>
    %cst_232 = arith.constant dense<0.000000e+00> : vector<8x128xf32>
    %196 = tpu.matmul %193, %195, %cst_232 {dimension_numbers = #tpu.dot_dimension_numbers<[1], [0], [0], [1], [0, 0, 1, 1], [], []>} : vector<8x128xf32>, vector<128x128xf32>, vector<8x128xf32> -> vector<8x128xf32>
    %197 = arith.addf %192, %196 : vector<8x128xf32>
    %c4_233 = arith.constant 4 : index
    %c0_234 = arith.constant 0 : index
    %198 = vector.load %arg3[%c4_233, %c0_234] : memref<7x128xf32, #tpu.memory_space<vmem>>, vector<1x128xf32>
    %199 = vector.broadcast %198 : vector<1x128xf32> to vector<8x128xf32>
    %200 = arith.addf %197, %199 : vector<8x128xf32>
    %cst_235 = arith.constant 0.000000e+00 : f32
    %201 = vector.broadcast %cst_235 : f32 to vector<8x128xf32>
    %202 = arith.maximumf %200, %201 : vector<8x128xf32>
    %c1_236 = arith.constant 1 : index
    %c0_237 = arith.constant 0 : index
    %203 = vector.load %arg9[%c1_236, %c0_237] : memref<10x128xf32, #tpu.memory_space<vmem>>, vector<8x128xf32>
    tpu.vector_store %arg9[%c1_236, %c0_237], %202 {strides = array<i32>} : memref<10x128xf32, #tpu.memory_space<vmem>>, vector<8x128xf32>,
    %c0_238 = arith.constant 0 : index
    %c0_239 = arith.constant 0 : index
    %204 = vector.load %arg9[%c0_238, %c0_239] : memref<10x128xf32, #tpu.memory_space<vmem>>, vector<1x128xf32>
    tpu.vector_store %arg9[%c0_238, %c0_239], %0 {strides = array<i32>} : memref<10x128xf32, #tpu.memory_space<vmem>>, vector<1x128xf32>,
    %c9_240 = arith.constant 9 : index
    %c0_241 = arith.constant 0 : index
    %205 = vector.load %arg9[%c9_240, %c0_241] : memref<10x128xf32, #tpu.memory_space<vmem>>, vector<1x128xf32>
    tpu.vector_store %arg9[%c9_240, %c0_241], %0 {strides = array<i32>} : memref<10x128xf32, #tpu.memory_space<vmem>>, vector<1x128xf32>,
    %c0_242 = arith.constant 0 : index
    %c0_243 = arith.constant 0 : index
    %206 = vector.load %arg13[%c0_242, %c0_243] : memref<18x128xf32, #tpu.memory_space<vmem>>, vector<1x128xf32>
    tpu.vector_store %arg13[%c0_242, %c0_243], %0 {strides = array<i32>} : memref<18x128xf32, #tpu.memory_space<vmem>>, vector<1x128xf32>,
    %c17_244 = arith.constant 17 : index
    %c0_245 = arith.constant 0 : index
    %207 = vector.load %arg13[%c17_244, %c0_245] : memref<18x128xf32, #tpu.memory_space<vmem>>, vector<1x128xf32>
    tpu.vector_store %arg13[%c17_244, %c0_245], %0 {strides = array<i32>} : memref<18x128xf32, #tpu.memory_space<vmem>>, vector<1x128xf32>,
    %c1_246 = arith.constant 1 : index
    %c0_247 = arith.constant 0 : index
    %208 = vector.load %arg9[%c1_246, %c0_247] : memref<10x128xf32, #tpu.memory_space<vmem>>, vector<1x128xf32>
    %209 = vector.shape_cast %208 : vector<1x128xf32> to vector<1x128xf32>
    %210 = vector.broadcast %209 : vector<1x128xf32> to vector<2x128xf32>
    %c1_248 = arith.constant 1 : index
    %c0_249 = arith.constant 0 : index
    %211 = vector.load %arg13[%c1_248, %c0_249] : memref<18x128xf32, #tpu.memory_space<vmem>>, vector<2x128xf32>
    tpu.vector_store %arg13[%c1_248, %c0_249], %210 {strides = array<i32>} : memref<18x128xf32, #tpu.memory_space<vmem>>, vector<2x128xf32>,
    %c2_250 = arith.constant 2 : index
    %c0_251 = arith.constant 0 : index
    %212 = vector.load %arg9[%c2_250, %c0_251] : memref<10x128xf32, #tpu.memory_space<vmem>>, vector<1x128xf32>
    %213 = vector.shape_cast %212 : vector<1x128xf32> to vector<1x128xf32>
    %214 = vector.broadcast %213 : vector<1x128xf32> to vector<2x128xf32>
    %c3_252 = arith.constant 3 : index
    %c0_253 = arith.constant 0 : index
    %215 = vector.load %arg13[%c3_252, %c0_253] : memref<18x128xf32, #tpu.memory_space<vmem>>, vector<2x128xf32>
    tpu.vector_store %arg13[%c3_252, %c0_253], %214 {strides = array<i32>} : memref<18x128xf32, #tpu.memory_space<vmem>>, vector<2x128xf32>,
    %c3_254 = arith.constant 3 : index
    %c0_255 = arith.constant 0 : index
    %216 = vector.load %arg9[%c3_254, %c0_255] : memref<10x128xf32, #tpu.memory_space<vmem>>, vector<1x128xf32>
    %217 = vector.shape_cast %216 : vector<1x128xf32> to vector<1x128xf32>
    %218 = vector.broadcast %217 : vector<1x128xf32> to vector<2x128xf32>
    %c5_256 = arith.constant 5 : index
    %c0_257 = arith.constant 0 : index
    %219 = vector.load %arg13[%c5_256, %c0_257] : memref<18x128xf32, #tpu.memory_space<vmem>>, vector<2x128xf32>
    tpu.vector_store %arg13[%c5_256, %c0_257], %218 {strides = array<i32>} : memref<18x128xf32, #tpu.memory_space<vmem>>, vector<2x128xf32>,
    %c4_258 = arith.constant 4 : index
    %c0_259 = arith.constant 0 : index
    %220 = vector.load %arg9[%c4_258, %c0_259] : memref<10x128xf32, #tpu.memory_space<vmem>>, vector<1x128xf32>
    %221 = vector.shape_cast %220 : vector<1x128xf32> to vector<1x128xf32>
    %222 = vector.broadcast %221 : vector<1x128xf32> to vector<2x128xf32>
    %c7_260 = arith.constant 7 : index
    %c0_261 = arith.constant 0 : index
    %223 = vector.load %arg13[%c7_260, %c0_261] : memref<18x128xf32, #tpu.memory_space<vmem>>, vector<2x128xf32>
    tpu.vector_store %arg13[%c7_260, %c0_261], %222 {strides = array<i32>} : memref<18x128xf32, #tpu.memory_space<vmem>>, vector<2x128xf32>,
    %c5_262 = arith.constant 5 : index
    %c0_263 = arith.constant 0 : index
    %224 = vector.load %arg9[%c5_262, %c0_263] : memref<10x128xf32, #tpu.memory_space<vmem>>, vector<1x128xf32>
    %225 = vector.shape_cast %224 : vector<1x128xf32> to vector<1x128xf32>
    %226 = vector.broadcast %225 : vector<1x128xf32> to vector<2x128xf32>
    %c9_264 = arith.constant 9 : index
    %c0_265 = arith.constant 0 : index
    %227 = vector.load %arg13[%c9_264, %c0_265] : memref<18x128xf32, #tpu.memory_space<vmem>>, vector<2x128xf32>
    tpu.vector_store %arg13[%c9_264, %c0_265], %226 {strides = array<i32>} : memref<18x128xf32, #tpu.memory_space<vmem>>, vector<2x128xf32>,
    %c6_266 = arith.constant 6 : index
    %c0_267 = arith.constant 0 : index
    %228 = vector.load %arg9[%c6_266, %c0_267] : memref<10x128xf32, #tpu.memory_space<vmem>>, vector<1x128xf32>
    %229 = vector.shape_cast %228 : vector<1x128xf32> to vector<1x128xf32>
    %230 = vector.broadcast %229 : vector<1x128xf32> to vector<2x128xf32>
    %c11_268 = arith.constant 11 : index
    %c0_269 = arith.constant 0 : index
    %231 = vector.load %arg13[%c11_268, %c0_269] : memref<18x128xf32, #tpu.memory_space<vmem>>, vector<2x128xf32>
    tpu.vector_store %arg13[%c11_268, %c0_269], %230 {strides = array<i32>} : memref<18x128xf32, #tpu.memory_space<vmem>>, vector<2x128xf32>,
    %c7_270 = arith.constant 7 : index
    %c0_271 = arith.constant 0 : index
    %232 = vector.load %arg9[%c7_270, %c0_271] : memref<10x128xf32, #tpu.memory_space<vmem>>, vector<1x128xf32>
    %233 = vector.shape_cast %232 : vector<1x128xf32> to vector<1x128xf32>
    %234 = vector.broadcast %233 : vector<1x128xf32> to vector<2x128xf32>
    %c13_272 = arith.constant 13 : index
    %c0_273 = arith.constant 0 : index
    %235 = vector.load %arg13[%c13_272, %c0_273] : memref<18x128xf32, #tpu.memory_space<vmem>>, vector<2x128xf32>
    tpu.vector_store %arg13[%c13_272, %c0_273], %234 {strides = array<i32>} : memref<18x128xf32, #tpu.memory_space<vmem>>, vector<2x128xf32>,
    %c8_274 = arith.constant 8 : index
    %c0_275 = arith.constant 0 : index
    %236 = vector.load %arg9[%c8_274, %c0_275] : memref<10x128xf32, #tpu.memory_space<vmem>>, vector<1x128xf32>
    %237 = vector.shape_cast %236 : vector<1x128xf32> to vector<1x128xf32>
    %238 = vector.broadcast %237 : vector<1x128xf32> to vector<2x128xf32>
    %c15_276 = arith.constant 15 : index
    %c0_277 = arith.constant 0 : index
    %239 = vector.load %arg13[%c15_276, %c0_277] : memref<18x128xf32, #tpu.memory_space<vmem>>, vector<2x128xf32>
    tpu.vector_store %arg13[%c15_276, %c0_277], %238 {strides = array<i32>} : memref<18x128xf32, #tpu.memory_space<vmem>>, vector<2x128xf32>,
    %cst_278 = arith.constant 0.000000e+00 : f32
    %240 = vector.broadcast %cst_278 : f32 to vector<16x128xf32>
    %c0_279 = arith.constant 0 : index
    %c0_280 = arith.constant 0 : index
    %241 = vector.load %arg5[%c0_279, %c0_280] : memref<18x128xf32, #tpu.memory_space<vmem>>, vector<16x128xf32>
    %c7_281 = arith.constant 7 : index
    %c0_282 = arith.constant 0 : index
    %c0_283 = arith.constant 0 : index
    %c0_284 = arith.constant 0 : index
    %242 = vector.load %arg2[%c7_281, %c0_282, %c0_283, %c0_284] : memref<11x3x128x128xf32, #tpu.memory_space<vmem>>, vector<1x1x128x128xf32>
    %243 = vector.shape_cast %242 : vector<1x1x128x128xf32> to vector<128x128xf32>
    %cst_285 = arith.constant dense<0.000000e+00> : vector<16x128xf32>
    %244 = tpu.matmul %241, %243, %cst_285 {dimension_numbers = #tpu.dot_dimension_numbers<[1], [0], [0], [1], [0, 0, 1, 1], [], []>} : vector<16x128xf32>, vector<128x128xf32>, vector<16x128xf32> -> vector<16x128xf32>
    %245 = arith.addf %240, %244 : vector<16x128xf32>
    %c1_286 = arith.constant 1 : index
    %c0_287 = arith.constant 0 : index
    %246 = vector.load %arg5[%c1_286, %c0_287] : memref<18x128xf32, #tpu.memory_space<vmem>>, vector<16x128xf32>
    %c7_288 = arith.constant 7 : index
    %c1_289 = arith.constant 1 : index
    %c0_290 = arith.constant 0 : index
    %c0_291 = arith.constant 0 : index
    %247 = vector.load %arg2[%c7_288, %c1_289, %c0_290, %c0_291] : memref<11x3x128x128xf32, #tpu.memory_space<vmem>>, vector<1x1x128x128xf32>
    %248 = vector.shape_cast %247 : vector<1x1x128x128xf32> to vector<128x128xf32>
    %cst_292 = arith.constant dense<0.000000e+00> : vector<16x128xf32>
    %249 = tpu.matmul %246, %248, %cst_292 {dimension_numbers = #tpu.dot_dimension_numbers<[1], [0], [0], [1], [0, 0, 1, 1], [], []>} : vector<16x128xf32>, vector<128x128xf32>, vector<16x128xf32> -> vector<16x128xf32>
    %250 = arith.addf %245, %249 : vector<16x128xf32>
    %c2_293 = arith.constant 2 : index
    %c0_294 = arith.constant 0 : index
    %251 = vector.load %arg5[%c2_293, %c0_294] : memref<18x128xf32, #tpu.memory_space<vmem>>, vector<16x128xf32>
    %c7_295 = arith.constant 7 : index
    %c2_296 = arith.constant 2 : index
    %c0_297 = arith.constant 0 : index
    %c0_298 = arith.constant 0 : index
    %252 = vector.load %arg2[%c7_295, %c2_296, %c0_297, %c0_298] : memref<11x3x128x128xf32, #tpu.memory_space<vmem>>, vector<1x1x128x128xf32>
    %253 = vector.shape_cast %252 : vector<1x1x128x128xf32> to vector<128x128xf32>
    %cst_299 = arith.constant dense<0.000000e+00> : vector<16x128xf32>
    %254 = tpu.matmul %251, %253, %cst_299 {dimension_numbers = #tpu.dot_dimension_numbers<[1], [0], [0], [1], [0, 0, 1, 1], [], []>} : vector<16x128xf32>, vector<128x128xf32>, vector<16x128xf32> -> vector<16x128xf32>
    %255 = arith.addf %250, %254 : vector<16x128xf32>
    %c0_300 = arith.constant 0 : index
    %c0_301 = arith.constant 0 : index
    %256 = vector.load %arg8[%c0_300, %c0_301] : memref<18x128xf32, #tpu.memory_space<vmem>>, vector<16x128xf32>
    %c8_302 = arith.constant 8 : index
    %c0_303 = arith.constant 0 : index
    %c0_304 = arith.constant 0 : index
    %c0_305 = arith.constant 0 : index
    %257 = vector.load %arg2[%c8_302, %c0_303, %c0_304, %c0_305] : memref<11x3x128x128xf32, #tpu.memory_space<vmem>>, vector<1x1x128x128xf32>
    %258 = vector.shape_cast %257 : vector<1x1x128x128xf32> to vector<128x128xf32>
    %cst_306 = arith.constant dense<0.000000e+00> : vector<16x128xf32>
    %259 = tpu.matmul %256, %258, %cst_306 {dimension_numbers = #tpu.dot_dimension_numbers<[1], [0], [0], [1], [0, 0, 1, 1], [], []>} : vector<16x128xf32>, vector<128x128xf32>, vector<16x128xf32> -> vector<16x128xf32>
    %260 = arith.addf %255, %259 : vector<16x128xf32>
    %c1_307 = arith.constant 1 : index
    %c0_308 = arith.constant 0 : index
    %261 = vector.load %arg8[%c1_307, %c0_308] : memref<18x128xf32, #tpu.memory_space<vmem>>, vector<16x128xf32>
    %c8_309 = arith.constant 8 : index
    %c1_310 = arith.constant 1 : index
    %c0_311 = arith.constant 0 : index
    %c0_312 = arith.constant 0 : index
    %262 = vector.load %arg2[%c8_309, %c1_310, %c0_311, %c0_312] : memref<11x3x128x128xf32, #tpu.memory_space<vmem>>, vector<1x1x128x128xf32>
    %263 = vector.shape_cast %262 : vector<1x1x128x128xf32> to vector<128x128xf32>
    %cst_313 = arith.constant dense<0.000000e+00> : vector<16x128xf32>
    %264 = tpu.matmul %261, %263, %cst_313 {dimension_numbers = #tpu.dot_dimension_numbers<[1], [0], [0], [1], [0, 0, 1, 1], [], []>} : vector<16x128xf32>, vector<128x128xf32>, vector<16x128xf32> -> vector<16x128xf32>
    %265 = arith.addf %260, %264 : vector<16x128xf32>
    %c2_314 = arith.constant 2 : index
    %c0_315 = arith.constant 0 : index
    %266 = vector.load %arg8[%c2_314, %c0_315] : memref<18x128xf32, #tpu.memory_space<vmem>>, vector<16x128xf32>
    %c8_316 = arith.constant 8 : index
    %c2_317 = arith.constant 2 : index
    %c0_318 = arith.constant 0 : index
    %c0_319 = arith.constant 0 : index
    %267 = vector.load %arg2[%c8_316, %c2_317, %c0_318, %c0_319] : memref<11x3x128x128xf32, #tpu.memory_space<vmem>>, vector<1x1x128x128xf32>
    %268 = vector.shape_cast %267 : vector<1x1x128x128xf32> to vector<128x128xf32>
    %cst_320 = arith.constant dense<0.000000e+00> : vector<16x128xf32>
    %269 = tpu.matmul %266, %268, %cst_320 {dimension_numbers = #tpu.dot_dimension_numbers<[1], [0], [0], [1], [0, 0, 1, 1], [], []>} : vector<16x128xf32>, vector<128x128xf32>, vector<16x128xf32> -> vector<16x128xf32>
    %270 = arith.addf %265, %269 : vector<16x128xf32>
    %c0_321 = arith.constant 0 : index
    %c0_322 = arith.constant 0 : index
    %271 = vector.load %arg13[%c0_321, %c0_322] : memref<18x128xf32, #tpu.memory_space<vmem>>, vector<16x128xf32>
    %c9_323 = arith.constant 9 : index
    %c0_324 = arith.constant 0 : index
    %c0_325 = arith.constant 0 : index
    %c0_326 = arith.constant 0 : index
    %272 = vector.load %arg2[%c9_323, %c0_324, %c0_325, %c0_326] : memref<11x3x128x128xf32, #tpu.memory_space<vmem>>, vector<1x1x128x128xf32>
    %273 = vector.shape_cast %272 : vector<1x1x128x128xf32> to vector<128x128xf32>
    %cst_327 = arith.constant dense<0.000000e+00> : vector<16x128xf32>
    %274 = tpu.matmul %271, %273, %cst_327 {dimension_numbers = #tpu.dot_dimension_numbers<[1], [0], [0], [1], [0, 0, 1, 1], [], []>} : vector<16x128xf32>, vector<128x128xf32>, vector<16x128xf32> -> vector<16x128xf32>
    %275 = arith.addf %270, %274 : vector<16x128xf32>
    %c1_328 = arith.constant 1 : index
    %c0_329 = arith.constant 0 : index
    %276 = vector.load %arg13[%c1_328, %c0_329] : memref<18x128xf32, #tpu.memory_space<vmem>>, vector<16x128xf32>
    %c9_330 = arith.constant 9 : index
    %c1_331 = arith.constant 1 : index
    %c0_332 = arith.constant 0 : index
    %c0_333 = arith.constant 0 : index
    %277 = vector.load %arg2[%c9_330, %c1_331, %c0_332, %c0_333] : memref<11x3x128x128xf32, #tpu.memory_space<vmem>>, vector<1x1x128x128xf32>
    %278 = vector.shape_cast %277 : vector<1x1x128x128xf32> to vector<128x128xf32>
    %cst_334 = arith.constant dense<0.000000e+00> : vector<16x128xf32>
    %279 = tpu.matmul %276, %278, %cst_334 {dimension_numbers = #tpu.dot_dimension_numbers<[1], [0], [0], [1], [0, 0, 1, 1], [], []>} : vector<16x128xf32>, vector<128x128xf32>, vector<16x128xf32> -> vector<16x128xf32>
    %280 = arith.addf %275, %279 : vector<16x128xf32>
    %c2_335 = arith.constant 2 : index
    %c0_336 = arith.constant 0 : index
    %281 = vector.load %arg13[%c2_335, %c0_336] : memref<18x128xf32, #tpu.memory_space<vmem>>, vector<16x128xf32>
    %c9_337 = arith.constant 9 : index
    %c2_338 = arith.constant 2 : index
    %c0_339 = arith.constant 0 : index
    %c0_340 = arith.constant 0 : index
    %282 = vector.load %arg2[%c9_337, %c2_338, %c0_339, %c0_340] : memref<11x3x128x128xf32, #tpu.memory_space<vmem>>, vector<1x1x128x128xf32>
    %283 = vector.shape_cast %282 : vector<1x1x128x128xf32> to vector<128x128xf32>
    %cst_341 = arith.constant dense<0.000000e+00> : vector<16x128xf32>
    %284 = tpu.matmul %281, %283, %cst_341 {dimension_numbers = #tpu.dot_dimension_numbers<[1], [0], [0], [1], [0, 0, 1, 1], [], []>} : vector<16x128xf32>, vector<128x128xf32>, vector<16x128xf32> -> vector<16x128xf32>
    %285 = arith.addf %280, %284 : vector<16x128xf32>
    %c5_342 = arith.constant 5 : index
    %c0_343 = arith.constant 0 : index
    %286 = vector.load %arg3[%c5_342, %c0_343] : memref<7x128xf32, #tpu.memory_space<vmem>>, vector<1x128xf32>
    %287 = vector.broadcast %286 : vector<1x128xf32> to vector<16x128xf32>
    %288 = arith.addf %285, %287 : vector<16x128xf32>
    %cst_344 = arith.constant 0.000000e+00 : f32
    %289 = vector.broadcast %cst_344 : f32 to vector<16x128xf32>
    %290 = arith.maximumf %288, %289 : vector<16x128xf32>
    %c1_345 = arith.constant 1 : index
    %c0_346 = arith.constant 0 : index
    %291 = vector.load %arg10[%c1_345, %c0_346] : memref<18x128xf32, #tpu.memory_space<vmem>>, vector<16x128xf32>
    tpu.vector_store %arg10[%c1_345, %c0_346], %290 {strides = array<i32>} : memref<18x128xf32, #tpu.memory_space<vmem>>, vector<16x128xf32>,
    %c0_347 = arith.constant 0 : index
    %c0_348 = arith.constant 0 : index
    %292 = vector.load %arg10[%c0_347, %c0_348] : memref<18x128xf32, #tpu.memory_space<vmem>>, vector<1x128xf32>
    tpu.vector_store %arg10[%c0_347, %c0_348], %0 {strides = array<i32>} : memref<18x128xf32, #tpu.memory_space<vmem>>, vector<1x128xf32>,
    %c17_349 = arith.constant 17 : index
    %c0_350 = arith.constant 0 : index
    %293 = vector.load %arg10[%c17_349, %c0_350] : memref<18x128xf32, #tpu.memory_space<vmem>>, vector<1x128xf32>
    tpu.vector_store %arg10[%c17_349, %c0_350], %0 {strides = array<i32>} : memref<18x128xf32, #tpu.memory_space<vmem>>, vector<1x128xf32>,
    %cst_351 = arith.constant 0.000000e+00 : f32
    %294 = vector.broadcast %cst_351 : f32 to vector<16x128xf32>
    %c0_352 = arith.constant 0 : index
    %c0_353 = arith.constant 0 : index
    %295 = vector.load %arg10[%c0_352, %c0_353] : memref<18x128xf32, #tpu.memory_space<vmem>>, vector<16x128xf32>
    %c10 = arith.constant 10 : index
    %c0_354 = arith.constant 0 : index
    %c0_355 = arith.constant 0 : index
    %c0_356 = arith.constant 0 : index
    %296 = vector.load %arg2[%c10, %c0_354, %c0_355, %c0_356] : memref<11x3x128x128xf32, #tpu.memory_space<vmem>>, vector<1x1x128x128xf32>
    %297 = vector.shape_cast %296 : vector<1x1x128x128xf32> to vector<128x128xf32>
    %cst_357 = arith.constant dense<0.000000e+00> : vector<16x128xf32>
    %298 = tpu.matmul %295, %297, %cst_357 {dimension_numbers = #tpu.dot_dimension_numbers<[1], [0], [0], [1], [0, 0, 1, 1], [], []>} : vector<16x128xf32>, vector<128x128xf32>, vector<16x128xf32> -> vector<16x128xf32>
    %299 = arith.addf %294, %298 : vector<16x128xf32>
    %c1_358 = arith.constant 1 : index
    %c0_359 = arith.constant 0 : index
    %300 = vector.load %arg10[%c1_358, %c0_359] : memref<18x128xf32, #tpu.memory_space<vmem>>, vector<16x128xf32>
    %c10_360 = arith.constant 10 : index
    %c1_361 = arith.constant 1 : index
    %c0_362 = arith.constant 0 : index
    %c0_363 = arith.constant 0 : index
    %301 = vector.load %arg2[%c10_360, %c1_361, %c0_362, %c0_363] : memref<11x3x128x128xf32, #tpu.memory_space<vmem>>, vector<1x1x128x128xf32>
    %302 = vector.shape_cast %301 : vector<1x1x128x128xf32> to vector<128x128xf32>
    %cst_364 = arith.constant dense<0.000000e+00> : vector<16x128xf32>
    %303 = tpu.matmul %300, %302, %cst_364 {dimension_numbers = #tpu.dot_dimension_numbers<[1], [0], [0], [1], [0, 0, 1, 1], [], []>} : vector<16x128xf32>, vector<128x128xf32>, vector<16x128xf32> -> vector<16x128xf32>
    %304 = arith.addf %299, %303 : vector<16x128xf32>
    %c2_365 = arith.constant 2 : index
    %c0_366 = arith.constant 0 : index
    %305 = vector.load %arg10[%c2_365, %c0_366] : memref<18x128xf32, #tpu.memory_space<vmem>>, vector<16x128xf32>
    %c10_367 = arith.constant 10 : index
    %c2_368 = arith.constant 2 : index
    %c0_369 = arith.constant 0 : index
    %c0_370 = arith.constant 0 : index
    %306 = vector.load %arg2[%c10_367, %c2_368, %c0_369, %c0_370] : memref<11x3x128x128xf32, #tpu.memory_space<vmem>>, vector<1x1x128x128xf32>
    %307 = vector.shape_cast %306 : vector<1x1x128x128xf32> to vector<128x128xf32>
    %cst_371 = arith.constant dense<0.000000e+00> : vector<16x128xf32>
    %308 = tpu.matmul %305, %307, %cst_371 {dimension_numbers = #tpu.dot_dimension_numbers<[1], [0], [0], [1], [0, 0, 1, 1], [], []>} : vector<16x128xf32>, vector<128x128xf32>, vector<16x128xf32> -> vector<16x128xf32>
    %309 = arith.addf %304, %308 : vector<16x128xf32>
    %c6_372 = arith.constant 6 : index
    %c0_373 = arith.constant 0 : index
    %310 = vector.load %arg3[%c6_372, %c0_373] : memref<7x128xf32, #tpu.memory_space<vmem>>, vector<1x128xf32>
    %311 = vector.broadcast %310 : vector<1x128xf32> to vector<16x128xf32>
    %312 = arith.addf %309, %311 : vector<16x128xf32>
    %c0_374 = arith.constant 0 : index
    %c0_375 = arith.constant 0 : index
    %c0_376 = arith.constant 0 : index
    %313 = vector.load %arg4[%c0_374, %c0_375, %c0_376] : memref<1x16x128xf32, #tpu.memory_space<vmem>>, vector<1x16x128xf32>
    %314 = vector.shape_cast %313 : vector<1x16x128xf32> to vector<16x128xf32>
    %315 = vector.shape_cast %312 : vector<16x128xf32> to vector<1x16x128xf32>
    tpu.vector_store %arg4[%c0_374, %c0_375, %c0_376], %315 {strides = array<i32>} : memref<1x16x128xf32, #tpu.memory_space<vmem>>, vector<1x16x128xf32>,
    return
  }
  func.func @transform_0(%arg0: i32) -> (i32, i32, i32) {
    %c0_i32 = arith.constant 0 : i32
    %c0_i32_0 = arith.constant 0 : i32
    %c0_i32_1 = arith.constant 0 : i32
    return %arg0, %c0_i32, %c0_i32_0 : i32, i32, i32
  }
  func.func @transform_1(%arg0: i32) -> (i32, i32, i32, i32) {
    %c0_i32 = arith.constant 0 : i32
    %c0_i32_0 = arith.constant 0 : i32
    %c0_i32_1 = arith.constant 0 : i32
    %c0_i32_2 = arith.constant 0 : i32
    %c0_i32_3 = arith.constant 0 : i32
    return %c0_i32, %c0_i32_0, %c0_i32_1, %c0_i32_2 : i32, i32, i32, i32
  }
  func.func @transform_2(%arg0: i32) -> (i32, i32) {
    %c0_i32 = arith.constant 0 : i32
    %c0_i32_0 = arith.constant 0 : i32
    %c0_i32_1 = arith.constant 0 : i32
    return %c0_i32, %c0_i32_0 : i32, i32
  }
  func.func @transform_3(%arg0: i32) -> (i32, i32, i32) {
    %c0_i32 = arith.constant 0 : i32
    %c0_i32_0 = arith.constant 0 : i32
    %c0_i32_1 = arith.constant 0 : i32
    return %arg0, %c0_i32, %c0_i32_0 : i32, i32, i32
  }
}

</mosaic_0001>

<llo_original>
// kernel: unetpp_forward.1
$region0: #{unetpp_forward.1}
  #allocation0 [shape = 'u32[]', space=smem, size = 0x4, offset = 0x4, fixed_abs, tag = 'smem constant byte address 0x4 - core index']
  #allocation1 [shape = 'u32[72,128]{1,0:T(1,128)}', space=vmem, size = 0x9000, scoped, tag = 'internal scratch']
  #allocation2 [shape = 'f32[18,128]{1,0:T(8,128)}', space=vmem, size = 0x3000, scoped, tag = 'scratch operand']
  #allocation3 [shape = 'f32[10,128]{1,0:T(8,128)}', space=vmem, size = 0x2000, scoped, tag = 'scratch operand']
  #allocation4 [shape = 'f32[6,128]{1,0:T(8,128)}', space=vmem, size = 0x1000, scoped, tag = 'scratch operand']
  #allocation5 [shape = 'f32[18,128]{1,0:T(8,128)}', space=vmem, size = 0x3000, scoped, tag = 'scratch operand']
  #allocation6 [shape = 'f32[10,128]{1,0:T(8,128)}', space=vmem, size = 0x2000, scoped, tag = 'scratch operand']
  #allocation7 [shape = 'f32[18,128]{1,0:T(8,128)}', space=vmem, size = 0x3000, scoped, tag = 'scratch operand']
  #allocation8 [shape = 'f32[18,128]{1,0:T(8,128)}', space=vmem, size = 0x3000, scoped, tag = 'scratch operand']
  #allocation9 [shape = 'f32[10,128]{1,0:T(8,128)}', space=vmem, size = 0x2000, scoped, tag = 'scratch operand']
  #allocation10 [shape = 'f32[18,128]{1,0:T(8,128)}', space=vmem, size = 0x3000, scoped, tag = 'scratch operand']
  %s0 = inlined_call_operand.vmem [shape: f32[2,18,128], index: 0, kind: input, shape index: {}]
  %s1 = inlined_call_operand.hbm [shape: f32[11,3,128,128], index: 1, kind: input, shape index: {}]
  %s2 = inlined_call_operand.hbm [shape: f32[7,128], index: 2, kind: input, shape index: {}]
  %s3 = inlined_call_operand.vmem [shape: f32[2,16,128], index: 3, kind: output, shape index: {}]
  %s4 = sld [smem:[#allocation0]]
  $region53: #{unetpp_forward.1} parent=0
    _
  %s6 = ssub.s32 1, %s4
  %s7 = scalar_select 0, %s6, %s4
  $region1: #{unetpp_forward.1} parent=0
    #allocation11 [shape = 'u8[2162688]{0}', space=vmem, size = 0x210000, scoped, tag = 'input window, operand 1, single buffered']
    #allocation12 [shape = 's32[2]{0}', space=sflag, size = 0x8, scoped, tag = 'scoped memory for unetpp_forward.1']
    #allocation13 [shape = 'u8[4096]{0}', space=vmem, size = 0x1000, scoped, tag = 'input window, operand 2, single buffered']
    #allocation14 [shape = 's32[1]{0}', space=sflag, size = 0x4, scoped, tag = 'scoped memory for unetpp_forward.1']
    %8 = vsyncpa [#allocation12], 0
    %9 = vsyncpa [#allocation14], 0
    loop: start=0, step=1, limit=4
    $region2: #{unetpp_forward.1} parent=1 // loop_pre_header
      _
    $region3: #{unetpp_forward.1} parent=1 // loop_header
      %s11 = sphi 0, %s15
      %p12 = scmp.ge.s32.totalorder %s11, 4
      %s21 = sphi 0, %s23
      %s24 = sphi 0, %s21
      %s25 = sphi 0, %s24
      %s41 = sphi 0, %s25
      %s45 = sphi 0, %s45
      %s47 = sphi 0, %s45
      %s48 = sphi 0, %s47
      %s62 = sphi 0, %s48
      %s66 = sphi 0, %s66
      %s68 = sphi 0, %s66
      %s69 = sphi 0, %s68
      %s83 = sphi 0, %s69
      %s89 = sphi 0, %s91
      %s92 = sphi 0, %s89
      %s93 = sphi 0, %s92
      %s109 = sphi 0, %s93
    $region4: #{unetpp_forward.1} parent=1 // loop_header_branch
      %14 = sbr.rel (%p12) target = $region8
    $region5: #{unetpp_forward.1} parent=1 // loop_body
      %s16 = ssub.s32 %s11, 1
      %s17 = ssub.s32 %s11, 2
      %s18 = sadd.s32 %s11, 1
      %s19 = ssub.s32 %s11, %s18
      %p20 = scmp.eq.s32.totalorder %s19, 0
      %s22 = sadd.s32 %s21, 1
      %s23 = scalar_select %p20, %s21, %s22
      %p26 = pneg %p20
      %p27 = scmp.eq.s32.totalorder %s11, 1
      %p28 = por %p26, %p27
      %p29 = scmp.ne.s32.totalorder %s21, %s24
      %p30 = scmp.eq.s32.totalorder %s11, 0
      %p31 = por %p29, %p30
      %p32 = scmp.ne.s32.totalorder %s21, %s24
      %p33 = scmp.eq.s32.totalorder %s16, 1
      %p34 = por %p32, %p33
      %p35 = scmp.ne.s32.totalorder %s24, %s25
      %p36 = scmp.eq.s32.totalorder %s16, 0
      %p37 = por %p35, %p36
      %p38 = scmp.ne.s32.totalorder %s24, %s25
      %p39 = scmp.eq.s32.totalorder %s17, 1
      %p40 = por %p38, %p39
      %p42 = scmp.ne.s32.totalorder %s25, %s41
      %p43 = scmp.eq.s32.totalorder %s17, 0
      %p44 = por %p42, %p43
      %s46 = sadd.s32 %s45, 1
      %p49 = scmp.eq.s32.totalorder %s11, 1
      %p50 = scmp.ne.s32.totalorder %s45, %s47
      %p51 = scmp.eq.s32.totalorder %s11, 0
      %p52 = por %p50, %p51
      %p53 = scmp.ne.s32.totalorder %s45, %s47
      %p54 = scmp.eq.s32.totalorder %s16, 1
      %p55 = por %p53, %p54
      %p56 = scmp.ne.s32.totalorder %s47, %s48
      %p57 = scmp.eq.s32.totalorder %s16, 0
      %p58 = por %p56, %p57
      %p59 = scmp.ne.s32.totalorder %s47, %s48
      %p60 = scmp.eq.s32.totalorder %s17, 1
      %p61 = por %p59, %p60
      %p63 = scmp.ne.s32.totalorder %s48, %s62
      %p64 = scmp.eq.s32.totalorder %s17, 0
      %p65 = por %p63, %p64
      %s67 = sadd.s32 %s66, 1
      %p70 = scmp.eq.s32.totalorder %s11, 1
      %p71 = scmp.ne.s32.totalorder %s66, %s68
      %p72 = scmp.eq.s32.totalorder %s11, 0
      %p73 = por %p71, %p72
      %p74 = scmp.ne.s32.totalorder %s66, %s68
      %p75 = scmp.eq.s32.totalorder %s16, 1
      %p76 = por %p74, %p75
      %p77 = scmp.ne.s32.totalorder %s68, %s69
      %p78 = scmp.eq.s32.totalorder %s16, 0
      %p79 = por %p77, %p78
      %p80 = scmp.ne.s32.totalorder %s68, %s69
      %p81 = scmp.eq.s32.totalorder %s17, 1
      %p82 = por %p80, %p81
      %p84 = scmp.ne.s32.totalorder %s69, %s83
      %p85 = scmp.eq.s32.totalorder %s17, 0
      %p86 = por %p84, %p85
      %s87 = ssub.s32 %s11, %s18
      %p88 = scmp.eq.s32.totalorder %s87, 0
      %s90 = sadd.s32 %s89, 1
      %s91 = scalar_select %p88, %s89, %s90
      %p94 = pneg %p88
      %p95 = scmp.eq.s32.totalorder %s11, 1
      %p96 = por %p94, %p95
      %p97 = scmp.ne.s32.totalorder %s89, %s92
      %p98 = scmp.eq.s32.totalorder %s11, 0
      %p99 = por %p97, %p98
      %p100 = scmp.ne.s32.totalorder %s89, %s92
      %p101 = scmp.eq.s32.totalorder %s16, 1
      %p102 = por %p100, %p101
      %p103 = scmp.ne.s32.totalorder %s92, %s93
      %p104 = scmp.eq.s32.totalorder %s16, 0
      %p105 = por %p103, %p104
      %p106 = scmp.ne.s32.totalorder %s92, %s93
      %p107 = scmp.eq.s32.totalorder %s17, 1
      %p108 = por %p106, %p107
      %p110 = scmp.ne.s32.totalorder %s93, %s109
      %p111 = scmp.eq.s32.totalorder %s17, 0
      %p112 = por %p110, %p111
      %p113 = scmp.le.s32.totalorder 1, %s11
      %p114 = scmp.lt.s32.totalorder %s11, 3
      %p115 = pnand %p113, %p114
      %p116 = pneg %p115
      // Predicated region
      $region9: #{unetpp_forward.1} parent=5 // pred_check
        _
      $region10: #{unetpp_forward.1} parent=5 // pred_check_branch
        %118 = sbr.rel (%p115) target = $region12
      $region11: #{unetpp_forward.1} parent=5 // pred_region
        %s119 = ssub.s32 %s11, 1
        // Predicated region
        $region13: #{unetpp_forward.1} parent=11 // pred_check
          %p120 = pneg %p58
        $region14: #{unetpp_forward.1} parent=11 // pred_check_branch
          %122 = sbr.rel (%p120) target = $region16
        $region15: #{unetpp_forward.1} parent=11 // pred_region
          %124 = vsyncadd [#allocation12], 0
          %s125 = sshll.u32 %s1, 4
          %s126 = int_to_ptr.hbm [resolvable:$true] %s125
          %s127 = sshll.u32 [#allocation11], 4
          %s128 = int_to_ptr.vmem [resolvable:$true] %s127
          %133 = dma.hbm_to_vmem [thread:$0]  %s126, 67584, %s128, [#allocation12], 128, 128, 8
        $region16: #{unetpp_forward.1} parent=11 // pred_fallthru
          _
        // Predicated region
        $region17: #{unetpp_forward.1} parent=11 // pred_check
          %p134 = pneg %p79
        $region18: #{unetpp_forward.1} parent=11 // pred_check_branch
          %136 = sbr.rel (%p134) target = $region20
        $region19: #{unetpp_forward.1} parent=11 // pred_region
          %138 = vsyncadd [#allocation14], 0
          %s140 = sshll.u32 %s2, 4
          %s141 = int_to_ptr.hbm [resolvable:$true] %s140
          %s142 = sshll.u32 [#allocation13], 4
          %s143 = int_to_ptr.vmem [resolvable:$true] %s142
          %145 = dma.hbm_to_vmem [thread:$0]  %s141, 128, %s143, [#allocation14]
        $region20: #{unetpp_forward.1} parent=11 // pred_fallthru
          _
      $region12: #{unetpp_forward.1} parent=5 // pred_fallthru
        _
      %p146 = scmp.lt.s32.totalorder %s11, 2
      // Predicated region
      $region21: #{unetpp_forward.1} parent=5 // pred_check
        %p147 = pneg %p146
      $region22: #{unetpp_forward.1} parent=5 // pred_check_branch
        %149 = sbr.rel (%p147) target = $region24
      $region23: #{unetpp_forward.1} parent=5 // pred_region
        // Predicated region
        $region25: #{unetpp_forward.1} parent=23 // pred_check
          %p150 = pneg %p31
        $region26: #{unetpp_forward.1} parent=23 // pred_check_branch
          %152 = sbr.rel (%p150) target = $region28
        $region27: #{unetpp_forward.1} parent=23 // pred_region
          %p153 = scmp.lt.s32.totalorder %s11, 1
          %s154 = scalar_select %p153, %s11, 1
          %s155 = smul.addr %s154, 3
          %s156 = smul.addr %s155, 8
          %s157 = scalar_lea.vmem %s0, %s156
        $region28: #{unetpp_forward.1} parent=23 // pred_fallthru
          _
      $region24: #{unetpp_forward.1} parent=5 // pred_fallthru
        _
      %p158 = scmp.le.s32.totalorder 1, %s11
      %p159 = scmp.lt.s32.totalorder %s11, 3
      %p160 = pnand %p158, %p159
      %p161 = pneg %p160
      // Predicated region
      $region29: #{unetpp_forward.1} parent=5 // pred_check
        _
      $region30: #{unetpp_forward.1} parent=5 // pred_check_branch
        %163 = sbr.rel (%p160) target = $region32
      $region31: #{unetpp_forward.1} parent=5 // pred_region
        %s164 = ssub.s32 %s11, 1
        // Predicated region
        $region33: #{unetpp_forward.1} parent=31 // pred_check
          %p165 = pneg %p58
        $region34: #{unetpp_forward.1} parent=31 // pred_check_branch
          %167 = sbr.rel (%p165) target = $region36
        $region35: #{unetpp_forward.1} parent=31 // pred_region
          %169 = dma.done [#allocation12], 67584
        $region36: #{unetpp_forward.1} parent=31 // pred_fallthru
          _
        // Predicated region
        $region37: #{unetpp_forward.1} parent=31 // pred_check
          %p170 = pneg %p79
        $region38: #{unetpp_forward.1} parent=31 // pred_check_branch
          %172 = sbr.rel (%p170) target = $region40
        $region39: #{unetpp_forward.1} parent=31 // pred_region
          %174 = dma.done [#allocation14], 128
        $region40: #{unetpp_forward.1} parent=31 // pred_fallthru
          _
        %p175 = scmp.lt.s32.totalorder %s16, 1
        %s176 = scalar_select %p175, %s16, 1
        %s177 = smul.addr %s176, 3
        %s178 = smul.addr %s177, 8
        %s179 = scalar_lea.vmem %s0, %s178
        %p180 = pneg %p37
        %p181 = pneg %p34
        %p182 = pneg %p58
        %p183 = pneg %p55
        %p184 = pneg %p79
        %p185 = pneg %p76
        %p186 = pneg %p105
        %p187 = pneg %p102
        %p188 = scmp.lt.s32.totalorder %s16, 1
        %s189 = scalar_select %p188, %s16, 1
        %s190 = smul.addr %s189, 2
        %s191 = smul.addr %s190, 8
        %s192 = scalar_lea.vmem %s3, %s191
        %p193 = scmp.lt.s32.totalorder %s16, 1
        %s194 = scalar_select %p193, %s16, 1
        %s195 = smul.addr %s194, 3
        %s196 = smul.addr %s195, 8
        %s197 = scalar_lea.vmem %s0, %s196
        %p198 = scmp.lt.s32.totalorder %s16, 1
        %s199 = scalar_select %p198, %s16, 1
        %s200 = smul.addr %s199, 2
        %s201 = smul.addr %s200, 8
        %s202 = scalar_lea.vmem %s3, %s201
        %v203 = vld [vmem:[%s197] sm:$0xff]
        %v204 = vld [vmem:[%s197 + $0x8] sm:$0xff]
        %v205 = vld [vmem:[#allocation11] sm:$0xff]
        %v206 = vld [vmem:[#allocation11 + $0x8] sm:$0xff]
        %v207 = vld [vmem:[#allocation11 + $0x10] sm:$0xff]
        %v208 = vld [vmem:[#allocation11 + $0x18] sm:$0xff]
        %v209 = vld [vmem:[#allocation11 + $0x20] sm:$0xff]
        %v210 = vld [vmem:[#allocation11 + $0x28] sm:$0xff]
        %v211 = vld [vmem:[#allocation11 + $0x30] sm:$0xff]
        %v212 = vld [vmem:[#allocation11 + $0x38] sm:$0xff]
        %v213 = vld [vmem:[#allocation11 + $0x40] sm:$0xff]
        %v214 = vld [vmem:[#allocation11 + $0x48] sm:$0xff]
        %v215 = vld [vmem:[#allocation11 + $0x50] sm:$0xff]
        %v216 = vld [vmem:[#allocation11 + $0x58] sm:$0xff]
        %v217 = vld [vmem:[#allocation11 + $0x60] sm:$0xff]
        %v218 = vld [vmem:[#allocation11 + $0x68] sm:$0xff]
        %v219 = vld [vmem:[#allocation11 + $0x70] sm:$0xff]
        %v220 = vld [vmem:[#allocation11 + $0x78] sm:$0xff]
        %v221 = vld [vmem:[%s197 + $0x1] sm:$0xff]
        %v222 = vld [vmem:[%s197 + $0x9] sm:$0xff]
        %s223 = scalar_lea.vmem [#allocation11], 128
        %v224 = vld [vmem:[%s223] sm:$0xff]
        %v225 = vld [vmem:[%s223 + $0x8] sm:$0xff]
        %v226 = vld [vmem:[%s223 + $0x10] sm:$0xff]
        %v227 = vld [vmem:[%s223 + $0x18] sm:$0xff]
        %v228 = vld [vmem:[%s223 + $0x20] sm:$0xff]
        %v229 = vld [vmem:[%s223 + $0x28] sm:$0xff]
        %v230 = vld [vmem:[%s223 + $0x30] sm:$0xff]
        %v231 = vld [vmem:[%s223 + $0x38] sm:$0xff]
        %v232 = vld [vmem:[%s223 + $0x40] sm:$0xff]
        %v233 = vld [vmem:[%s223 + $0x48] sm:$0xff]
        %v234 = vld [vmem:[%s223 + $0x50] sm:$0xff]
        %v235 = vld [vmem:[%s223 + $0x58] sm:$0xff]
        %v236 = vld [vmem:[%s223 + $0x60] sm:$0xff]
        %v237 = vld [vmem:[%s223 + $0x68] sm:$0xff]
        %v238 = vld [vmem:[%s223 + $0x70] sm:$0xff]
        %v239 = vld [vmem:[%s223 + $0x78] sm:$0xff]
        %240 = vmatpush.msra.mxu0 %v239
        %241 = vmatpush.msra.mxu0 %v238
        %242 = vmatpush.msra.mxu0 %v237
        %243 = vmatpush.msra.mxu0 %v236
        %244 = vmatpush.msra.mxu0 %v235
        %245 = vmatpush.msra.mxu0 %v234
        %246 = vmatpush.msra.mxu0 %v233
        %247 = vmatpush.msra.mxu0 %v232
        %248 = vmatpush.msra.mxu0 %v231
        %249 = vmatpush.msra.mxu0 %v230
        %250 = vmatpush.msra.mxu0 %v229
        %251 = vmatpush.msra.mxu0 %v228
        %252 = vmatpush.msra.mxu0 %v227
        %253 = vmatpush.msra.mxu0 %v226
        %254 = vmatpush.msra.mxu0 %v225
        %255 = vmatpush.msra.mxu0 %v224
        %256 = vmatmul.f32.gmra.mxu0 %v221
        %v257 = vpop.f32.mrf.mxu0
        %v258 = vadd.f32 0.0, %v257
        %259 = vmatmul.f32.gmra.mxu0 %v222
        %v260 = vpop.f32.mrf.mxu0
        %v261 = vadd.f32 0.0, %v260
        %262 = vdwg.mxu0
        %263 = vmatpush.msra.mxu0 %v220
        %264 = vmatpush.msra.mxu0 %v219
        %265 = vmatpush.msra.mxu0 %v218
        %266 = vmatpush.msra.mxu0 %v217
        %267 = vmatpush.msra.mxu0 %v216
        %268 = vmatpush.msra.mxu0 %v215
        %269 = vmatpush.msra.mxu0 %v214
        %270 = vmatpush.msra.mxu0 %v213
        %271 = vmatpush.msra.mxu0 %v212
        %272 = vmatpush.msra.mxu0 %v211
        %273 = vmatpush.msra.mxu0 %v210
        %274 = vmatpush.msra.mxu0 %v209
        %275 = vmatpush.msra.mxu0 %v208
        %276 = vmatpush.msra.mxu0 %v207
        %277 = vmatpush.msra.mxu0 %v206
        %278 = vmatpush.msra.mxu0 %v205
        %279 = vmatmul.f32.gmra.mxu0 %v203
        %v280 = vpop.f32.mrf.mxu0
        %v281 = vadd.f32 %v258, %v280
        %282 = vmatmul.f32.gmra.mxu0 %v204
        %v283 = vpop.f32.mrf.mxu0
        %v284 = vadd.f32 %v261, %v283
        %285 = vdwg.mxu0
        %v286 = vld [vmem:[%s197 + $0x2] sm:$0xff]
        %v287 = vld [vmem:[%s197 + $0xa] sm:$0xff]
        %s288 = scalar_lea.vmem [#allocation11], 256
        %v289 = vld [vmem:[%s288] sm:$0xff]
        %v290 = vld [vmem:[%s288 + $0x8] sm:$0xff]
        %v291 = vld [vmem:[%s288 + $0x10] sm:$0xff]
        %v292 = vld [vmem:[%s288 + $0x18] sm:$0xff]
        %v293 = vld [vmem:[%s288 + $0x20] sm:$0xff]
        %v294 = vld [vmem:[%s288 + $0x28] sm:$0xff]
        %v295 = vld [vmem:[%s288 + $0x30] sm:$0xff]
        %v296 = vld [vmem:[%s288 + $0x38] sm:$0xff]
        %v297 = vld [vmem:[%s288 + $0x40] sm:$0xff]
        %v298 = vld [vmem:[%s288 + $0x48] sm:$0xff]
        %v299 = vld [vmem:[%s288 + $0x50] sm:$0xff]
        %v300 = vld [vmem:[%s288 + $0x58] sm:$0xff]
        %v301 = vld [vmem:[%s288 + $0x60] sm:$0xff]
        %v302 = vld [vmem:[%s288 + $0x68] sm:$0xff]
        %v303 = vld [vmem:[%s288 + $0x70] sm:$0xff]
        %v304 = vld [vmem:[%s288 + $0x78] sm:$0xff]
        %305 = vmatpush.msra.mxu0 %v304
        %306 = vmatpush.msra.mxu0 %v303
        %307 = vmatpush.msra.mxu0 %v302
        %308 = vmatpush.msra.mxu0 %v301
        %309 = vmatpush.msra.mxu0 %v300
        %310 = vmatpush.msra.mxu0 %v299
        %311 = vmatpush.msra.mxu0 %v298
        %312 = vmatpush.msra.mxu0 %v297
        %313 = vmatpush.msra.mxu0 %v296
        %314 = vmatpush.msra.mxu0 %v295
        %315 = vmatpush.msra.mxu0 %v294
        %316 = vmatpush.msra.mxu0 %v293
        %317 = vmatpush.msra.mxu0 %v292
        %318 = vmatpush.msra.mxu0 %v291
        %319 = vmatpush.msra.mxu0 %v290
        %320 = vmatpush.msra.mxu0 %v289
        %321 = vmatmul.f32.gmra.mxu0 %v286
        %v322 = vpop.f32.mrf.mxu0
        %v323 = vadd.f32 0.0, %v322
        %324 = vmatmul.f32.gmra.mxu0 %v287
        %v325 = vpop.f32.mrf.mxu0
        %v326 = vadd.f32 0.0, %v325
        %327 = vdwg.mxu0
        %v328 = vadd.f32 %v281, %v323
        %v329 = vadd.f32 %v284, %v326
        %v330 = vld [vmem:[#allocation13] sm:$0x1]
        %v331 = vperm.slane %v330, 0
        %v332 = vadd.f32 %v328, %v331
        %v333 = vadd.f32 %v329, %v331
        %v334 = vmax.f32 %v332, 0.0
        %v335 = vmax.f32 %v333, 0.0
        %336 = vst [vmem:[#allocation2 + $0x1] sm:$0xff] %v334
        %337 = vst [vmem:[#allocation2 + $0x9] sm:$0xff] %v335
        %338 = vst [vmem:[#allocation2] sm:$0x1] 0.0
        %339 = vst [vmem:[#allocation2 + $0x11] sm:$0x1] 0.0
        %v340 = vld [vmem:[#allocation2] ss:$2 sm:$0xff]
        %s341 = scalar_lea.vmem [#allocation11], 384
        %v342 = vld [vmem:[%s341] sm:$0xff]
        %v343 = vld [vmem:[%s341 + $0x8] sm:$0xff]
        %v344 = vld [vmem:[%s341 + $0x10] sm:$0xff]
        %v345 = vld [vmem:[%s341 + $0x18] sm:$0xff]
        %v346 = vld [vmem:[%s341 + $0x20] sm:$0xff]
        %v347 = vld [vmem:[%s341 + $0x28] sm:$0xff]
        %v348 = vld [vmem:[%s341 + $0x30] sm:$0xff]
        %v349 = vld [vmem:[%s341 + $0x38] sm:$0xff]
        %v350 = vld [vmem:[%s341 + $0x40] sm:$0xff]
        %v351 = vld [vmem:[%s341 + $0x48] sm:$0xff]
        %v352 = vld [vmem:[%s341 + $0x50] sm:$0xff]
        %v353 = vld [vmem:[%s341 + $0x58] sm:$0xff]
        %v354 = vld [vmem:[%s341 + $0x60] sm:$0xff]
        %v355 = vld [vmem:[%s341 + $0x68] sm:$0xff]
        %v356 = vld [vmem:[%s341 + $0x70] sm:$0xff]
        %v357 = vld [vmem:[%s341 + $0x78] sm:$0xff]
        %s358 = scalar_lea.vmem [#allocation2], 1
        %v359 = vld [vmem:[%s358] ss:$2 sm:$0xff]
        %s360 = scalar_lea.vmem [#allocation11], 512
        %v361 = vld [vmem:[%s360] sm:$0xff]
        %v362 = vld [vmem:[%s360 + $0x8] sm:$0xff]
        %v363 = vld [vmem:[%s360 + $0x10] sm:$0xff]
        %v364 = vld [vmem:[%s360 + $0x18] sm:$0xff]
        %v365 = vld [vmem:[%s360 + $0x20] sm:$0xff]
        %v366 = vld [vmem:[%s360 + $0x28] sm:$0xff]
        %v367 = vld [vmem:[%s360 + $0x30] sm:$0xff]
        %v368 = vld [vmem:[%s360 + $0x38] sm:$0xff]
        %v369 = vld [vmem:[%s360 + $0x40] sm:$0xff]
        %v370 = vld [vmem:[%s360 + $0x48] sm:$0xff]
        %v371 = vld [vmem:[%s360 + $0x50] sm:$0xff]
        %v372 = vld [vmem:[%s360 + $0x58] sm:$0xff]
        %v373 = vld [vmem:[%s360 + $0x60] sm:$0xff]
        %v374 = vld [vmem:[%s360 + $0x68] sm:$0xff]
        %v375 = vld [vmem:[%s360 + $0x70] sm:$0xff]
        %v376 = vld [vmem:[%s360 + $0x78] sm:$0xff]
        %377 = vmatpush.msra.mxu0 %v376
        %378 = vmatpush.msra.mxu0 %v375
        %379 = vmatpush.msra.mxu0 %v374
        %380 = vmatpush.msra.mxu0 %v373
        %381 = vmatpush.msra.mxu0 %v372
        %382 = vmatpush.msra.mxu0 %v371
        %383 = vmatpush.msra.mxu0 %v370
        %384 = vmatpush.msra.mxu0 %v369
        %385 = vmatpush.msra.mxu0 %v368
        %386 = vmatpush.msra.mxu0 %v367
        %387 = vmatpush.msra.mxu0 %v366
        %388 = vmatpush.msra.mxu0 %v365
        %389 = vmatpush.msra.mxu0 %v364
        %390 = vmatpush.msra.mxu0 %v363
        %391 = vmatpush.msra.mxu0 %v362
        %392 = vmatpush.msra.mxu0 %v361
        %393 = vmatmul.f32.gmra.mxu0 %v359
        %v394 = vpop.f32.mrf.mxu0
        %v395 = vadd.f32 0.0, %v394
        %396 = vdwg.mxu0
        %397 = vmatpush.msra.mxu0 %v357
        %398 = vmatpush.msra.mxu0 %v356
        %399 = vmatpush.msra.mxu0 %v355
        %400 = vmatpush.msra.mxu0 %v354
        %401 = vmatpush.msra.mxu0 %v353
        %402 = vmatpush.msra.mxu0 %v352
        %403 = vmatpush.msra.mxu0 %v351
        %404 = vmatpush.msra.mxu0 %v350
        %405 = vmatpush.msra.mxu0 %v349
        %406 = vmatpush.msra.mxu0 %v348
        %407 = vmatpush.msra.mxu0 %v347
        %408 = vmatpush.msra.mxu0 %v346
        %409 = vmatpush.msra.mxu0 %v345
        %410 = vmatpush.msra.mxu0 %v344
        %411 = vmatpush.msra.mxu0 %v343
        %412 = vmatpush.msra.mxu0 %v342
        %413 = vmatmul.f32.gmra.mxu0 %v340
        %v414 = vpop.f32.mrf.mxu0
        %v415 = vadd.f32 %v395, %v414
        %416 = vdwg.mxu0
        %s417 = scalar_lea.vmem [#allocation2], 2
        %v418 = vld [vmem:[%s417] ss:$2 sm:$0xff]
        %s419 = scalar_lea.vmem [#allocation11], 640
        %v420 = vld [vmem:[%s419] sm:$0xff]
        %v421 = vld [vmem:[%s419 + $0x8] sm:$0xff]
        %v422 = vld [vmem:[%s419 + $0x10] sm:$0xff]
        %v423 = vld [vmem:[%s419 + $0x18] sm:$0xff]
        %v424 = vld [vmem:[%s419 + $0x20] sm:$0xff]
        %v425 = vld [vmem:[%s419 + $0x28] sm:$0xff]
        %v426 = vld [vmem:[%s419 + $0x30] sm:$0xff]
        %v427 = vld [vmem:[%s419 + $0x38] sm:$0xff]
        %v428 = vld [vmem:[%s419 + $0x40] sm:$0xff]
        %v429 = vld [vmem:[%s419 + $0x48] sm:$0xff]
        %v430 = vld [vmem:[%s419 + $0x50] sm:$0xff]
        %v431 = vld [vmem:[%s419 + $0x58] sm:$0xff]
        %v432 = vld [vmem:[%s419 + $0x60] sm:$0xff]
        %v433 = vld [vmem:[%s419 + $0x68] sm:$0xff]
        %v434 = vld [vmem:[%s419 + $0x70] sm:$0xff]
        %v435 = vld [vmem:[%s419 + $0x78] sm:$0xff]
        %436 = vmatpush.msra.mxu0 %v435
        %437 = vmatpush.msra.mxu0 %v434
        %438 = vmatpush.msra.mxu0 %v433
        %439 = vmatpush.msra.mxu0 %v432
        %440 = vmatpush.msra.mxu0 %v431
        %441 = vmatpush.msra.mxu0 %v430
        %442 = vmatpush.msra.mxu0 %v429
        %443 = vmatpush.msra.mxu0 %v428
        %444 = vmatpush.msra.mxu0 %v427
        %445 = vmatpush.msra.mxu0 %v426
        %446 = vmatpush.msra.mxu0 %v425
        %447 = vmatpush.msra.mxu0 %v424
        %448 = vmatpush.msra.mxu0 %v423
        %449 = vmatpush.msra.mxu0 %v422
        %450 = vmatpush.msra.mxu0 %v421
        %451 = vmatpush.msra.mxu0 %v420
        %452 = vmatmul.f32.gmra.mxu0 %v418
        %v453 = vpop.f32.mrf.mxu0
        %v454 = vadd.f32 0.0, %v453
        %455 = vdwg.mxu0
        %v456 = vadd.f32 %v415, %v454
        %v457 = vld [vmem:[#allocation13 + $0x1] sm:$0x1]
        %v458 = vperm.slane %v457, 0
        %v459 = vadd.f32 %v456, %v458
        %v460 = vmax.f32 %v459, 0.0
        %461 = vst [vmem:[#allocation3 + $0x1] sm:$0xff] %v460
        %462 = vst [vmem:[#allocation3] sm:$0x1] 0.0
        %463 = vst [vmem:[#allocation3 + $0x9] sm:$0x1] 0.0
        %v464 = vld [vmem:[#allocation3] ss:$2 sm:$0xf]
        %s465 = scalar_lea.vmem [#allocation11], 768
        %v466 = vld [vmem:[%s465] sm:$0xff]
        %v467 = vld [vmem:[%s465 + $0x8] sm:$0xff]
        %v468 = vld [vmem:[%s465 + $0x10] sm:$0xff]
        %v469 = vld [vmem:[%s465 + $0x18] sm:$0xff]
        %v470 = vld [vmem:[%s465 + $0x20] sm:$0xff]
        %v471 = vld [vmem:[%s465 + $0x28] sm:$0xff]
        %v472 = vld [vmem:[%s465 + $0x30] sm:$0xff]
        %v473 = vld [vmem:[%s465 + $0x38] sm:$0xff]
        %v474 = vld [vmem:[%s465 + $0x40] sm:$0xff]
        %v475 = vld [vmem:[%s465 + $0x48] sm:$0xff]
        %v476 = vld [vmem:[%s465 + $0x50] sm:$0xff]
        %v477 = vld [vmem:[%s465 + $0x58] sm:$0xff]
        %v478 = vld [vmem:[%s465 + $0x60] sm:$0xff]
        %v479 = vld [vmem:[%s465 + $0x68] sm:$0xff]
        %v480 = vld [vmem:[%s465 + $0x70] sm:$0xff]
        %v481 = vld [vmem:[%s465 + $0x78] sm:$0xff]
        %s482 = scalar_lea.vmem [#allocation3], 1
        %v483 = vld [vmem:[%s482] ss:$2 sm:$0xf]
        %s484 = scalar_lea.vmem [#allocation11], 896
        %v485 = vld [vmem:[%s484] sm:$0xff]
        %v486 = vld [vmem:[%s484 + $0x8] sm:$0xff]
        %v487 = vld [vmem:[%s484 + $0x10] sm:$0xff]
        %v488 = vld [vmem:[%s484 + $0x18] sm:$0xff]
        %v489 = vld [vmem:[%s484 + $0x20] sm:$0xff]
        %v490 = vld [vmem:[%s484 + $0x28] sm:$0xff]
        %v491 = vld [vmem:[%s484 + $0x30] sm:$0xff]
        %v492 = vld [vmem:[%s484 + $0x38] sm:$0xff]
        %v493 = vld [vmem:[%s484 + $0x40] sm:$0xff]
        %v494 = vld [vmem:[%s484 + $0x48] sm:$0xff]
        %v495 = vld [vmem:[%s484 + $0x50] sm:$0xff]
        %v496 = vld [vmem:[%s484 + $0x58] sm:$0xff]
        %v497 = vld [vmem:[%s484 + $0x60] sm:$0xff]
        %v498 = vld [vmem:[%s484 + $0x68] sm:$0xff]
        %v499 = vld [vmem:[%s484 + $0x70] sm:$0xff]
        %v500 = vld [vmem:[%s484 + $0x78] sm:$0xff]
        %501 = vmatpush.msra.mxu0 %v500
        %502 = vmatpush.msra.mxu0 %v499
        %503 = vmatpush.msra.mxu0 %v498
        %504 = vmatpush.msra.mxu0 %v497
        %505 = vmatpush.msra.mxu0 %v496
        %506 = vmatpush.msra.mxu0 %v495
        %507 = vmatpush.msra.mxu0 %v494
        %508 = vmatpush.msra.mxu0 %v493
        %509 = vmatpush.msra.mxu0 %v492
        %510 = vmatpush.msra.mxu0 %v491
        %511 = vmatpush.msra.mxu0 %v490
        %512 = vmatpush.msra.mxu0 %v489
        %513 = vmatpush.msra.mxu0 %v488
        %514 = vmatpush.msra.mxu0 %v487
        %515 = vmatpush.msra.mxu0 %v486
        %516 = vmatpush.msra.mxu0 %v485
        %517 = vmatmul.f32.gmra.mxu0 %v483
        %v518 = vpop.f32.mrf.mxu0
        %v519 = vadd.f32 0.0, %v518
        %520 = vdwg.mxu0
        %521 = vmatpush.msra.mxu0 %v481
        %522 = vmatpush.msra.mxu0 %v480
        %523 = vmatpush.msra.mxu0 %v479
        %524 = vmatpush.msra.mxu0 %v478
        %525 = vmatpush.msra.mxu0 %v477
        %526 = vmatpush.msra.mxu0 %v476
        %527 = vmatpush.msra.mxu0 %v475
        %528 = vmatpush.msra.mxu0 %v474
        %529 = vmatpush.msra.mxu0 %v473
        %530 = vmatpush.msra.mxu0 %v472
        %531 = vmatpush.msra.mxu0 %v471
        %532 = vmatpush.msra.mxu0 %v470
        %533 = vmatpush.msra.mxu0 %v469
        %534 = vmatpush.msra.mxu0 %v468
        %535 = vmatpush.msra.mxu0 %v467
        %536 = vmatpush.msra.mxu0 %v466
        %537 = vmatmul.f32.gmra.mxu0 %v464
        %v538 = vpop.f32.mrf.mxu0
        %v539 = vadd.f32 %v519, %v538
        %540 = vdwg.mxu0
        %s541 = scalar_lea.vmem [#allocation3], 2
        %v542 = vld [vmem:[%s541] ss:$2 sm:$0xf]
        %s543 = scalar_lea.vmem [#allocation11], 1024
        %v544 = vld [vmem:[%s543] sm:$0xff]
        %v545 = vld [vmem:[%s543 + $0x8] sm:$0xff]
        %v546 = vld [vmem:[%s543 + $0x10] sm:$0xff]
        %v547 = vld [vmem:[%s543 + $0x18] sm:$0xff]
        %v548 = vld [vmem:[%s543 + $0x20] sm:$0xff]
        %v549 = vld [vmem:[%s543 + $0x28] sm:$0xff]
        %v550 = vld [vmem:[%s543 + $0x30] sm:$0xff]
        %v551 = vld [vmem:[%s543 + $0x38] sm:$0xff]
        %v552 = vld [vmem:[%s543 + $0x40] sm:$0xff]
        %v553 = vld [vmem:[%s543 + $0x48] sm:$0xff]
        %v554 = vld [vmem:[%s543 + $0x50] sm:$0xff]
        %v555 = vld [vmem:[%s543 + $0x58] sm:$0xff]
        %v556 = vld [vmem:[%s543 + $0x60] sm:$0xff]
        %v557 = vld [vmem:[%s543 + $0x68] sm:$0xff]
        %v558 = vld [vmem:[%s543 + $0x70] sm:$0xff]
        %v559 = vld [vmem:[%s543 + $0x78] sm:$0xff]
        %560 = vmatpush.msra.mxu0 %v559
        %561 = vmatpush.msra.mxu0 %v558
        %562 = vmatpush.msra.mxu0 %v557
        %563 = vmatpush.msra.mxu0 %v556
        %564 = vmatpush.msra.mxu0 %v555
        %565 = vmatpush.msra.mxu0 %v554
        %566 = vmatpush.msra.mxu0 %v553
        %567 = vmatpush.msra.mxu0 %v552
        %568 = vmatpush.msra.mxu0 %v551
        %569 = vmatpush.msra.mxu0 %v550
        %570 = vmatpush.msra.mxu0 %v549
        %571 = vmatpush.msra.mxu0 %v548
        %572 = vmatpush.msra.mxu0 %v547
        %573 = vmatpush.msra.mxu0 %v546
        %574 = vmatpush.msra.mxu0 %v545
        %575 = vmatpush.msra.mxu0 %v544
        %576 = vmatmul.f32.gmra.mxu0 %v542
        %v577 = vpop.f32.mrf.mxu0
        %v578 = vadd.f32 0.0, %v577
        %579 = vdwg.mxu0
        %v580 = vadd.f32 %v539, %v578
        %v581 = vld [vmem:[#allocation13 + $0x2] sm:$0x1]
        %v582 = vperm.slane %v581, 0
        %v583 = vadd.f32 %v580, %v582
        %v584 = vmax.f32 %v583, 0.0
        %585 = vst [vmem:[#allocation4 + $0x1] sm:$0xf] %v584
        %586 = vst [vmem:[#allocation4] sm:$0x1] 0.0
        %587 = vst [vmem:[#allocation4 + $0x5] sm:$0x1] 0.0
        %588 = vst [vmem:[#allocation8] sm:$0x1] 0.0
        %589 = vst [vmem:[#allocation8 + $0x11] sm:$0x1] 0.0
        %v590 = vld [vmem:[#allocation3 + $0x1] sm:$0x1]
        %v591 = vperm.slane %v590, 0
        %592 = vst [vmem:[#allocation8 + $0x1] sm:$0x3] %v591
        %v593 = vld [vmem:[#allocation3 + $0x2] sm:$0x1]
        %v594 = vperm.slane %v593, 0
        %595 = vst [vmem:[#allocation8 + $0x3] sm:$0x3] %v594
        %v596 = vld [vmem:[#allocation3 + $0x3] sm:$0x1]
        %v597 = vperm.slane %v596, 0
        %598 = vst [vmem:[#allocation8 + $0x5] sm:$0x3] %v597
        %v599 = vld [vmem:[#allocation3 + $0x4] sm:$0x1]
        %v600 = vperm.slane %v599, 0
        %601 = vst [vmem:[#allocation8 + $0x7] sm:$0x3] %v600
        %v602 = vld [vmem:[#allocation3 + $0x5] sm:$0x1]
        %v603 = vperm.slane %v602, 0
        %604 = vst [vmem:[#allocation8 + $0x9] sm:$0x3] %v603
        %v605 = vld [vmem:[#allocation3 + $0x6] sm:$0x1]
        %v606 = vperm.slane %v605, 0
        %607 = vst [vmem:[#allocation8 + $0xb] sm:$0x3] %v606
        %v608 = vld [vmem:[#allocation3 + $0x7] sm:$0x1]
        %v609 = vperm.slane %v608, 0
        %610 = vst [vmem:[#allocation8 + $0xd] sm:$0x3] %v609
        %v611 = vld [vmem:[#allocation3 + $0x8] sm:$0x1]
        %v612 = vperm.slane %v611, 0
        %613 = vst [vmem:[#allocation8 + $0xf] sm:$0x3] %v612
        %v614 = vld [vmem:[#allocation2] sm:$0xff]
        %v615 = vld [vmem:[#allocation2 + $0x8] sm:$0xff]
        %s616 = scalar_lea.vmem [#allocation11], 1152
        %v617 = vld [vmem:[%s616] sm:$0xff]
        %v618 = vld [vmem:[%s616 + $0x8] sm:$0xff]
        %v619 = vld [vmem:[%s616 + $0x10] sm:$0xff]
        %v620 = vld [vmem:[%s616 + $0x18] sm:$0xff]
        %v621 = vld [vmem:[%s616 + $0x20] sm:$0xff]
        %v622 = vld [vmem:[%s616 + $0x28] sm:$0xff]
        %v623 = vld [vmem:[%s616 + $0x30] sm:$0xff]
        %v624 = vld [vmem:[%s616 + $0x38] sm:$0xff]
        %v625 = vld [vmem:[%s616 + $0x40] sm:$0xff]
        %v626 = vld [vmem:[%s616 + $0x48] sm:$0xff]
        %v627 = vld [vmem:[%s616 + $0x50] sm:$0xff]
        %v628 = vld [vmem:[%s616 + $0x58] sm:$0xff]
        %v629 = vld [vmem:[%s616 + $0x60] sm:$0xff]
        %v630 = vld [vmem:[%s616 + $0x68] sm:$0xff]
        %v631 = vld [vmem:[%s616 + $0x70] sm:$0xff]
        %v632 = vld [vmem:[%s616 + $0x78] sm:$0xff]
        %v633 = vld [vmem:[#allocation2 + $0x1] sm:$0xff]
        %v634 = vld [vmem:[#allocation2 + $0x9] sm:$0xff]
        %s635 = scalar_lea.vmem [#allocation11], 1280
        %v636 = vld [vmem:[%s635] sm:$0xff]
        %v637 = vld [vmem:[%s635 + $0x8] sm:$0xff]
        %v638 = vld [vmem:[%s635 + $0x10] sm:$0xff]
        %v639 = vld [vmem:[%s635 + $0x18] sm:$0xff]
        %v640 = vld [vmem:[%s635 + $0x20] sm:$0xff]
        %v641 = vld [vmem:[%s635 + $0x28] sm:$0xff]
        %v642 = vld [vmem:[%s635 + $0x30] sm:$0xff]
        %v643 = vld [vmem:[%s635 + $0x38] sm:$0xff]
        %v644 = vld [vmem:[%s635 + $0x40] sm:$0xff]
        %v645 = vld [vmem:[%s635 + $0x48] sm:$0xff]
        %v646 = vld [vmem:[%s635 + $0x50] sm:$0xff]
        %v647 = vld [vmem:[%s635 + $0x58] sm:$0xff]
        %v648 = vld [vmem:[%s635 + $0x60] sm:$0xff]
        %v649 = vld [vmem:[%s635 + $0x68] sm:$0xff]
        %v650 = vld [vmem:[%s635 + $0x70] sm:$0xff]
        %v651 = vld [vmem:[%s635 + $0x78] sm:$0xff]
        %652 = vmatpush.msra.mxu0 %v651
        %653 = vmatpush.msra.mxu0 %v650
        %654 = vmatpush.msra.mxu0 %v649
        %655 = vmatpush.msra.mxu0 %v648
        %656 = vmatpush.msra.mxu0 %v647
        %657 = vmatpush.msra.mxu0 %v646
        %658 = vmatpush.msra.mxu0 %v645
        %659 = vmatpush.msra.mxu0 %v644
        %660 = vmatpush.msra.mxu0 %v643
        %661 = vmatpush.msra.mxu0 %v642
        %662 = vmatpush.msra.mxu0 %v641
        %663 = vmatpush.msra.mxu0 %v640
        %664 = vmatpush.msra.mxu0 %v639
        %665 = vmatpush.msra.mxu0 %v638
        %666 = vmatpush.msra.mxu0 %v637
        %667 = vmatpush.msra.mxu0 %v636
        %668 = vmatmul.f32.gmra.mxu0 %v633
        %v669 = vpop.f32.mrf.mxu0
        %v670 = vadd.f32 0.0, %v669
        %671 = vmatmul.f32.gmra.mxu0 %v634
        %v672 = vpop.f32.mrf.mxu0
        %v673 = vadd.f32 0.0, %v672
        %674 = vdwg.mxu0
        %675 = vmatpush.msra.mxu0 %v632
        %676 = vmatpush.msra.mxu0 %v631
        %677 = vmatpush.msra.mxu0 %v630
        %678 = vmatpush.msra.mxu0 %v629
        %679 = vmatpush.msra.mxu0 %v628
        %680 = vmatpush.msra.mxu0 %v627
        %681 = vmatpush.msra.mxu0 %v626
        %682 = vmatpush.msra.mxu0 %v625
        %683 = vmatpush.msra.mxu0 %v624
        %684 = vmatpush.msra.mxu0 %v623
        %685 = vmatpush.msra.mxu0 %v622
        %686 = vmatpush.msra.mxu0 %v621
        %687 = vmatpush.msra.mxu0 %v620
        %688 = vmatpush.msra.mxu0 %v619
        %689 = vmatpush.msra.mxu0 %v618
        %690 = vmatpush.msra.mxu0 %v617
        %691 = vmatmul.f32.gmra.mxu0 %v614
        %v692 = vpop.f32.mrf.mxu0
        %v693 = vadd.f32 %v670, %v692
        %694 = vmatmul.f32.gmra.mxu0 %v615
        %v695 = vpop.f32.mrf.mxu0
        %v696 = vadd.f32 %v673, %v695
        %697 = vdwg.mxu0
        %v698 = vld [vmem:[#allocation2 + $0x2] sm:$0xff]
        %v699 = vld [vmem:[#allocation2 + $0xa] sm:$0xff]
        %s700 = scalar_lea.vmem [#allocation11], 1408
        %v701 = vld [vmem:[%s700] sm:$0xff]
        %v702 = vld [vmem:[%s700 + $0x8] sm:$0xff]
        %v703 = vld [vmem:[%s700 + $0x10] sm:$0xff]
        %v704 = vld [vmem:[%s700 + $0x18] sm:$0xff]
        %v705 = vld [vmem:[%s700 + $0x20] sm:$0xff]
        %v706 = vld [vmem:[%s700 + $0x28] sm:$0xff]
        %v707 = vld [vmem:[%s700 + $0x30] sm:$0xff]
        %v708 = vld [vmem:[%s700 + $0x38] sm:$0xff]
        %v709 = vld [vmem:[%s700 + $0x40] sm:$0xff]
        %v710 = vld [vmem:[%s700 + $0x48] sm:$0xff]
        %v711 = vld [vmem:[%s700 + $0x50] sm:$0xff]
        %v712 = vld [vmem:[%s700 + $0x58] sm:$0xff]
        %v713 = vld [vmem:[%s700 + $0x60] sm:$0xff]
        %v714 = vld [vmem:[%s700 + $0x68] sm:$0xff]
        %v715 = vld [vmem:[%s700 + $0x70] sm:$0xff]
        %v716 = vld [vmem:[%s700 + $0x78] sm:$0xff]
        %717 = vmatpush.msra.mxu0 %v716
        %718 = vmatpush.msra.mxu0 %v715
        %719 = vmatpush.msra.mxu0 %v714
        %720 = vmatpush.msra.mxu0 %v713
        %721 = vmatpush.msra.mxu0 %v712
        %722 = vmatpush.msra.mxu0 %v711
        %723 = vmatpush.msra.mxu0 %v710
        %724 = vmatpush.msra.mxu0 %v709
        %725 = vmatpush.msra.mxu0 %v708
        %726 = vmatpush.msra.mxu0 %v707
        %727 = vmatpush.msra.mxu0 %v706
        %728 = vmatpush.msra.mxu0 %v705
        %729 = vmatpush.msra.mxu0 %v704
        %730 = vmatpush.msra.mxu0 %v703
        %731 = vmatpush.msra.mxu0 %v702
        %732 = vmatpush.msra.mxu0 %v701
        %733 = vmatmul.f32.gmra.mxu0 %v698
        %v734 = vpop.f32.mrf.mxu0
        %v735 = vadd.f32 0.0, %v734
        %736 = vmatmul.f32.gmra.mxu0 %v699
        %v737 = vpop.f32.mrf.mxu0
        %v738 = vadd.f32 0.0, %v737
        %739 = vdwg.mxu0
        %v740 = vadd.f32 %v693, %v735
        %v741 = vadd.f32 %v696, %v738
        %v742 = vld [vmem:[#allocation8] sm:$0xff]
        %v743 = vld [vmem:[#allocation8 + $0x8] sm:$0xff]
        %s744 = scalar_lea.vmem [#allocation11], 1536
        %v745 = vld [vmem:[%s744] sm:$0xff]
        %v746 = vld [vmem:[%s744 + $0x8] sm:$0xff]
        %v747 = vld [vmem:[%s744 + $0x10] sm:$0xff]
        %v748 = vld [vmem:[%s744 + $0x18] sm:$0xff]
        %v749 = vld [vmem:[%s744 + $0x20] sm:$0xff]
        %v750 = vld [vmem:[%s744 + $0x28] sm:$0xff]
        %v751 = vld [vmem:[%s744 + $0x30] sm:$0xff]
        %v752 = vld [vmem:[%s744 + $0x38] sm:$0xff]
        %v753 = vld [vmem:[%s744 + $0x40] sm:$0xff]
        %v754 = vld [vmem:[%s744 + $0x48] sm:$0xff]
        %v755 = vld [vmem:[%s744 + $0x50] sm:$0xff]
        %v756 = vld [vmem:[%s744 + $0x58] sm:$0xff]
        %v757 = vld [vmem:[%s744 + $0x60] sm:$0xff]
        %v758 = vld [vmem:[%s744 + $0x68] sm:$0xff]
        %v759 = vld [vmem:[%s744 + $0x70] sm:$0xff]
        %v760 = vld [vmem:[%s744 + $0x78] sm:$0xff]
        %761 = vmatpush.msra.mxu0 %v760
        %762 = vmatpush.msra.mxu0 %v759
        %763 = vmatpush.msra.mxu0 %v758
        %764 = vmatpush.msra.mxu0 %v757
        %765 = vmatpush.msra.mxu0 %v756
        %766 = vmatpush.msra.mxu0 %v755
        %767 = vmatpush.msra.mxu0 %v754
        %768 = vmatpush.msra.mxu0 %v753
        %769 = vmatpush.msra.mxu0 %v752
        %770 = vmatpush.msra.mxu0 %v751
        %771 = vmatpush.msra.mxu0 %v750
        %772 = vmatpush.msra.mxu0 %v749
        %773 = vmatpush.msra.mxu0 %v748
        %774 = vmatpush.msra.mxu0 %v747
        %775 = vmatpush.msra.mxu0 %v746
        %776 = vmatpush.msra.mxu0 %v745
        %777 = vmatmul.f32.gmra.mxu0 %v742
        %v778 = vpop.f32.mrf.mxu0
        %v779 = vadd.f32 0.0, %v778
        %780 = vmatmul.f32.gmra.mxu0 %v743
        %v781 = vpop.f32.mrf.mxu0
        %v782 = vadd.f32 0.0, %v781
        %783 = vdwg.mxu0
        %v784 = vadd.f32 %v740, %v779
        %v785 = vadd.f32 %v741, %v782
        %v786 = vld [vmem:[#allocation8 + $0x1] sm:$0xff]
        %v787 = vld [vmem:[#allocation8 + $0x9] sm:$0xff]
        %s788 = scalar_lea.vmem [#allocation11], 1664
        %v789 = vld [vmem:[%s788] sm:$0xff]
        %v790 = vld [vmem:[%s788 + $0x8] sm:$0xff]
        %v791 = vld [vmem:[%s788 + $0x10] sm:$0xff]
        %v792 = vld [vmem:[%s788 + $0x18] sm:$0xff]
        %v793 = vld [vmem:[%s788 + $0x20] sm:$0xff]
        %v794 = vld [vmem:[%s788 + $0x28] sm:$0xff]
        %v795 = vld [vmem:[%s788 + $0x30] sm:$0xff]
        %v796 = vld [vmem:[%s788 + $0x38] sm:$0xff]
        %v797 = vld [vmem:[%s788 + $0x40] sm:$0xff]
        %v798 = vld [vmem:[%s788 + $0x48] sm:$0xff]
        %v799 = vld [vmem:[%s788 + $0x50] sm:$0xff]
        %v800 = vld [vmem:[%s788 + $0x58] sm:$0xff]
        %v801 = vld [vmem:[%s788 + $0x60] sm:$0xff]
        %v802 = vld [vmem:[%s788 + $0x68] sm:$0xff]
        %v803 = vld [vmem:[%s788 + $0x70] sm:$0xff]
        %v804 = vld [vmem:[%s788 + $0x78] sm:$0xff]
        %805 = vmatpush.msra.mxu0 %v804
        %806 = vmatpush.msra.mxu0 %v803
        %807 = vmatpush.msra.mxu0 %v802
        %808 = vmatpush.msra.mxu0 %v801
        %809 = vmatpush.msra.mxu0 %v800
        %810 = vmatpush.msra.mxu0 %v799
        %811 = vmatpush.msra.mxu0 %v798
        %812 = vmatpush.msra.mxu0 %v797
        %813 = vmatpush.msra.mxu0 %v796
        %814 = vmatpush.msra.mxu0 %v795
        %815 = vmatpush.msra.mxu0 %v794
        %816 = vmatpush.msra.mxu0 %v793
        %817 = vmatpush.msra.mxu0 %v792
        %818 = vmatpush.msra.mxu0 %v791
        %819 = vmatpush.msra.mxu0 %v790
        %820 = vmatpush.msra.mxu0 %v789
        %821 = vmatmul.f32.gmra.mxu0 %v786
        %v822 = vpop.f32.mrf.mxu0
        %v823 = vadd.f32 0.0, %v822
        %824 = vmatmul.f32.gmra.mxu0 %v787
        %v825 = vpop.f32.mrf.mxu0
        %v826 = vadd.f32 0.0, %v825
        %827 = vdwg.mxu0
        %v828 = vadd.f32 %v784, %v823
        %v829 = vadd.f32 %v785, %v826
        %v830 = vld [vmem:[#allocation8 + $0x2] sm:$0xff]
        %v831 = vld [vmem:[#allocation8 + $0xa] sm:$0xff]
        %s832 = scalar_lea.vmem [#allocation11], 1792
        %v833 = vld [vmem:[%s832] sm:$0xff]
        %v834 = vld [vmem:[%s832 + $0x8] sm:$0xff]
        %v835 = vld [vmem:[%s832 + $0x10] sm:$0xff]
        %v836 = vld [vmem:[%s832 + $0x18] sm:$0xff]
        %v837 = vld [vmem:[%s832 + $0x20] sm:$0xff]
        %v838 = vld [vmem:[%s832 + $0x28] sm:$0xff]
        %v839 = vld [vmem:[%s832 + $0x30] sm:$0xff]
        %v840 = vld [vmem:[%s832 + $0x38] sm:$0xff]
        %v841 = vld [vmem:[%s832 + $0x40] sm:$0xff]
        %v842 = vld [vmem:[%s832 + $0x48] sm:$0xff]
        %v843 = vld [vmem:[%s832 + $0x50] sm:$0xff]
        %v844 = vld [vmem:[%s832 + $0x58] sm:$0xff]
        %v845 = vld [vmem:[%s832 + $0x60] sm:$0xff]
        %v846 = vld [vmem:[%s832 + $0x68] sm:$0xff]
        %v847 = vld [vmem:[%s832 + $0x70] sm:$0xff]
        %v848 = vld [vmem:[%s832 + $0x78] sm:$0xff]
        %849 = vmatpush.msra.mxu0 %v848
        %850 = vmatpush.msra.mxu0 %v847
        %851 = vmatpush.msra.mxu0 %v846
        %852 = vmatpush.msra.mxu0 %v845
        %853 = vmatpush.msra.mxu0 %v844
        %854 = vmatpush.msra.mxu0 %v843
        %855 = vmatpush.msra.mxu0 %v842
        %856 = vmatpush.msra.mxu0 %v841
        %857 = vmatpush.msra.mxu0 %v840
        %858 = vmatpush.msra.mxu0 %v839
        %859 = vmatpush.msra.mxu0 %v838
        %860 = vmatpush.msra.mxu0 %v837
        %861 = vmatpush.msra.mxu0 %v836
        %862 = vmatpush.msra.mxu0 %v835
        %863 = vmatpush.msra.mxu0 %v834
        %864 = vmatpush.msra.mxu0 %v833
        %865 = vmatmul.f32.gmra.mxu0 %v830
        %v866 = vpop.f32.mrf.mxu0
        %v867 = vadd.f32 0.0, %v866
        %868 = vmatmul.f32.gmra.mxu0 %v831
        %v869 = vpop.f32.mrf.mxu0
        %v870 = vadd.f32 0.0, %v869
        %871 = vdwg.mxu0
        %v872 = vadd.f32 %v828, %v867
        %v873 = vadd.f32 %v829, %v870
        %v874 = vld [vmem:[#allocation13 + $0x3] sm:$0x1]
        %v875 = vperm.slane %v874, 0
        %v876 = vadd.f32 %v872, %v875
        %v877 = vadd.f32 %v873, %v875
        %v878 = vmax.f32 %v876, 0.0
        %v879 = vmax.f32 %v877, 0.0
        %880 = vst [vmem:[#allocation5 + $0x1] sm:$0xff] %v878
        %881 = vst [vmem:[#allocation5 + $0x9] sm:$0xff] %v879
        %882 = vst [vmem:[#allocation5] sm:$0x1] 0.0
        %883 = vst [vmem:[#allocation5 + $0x11] sm:$0x1] 0.0
        %884 = vst [vmem:[#allocation9] sm:$0x1] 0.0
        %885 = vst [vmem:[#allocation9 + $0x9] sm:$0x1] 0.0
        %v886 = vld [vmem:[#allocation4 + $0x1] sm:$0x1]
        %v887 = vperm.slane %v886, 0
        %888 = vst [vmem:[#allocation9 + $0x1] sm:$0x3] %v887
        %v889 = vld [vmem:[#allocation4 + $0x2] sm:$0x1]
        %v890 = vperm.slane %v889, 0
        %891 = vst [vmem:[#allocation9 + $0x3] sm:$0x3] %v890
        %v892 = vld [vmem:[#allocation4 + $0x3] sm:$0x1]
        %v893 = vperm.slane %v892, 0
        %894 = vst [vmem:[#allocation9 + $0x5] sm:$0x3] %v893
        %v895 = vld [vmem:[#allocation4 + $0x4] sm:$0x1]
        %v896 = vperm.slane %v895, 0
        %897 = vst [vmem:[#allocation9 + $0x7] sm:$0x3] %v896
        %v898 = vld [vmem:[#allocation3] sm:$0xff]
        %s899 = scalar_lea.vmem [#allocation11], 1920
        %v900 = vld [vmem:[%s899] sm:$0xff]
        %v901 = vld [vmem:[%s899 + $0x8] sm:$0xff]
        %v902 = vld [vmem:[%s899 + $0x10] sm:$0xff]
        %v903 = vld [vmem:[%s899 + $0x18] sm:$0xff]
        %v904 = vld [vmem:[%s899 + $0x20] sm:$0xff]
        %v905 = vld [vmem:[%s899 + $0x28] sm:$0xff]
        %v906 = vld [vmem:[%s899 + $0x30] sm:$0xff]
        %v907 = vld [vmem:[%s899 + $0x38] sm:$0xff]
        %v908 = vld [vmem:[%s899 + $0x40] sm:$0xff]
        %v909 = vld [vmem:[%s899 + $0x48] sm:$0xff]
        %v910 = vld [vmem:[%s899 + $0x50] sm:$0xff]
        %v911 = vld [vmem:[%s899 + $0x58] sm:$0xff]
        %v912 = vld [vmem:[%s899 + $0x60] sm:$0xff]
        %v913 = vld [vmem:[%s899 + $0x68] sm:$0xff]
        %v914 = vld [vmem:[%s899 + $0x70] sm:$0xff]
        %v915 = vld [vmem:[%s899 + $0x78] sm:$0xff]
        %v916 = vld [vmem:[#allocation3 + $0x1] sm:$0xff]
        %s917 = scalar_lea.vmem [#allocation11], 2048
        %v918 = vld [vmem:[%s917] sm:$0xff]
        %v919 = vld [vmem:[%s917 + $0x8] sm:$0xff]
        %v920 = vld [vmem:[%s917 + $0x10] sm:$0xff]
        %v921 = vld [vmem:[%s917 + $0x18] sm:$0xff]
        %v922 = vld [vmem:[%s917 + $0x20] sm:$0xff]
        %v923 = vld [vmem:[%s917 + $0x28] sm:$0xff]
        %v924 = vld [vmem:[%s917 + $0x30] sm:$0xff]
        %v925 = vld [vmem:[%s917 + $0x38] sm:$0xff]
        %v926 = vld [vmem:[%s917 + $0x40] sm:$0xff]
        %v927 = vld [vmem:[%s917 + $0x48] sm:$0xff]
        %v928 = vld [vmem:[%s917 + $0x50] sm:$0xff]
        %v929 = vld [vmem:[%s917 + $0x58] sm:$0xff]
        %v930 = vld [vmem:[%s917 + $0x60] sm:$0xff]
        %v931 = vld [vmem:[%s917 + $0x68] sm:$0xff]
        %v932 = vld [vmem:[%s917 + $0x70] sm:$0xff]
        %v933 = vld [vmem:[%s917 + $0x78] sm:$0xff]
        %934 = vmatpush.msra.mxu0 %v933
        %935 = vmatpush.msra.mxu0 %v932
        %936 = vmatpush.msra.mxu0 %v931
        %937 = vmatpush.msra.mxu0 %v930
        %938 = vmatpush.msra.mxu0 %v929
        %939 = vmatpush.msra.mxu0 %v928
        %940 = vmatpush.msra.mxu0 %v927
        %941 = vmatpush.msra.mxu0 %v926
        %942 = vmatpush.msra.mxu0 %v925
        %943 = vmatpush.msra.mxu0 %v924
        %944 = vmatpush.msra.mxu0 %v923
        %945 = vmatpush.msra.mxu0 %v922
        %946 = vmatpush.msra.mxu0 %v921
        %947 = vmatpush.msra.mxu0 %v920
        %948 = vmatpush.msra.mxu0 %v919
        %949 = vmatpush.msra.mxu0 %v918
        %950 = vmatmul.f32.gmra.mxu0 %v916
        %v951 = vpop.f32.mrf.mxu0
        %v952 = vadd.f32 0.0, %v951
        %953 = vdwg.mxu0
        %954 = vmatpush.msra.mxu0 %v915
        %955 = vmatpush.msra.mxu0 %v914
        %956 = vmatpush.msra.mxu0 %v913
        %957 = vmatpush.msra.mxu0 %v912
        %958 = vmatpush.msra.mxu0 %v911
        %959 = vmatpush.msra.mxu0 %v910
        %960 = vmatpush.msra.mxu0 %v909
        %961 = vmatpush.msra.mxu0 %v908
        %962 = vmatpush.msra.mxu0 %v907
        %963 = vmatpush.msra.mxu0 %v906
        %964 = vmatpush.msra.mxu0 %v905
        %965 = vmatpush.msra.mxu0 %v904
        %966 = vmatpush.msra.mxu0 %v903
        %967 = vmatpush.msra.mxu0 %v902
        %968 = vmatpush.msra.mxu0 %v901
        %969 = vmatpush.msra.mxu0 %v900
        %970 = vmatmul.f32.gmra.mxu0 %v898
        %v971 = vpop.f32.mrf.mxu0
        %v972 = vadd.f32 %v952, %v971
        %973 = vdwg.mxu0
        %v974 = vld [vmem:[#allocation3 + $0x2] sm:$0xff]
        %s975 = scalar_lea.vmem [#allocation11], 2176
        %v976 = vld [vmem:[%s975] sm:$0xff]
        %v977 = vld [vmem:[%s975 + $0x8] sm:$0xff]
        %v978 = vld [vmem:[%s975 + $0x10] sm:$0xff]
        %v979 = vld [vmem:[%s975 + $0x18] sm:$0xff]
        %v980 = vld [vmem:[%s975 + $0x20] sm:$0xff]
        %v981 = vld [vmem:[%s975 + $0x28] sm:$0xff]
        %v982 = vld [vmem:[%s975 + $0x30] sm:$0xff]
        %v983 = vld [vmem:[%s975 + $0x38] sm:$0xff]
        %v984 = vld [vmem:[%s975 + $0x40] sm:$0xff]
        %v985 = vld [vmem:[%s975 + $0x48] sm:$0xff]
        %v986 = vld [vmem:[%s975 + $0x50] sm:$0xff]
        %v987 = vld [vmem:[%s975 + $0x58] sm:$0xff]
        %v988 = vld [vmem:[%s975 + $0x60] sm:$0xff]
        %v989 = vld [vmem:[%s975 + $0x68] sm:$0xff]
        %v990 = vld [vmem:[%s975 + $0x70] sm:$0xff]
        %v991 = vld [vmem:[%s975 + $0x78] sm:$0xff]
        %992 = vmatpush.msra.mxu0 %v991
        %993 = vmatpush.msra.mxu0 %v990
        %994 = vmatpush.msra.mxu0 %v989
        %995 = vmatpush.msra.mxu0 %v988
        %996 = vmatpush.msra.mxu0 %v987
        %997 = vmatpush.msra.mxu0 %v986
        %998 = vmatpush.msra.mxu0 %v985
        %999 = vmatpush.msra.mxu0 %v984
        %1000 = vmatpush.msra.mxu0 %v983
        %1001 = vmatpush.msra.mxu0 %v982
        %1002 = vmatpush.msra.mxu0 %v981
        %1003 = vmatpush.msra.mxu0 %v980
        %1004 = vmatpush.msra.mxu0 %v979
        %1005 = vmatpush.msra.mxu0 %v978
        %1006 = vmatpush.msra.mxu0 %v977
        %1007 = vmatpush.msra.mxu0 %v976
        %1008 = vmatmul.f32.gmra.mxu0 %v974
        %v1009 = vpop.f32.mrf.mxu0
        %v1010 = vadd.f32 0.0, %v1009
        %1011 = vdwg.mxu0
        %v1012 = vadd.f32 %v972, %v1010
        %v1013 = vld [vmem:[#allocation9] sm:$0xff]
        %s1014 = scalar_lea.vmem [#allocation11], 2304
        %v1015 = vld [vmem:[%s1014] sm:$0xff]
        %v1016 = vld [vmem:[%s1014 + $0x8] sm:$0xff]
        %v1017 = vld [vmem:[%s1014 + $0x10] sm:$0xff]
        %v1018 = vld [vmem:[%s1014 + $0x18] sm:$0xff]
        %v1019 = vld [vmem:[%s1014 + $0x20] sm:$0xff]
        %v1020 = vld [vmem:[%s1014 + $0x28] sm:$0xff]
        %v1021 = vld [vmem:[%s1014 + $0x30] sm:$0xff]
        %v1022 = vld [vmem:[%s1014 + $0x38] sm:$0xff]
        %v1023 = vld [vmem:[%s1014 + $0x40] sm:$0xff]
        %v1024 = vld [vmem:[%s1014 + $0x48] sm:$0xff]
        %v1025 = vld [vmem:[%s1014 + $0x50] sm:$0xff]
        %v1026 = vld [vmem:[%s1014 + $0x58] sm:$0xff]
        %v1027 = vld [vmem:[%s1014 + $0x60] sm:$0xff]
        %v1028 = vld [vmem:[%s1014 + $0x68] sm:$0xff]
        %v1029 = vld [vmem:[%s1014 + $0x70] sm:$0xff]
        %v1030 = vld [vmem:[%s1014 + $0x78] sm:$0xff]
        %1031 = vmatpush.msra.mxu0 %v1030
        %1032 = vmatpush.msra.mxu0 %v1029
        %1033 = vmatpush.msra.mxu0 %v1028
        %1034 = vmatpush.msra.mxu0 %v1027
        %1035 = vmatpush.msra.mxu0 %v1026
        %1036 = vmatpush.msra.mxu0 %v1025
        %1037 = vmatpush.msra.mxu0 %v1024
        %1038 = vmatpush.msra.mxu0 %v1023
        %1039 = vmatpush.msra.mxu0 %v1022
        %1040 = vmatpush.msra.mxu0 %v1021
        %1041 = vmatpush.msra.mxu0 %v1020
        %1042 = vmatpush.msra.mxu0 %v1019
        %1043 = vmatpush.msra.mxu0 %v1018
        %1044 = vmatpush.msra.mxu0 %v1017
        %1045 = vmatpush.msra.mxu0 %v1016
        %1046 = vmatpush.msra.mxu0 %v1015
        %1047 = vmatmul.f32.gmra.mxu0 %v1013
        %v1048 = vpop.f32.mrf.mxu0
        %v1049 = vadd.f32 0.0, %v1048
        %1050 = vdwg.mxu0
        %v1051 = vadd.f32 %v1012, %v1049
        %v1052 = vld [vmem:[#allocation9 + $0x1] sm:$0xff]
        %s1053 = scalar_lea.vmem [#allocation11], 2432
        %v1054 = vld [vmem:[%s1053] sm:$0xff]
        %v1055 = vld [vmem:[%s1053 + $0x8] sm:$0xff]
        %v1056 = vld [vmem:[%s1053 + $0x10] sm:$0xff]
        %v1057 = vld [vmem:[%s1053 + $0x18] sm:$0xff]
        %v1058 = vld [vmem:[%s1053 + $0x20] sm:$0xff]
        %v1059 = vld [vmem:[%s1053 + $0x28] sm:$0xff]
        %v1060 = vld [vmem:[%s1053 + $0x30] sm:$0xff]
        %v1061 = vld [vmem:[%s1053 + $0x38] sm:$0xff]
        %v1062 = vld [vmem:[%s1053 + $0x40] sm:$0xff]
        %v1063 = vld [vmem:[%s1053 + $0x48] sm:$0xff]
        %v1064 = vld [vmem:[%s1053 + $0x50] sm:$0xff]
        %v1065 = vld [vmem:[%s1053 + $0x58] sm:$0xff]
        %v1066 = vld [vmem:[%s1053 + $0x60] sm:$0xff]
        %v1067 = vld [vmem:[%s1053 + $0x68] sm:$0xff]
        %v1068 = vld [vmem:[%s1053 + $0x70] sm:$0xff]
        %v1069 = vld [vmem:[%s1053 + $0x78] sm:$0xff]
        %1070 = vmatpush.msra.mxu0 %v1069
        %1071 = vmatpush.msra.mxu0 %v1068
        %1072 = vmatpush.msra.mxu0 %v1067
        %1073 = vmatpush.msra.mxu0 %v1066
        %1074 = vmatpush.msra.mxu0 %v1065
        %1075 = vmatpush.msra.mxu0 %v1064
        %1076 = vmatpush.msra.mxu0 %v1063
        %1077 = vmatpush.msra.mxu0 %v1062
        %1078 = vmatpush.msra.mxu0 %v1061
        %1079 = vmatpush.msra.mxu0 %v1060
        %1080 = vmatpush.msra.mxu0 %v1059
        %1081 = vmatpush.msra.mxu0 %v1058
        %1082 = vmatpush.msra.mxu0 %v1057
        %1083 = vmatpush.msra.mxu0 %v1056
        %1084 = vmatpush.msra.mxu0 %v1055
        %1085 = vmatpush.msra.mxu0 %v1054
        %1086 = vmatmul.f32.gmra.mxu0 %v1052
        %v1087 = vpop.f32.mrf.mxu0
        %v1088 = vadd.f32 0.0, %v1087
        %1089 = vdwg.mxu0
        %v1090 = vadd.f32 %v1051, %v1088
        %v1091 = vld [vmem:[#allocation9 + $0x2] sm:$0xff]
        %s1092 = scalar_lea.vmem [#allocation11], 2560
        %v1093 = vld [vmem:[%s1092] sm:$0xff]
        %v1094 = vld [vmem:[%s1092 + $0x8] sm:$0xff]
        %v1095 = vld [vmem:[%s1092 + $0x10] sm:$0xff]
        %v1096 = vld [vmem:[%s1092 + $0x18] sm:$0xff]
        %v1097 = vld [vmem:[%s1092 + $0x20] sm:$0xff]
        %v1098 = vld [vmem:[%s1092 + $0x28] sm:$0xff]
        %v1099 = vld [vmem:[%s1092 + $0x30] sm:$0xff]
        %v1100 = vld [vmem:[%s1092 + $0x38] sm:$0xff]
        %v1101 = vld [vmem:[%s1092 + $0x40] sm:$0xff]
        %v1102 = vld [vmem:[%s1092 + $0x48] sm:$0xff]
        %v1103 = vld [vmem:[%s1092 + $0x50] sm:$0xff]
        %v1104 = vld [vmem:[%s1092 + $0x58] sm:$0xff]
        %v1105 = vld [vmem:[%s1092 + $0x60] sm:$0xff]
        %v1106 = vld [vmem:[%s1092 + $0x68] sm:$0xff]
        %v1107 = vld [vmem:[%s1092 + $0x70] sm:$0xff]
        %v1108 = vld [vmem:[%s1092 + $0x78] sm:$0xff]
        %1109 = vmatpush.msra.mxu0 %v1108
        %1110 = vmatpush.msra.mxu0 %v1107
        %1111 = vmatpush.msra.mxu0 %v1106
        %1112 = vmatpush.msra.mxu0 %v1105
        %1113 = vmatpush.msra.mxu0 %v1104
        %1114 = vmatpush.msra.mxu0 %v1103
        %1115 = vmatpush.msra.mxu0 %v1102
        %1116 = vmatpush.msra.mxu0 %v1101
        %1117 = vmatpush.msra.mxu0 %v1100
        %1118 = vmatpush.msra.mxu0 %v1099
        %1119 = vmatpush.msra.mxu0 %v1098
        %1120 = vmatpush.msra.mxu0 %v1097
        %1121 = vmatpush.msra.mxu0 %v1096
        %1122 = vmatpush.msra.mxu0 %v1095
        %1123 = vmatpush.msra.mxu0 %v1094
        %1124 = vmatpush.msra.mxu0 %v1093
        %1125 = vmatmul.f32.gmra.mxu0 %v1091
        %v1126 = vpop.f32.mrf.mxu0
        %v1127 = vadd.f32 0.0, %v1126
        %1128 = vdwg.mxu0
        %v1129 = vadd.f32 %v1090, %v1127
        %v1130 = vld [vmem:[#allocation13 + $0x4] sm:$0x1]
        %v1131 = vperm.slane %v1130, 0
        %v1132 = vadd.f32 %v1129, %v1131
        %v1133 = vmax.f32 %v1132, 0.0
        %1134 = vst [vmem:[#allocation6 + $0x1] sm:$0xff] %v1133
        %1135 = vst [vmem:[#allocation6] sm:$0x1] 0.0
        %1136 = vst [vmem:[#allocation6 + $0x9] sm:$0x1] 0.0
        %1137 = vst [vmem:[#allocation10] sm:$0x1] 0.0
        %1138 = vst [vmem:[#allocation10 + $0x11] sm:$0x1] 0.0
        %v1139 = vld [vmem:[#allocation6 + $0x1] sm:$0x1]
        %v1140 = vperm.slane %v1139, 0
        %1141 = vst [vmem:[#allocation10 + $0x1] sm:$0x3] %v1140
        %v1142 = vld [vmem:[#allocation6 + $0x2] sm:$0x1]
        %v1143 = vperm.slane %v1142, 0
        %1144 = vst [vmem:[#allocation10 + $0x3] sm:$0x3] %v1143
        %v1145 = vld [vmem:[#allocation6 + $0x3] sm:$0x1]
        %v1146 = vperm.slane %v1145, 0
        %1147 = vst [vmem:[#allocation10 + $0x5] sm:$0x3] %v1146
        %v1148 = vld [vmem:[#allocation6 + $0x4] sm:$0x1]
        %v1149 = vperm.slane %v1148, 0
        %1150 = vst [vmem:[#allocation10 + $0x7] sm:$0x3] %v1149
        %v1151 = vld [vmem:[#allocation6 + $0x5] sm:$0x1]
        %v1152 = vperm.slane %v1151, 0
        %1153 = vst [vmem:[#allocation10 + $0x9] sm:$0x3] %v1152
        %v1154 = vld [vmem:[#allocation6 + $0x6] sm:$0x1]
        %v1155 = vperm.slane %v1154, 0
        %1156 = vst [vmem:[#allocation10 + $0xb] sm:$0x3] %v1155
        %v1157 = vld [vmem:[#allocation6 + $0x7] sm:$0x1]
        %v1158 = vperm.slane %v1157, 0
        %1159 = vst [vmem:[#allocation10 + $0xd] sm:$0x3] %v1158
        %v1160 = vld [vmem:[#allocation6 + $0x8] sm:$0x1]
        %v1161 = vperm.slane %v1160, 0
        %1162 = vst [vmem:[#allocation10 + $0xf] sm:$0x3] %v1161
        %v1163 = vld [vmem:[#allocation2] sm:$0xff]
        %v1164 = vld [vmem:[#allocation2 + $0x8] sm:$0xff]
        %s1165 = scalar_lea.vmem [#allocation11], 2688
        %v1166 = vld [vmem:[%s1165] sm:$0xff]
        %v1167 = vld [vmem:[%s1165 + $0x8] sm:$0xff]
        %v1168 = vld [vmem:[%s1165 + $0x10] sm:$0xff]
        %v1169 = vld [vmem:[%s1165 + $0x18] sm:$0xff]
        %v1170 = vld [vmem:[%s1165 + $0x20] sm:$0xff]
        %v1171 = vld [vmem:[%s1165 + $0x28] sm:$0xff]
        %v1172 = vld [vmem:[%s1165 + $0x30] sm:$0xff]
        %v1173 = vld [vmem:[%s1165 + $0x38] sm:$0xff]
        %v1174 = vld [vmem:[%s1165 + $0x40] sm:$0xff]
        %v1175 = vld [vmem:[%s1165 + $0x48] sm:$0xff]
        %v1176 = vld [vmem:[%s1165 + $0x50] sm:$0xff]
        %v1177 = vld [vmem:[%s1165 + $0x58] sm:$0xff]
        %v1178 = vld [vmem:[%s1165 + $0x60] sm:$0xff]
        %v1179 = vld [vmem:[%s1165 + $0x68] sm:$0xff]
        %v1180 = vld [vmem:[%s1165 + $0x70] sm:$0xff]
        %v1181 = vld [vmem:[%s1165 + $0x78] sm:$0xff]
        %v1182 = vld [vmem:[#allocation2 + $0x1] sm:$0xff]
        %v1183 = vld [vmem:[#allocation2 + $0x9] sm:$0xff]
        %s1184 = scalar_lea.vmem [#allocation11], 2816
        %v1185 = vld [vmem:[%s1184] sm:$0xff]
        %v1186 = vld [vmem:[%s1184 + $0x8] sm:$0xff]
        %v1187 = vld [vmem:[%s1184 + $0x10] sm:$0xff]
        %v1188 = vld [vmem:[%s1184 + $0x18] sm:$0xff]
        %v1189 = vld [vmem:[%s1184 + $0x20] sm:$0xff]
        %v1190 = vld [vmem:[%s1184 + $0x28] sm:$0xff]
        %v1191 = vld [vmem:[%s1184 + $0x30] sm:$0xff]
        %v1192 = vld [vmem:[%s1184 + $0x38] sm:$0xff]
        %v1193 = vld [vmem:[%s1184 + $0x40] sm:$0xff]
        %v1194 = vld [vmem:[%s1184 + $0x48] sm:$0xff]
        %v1195 = vld [vmem:[%s1184 + $0x50] sm:$0xff]
        %v1196 = vld [vmem:[%s1184 + $0x58] sm:$0xff]
        %v1197 = vld [vmem:[%s1184 + $0x60] sm:$0xff]
        %v1198 = vld [vmem:[%s1184 + $0x68] sm:$0xff]
        %v1199 = vld [vmem:[%s1184 + $0x70] sm:$0xff]
        %v1200 = vld [vmem:[%s1184 + $0x78] sm:$0xff]
        %1201 = vmatpush.msra.mxu0 %v1200
        %1202 = vmatpush.msra.mxu0 %v1199
        %1203 = vmatpush.msra.mxu0 %v1198
        %1204 = vmatpush.msra.mxu0 %v1197
        %1205 = vmatpush.msra.mxu0 %v1196
        %1206 = vmatpush.msra.mxu0 %v1195
        %1207 = vmatpush.msra.mxu0 %v1194
        %1208 = vmatpush.msra.mxu0 %v1193
        %1209 = vmatpush.msra.mxu0 %v1192
        %1210 = vmatpush.msra.mxu0 %v1191
        %1211 = vmatpush.msra.mxu0 %v1190
        %1212 = vmatpush.msra.mxu0 %v1189
        %1213 = vmatpush.msra.mxu0 %v1188
        %1214 = vmatpush.msra.mxu0 %v1187
        %1215 = vmatpush.msra.mxu0 %v1186
        %1216 = vmatpush.msra.mxu0 %v1185
        %1217 = vmatmul.f32.gmra.mxu0 %v1182
        %v1218 = vpop.f32.mrf.mxu0
        %v1219 = vadd.f32 0.0, %v1218
        %1220 = vmatmul.f32.gmra.mxu0 %v1183
        %v1221 = vpop.f32.mrf.mxu0
        %v1222 = vadd.f32 0.0, %v1221
        %1223 = vdwg.mxu0
        %1224 = vmatpush.msra.mxu0 %v1181
        %1225 = vmatpush.msra.mxu0 %v1180
        %1226 = vmatpush.msra.mxu0 %v1179
        %1227 = vmatpush.msra.mxu0 %v1178
        %1228 = vmatpush.msra.mxu0 %v1177
        %1229 = vmatpush.msra.mxu0 %v1176
        %1230 = vmatpush.msra.mxu0 %v1175
        %1231 = vmatpush.msra.mxu0 %v1174
        %1232 = vmatpush.msra.mxu0 %v1173
        %1233 = vmatpush.msra.mxu0 %v1172
        %1234 = vmatpush.msra.mxu0 %v1171
        %1235 = vmatpush.msra.mxu0 %v1170
        %1236 = vmatpush.msra.mxu0 %v1169
        %1237 = vmatpush.msra.mxu0 %v1168
        %1238 = vmatpush.msra.mxu0 %v1167
        %1239 = vmatpush.msra.mxu0 %v1166
        %1240 = vmatmul.f32.gmra.mxu0 %v1163
        %v1241 = vpop.f32.mrf.mxu0
        %v1242 = vadd.f32 %v1219, %v1241
        %1243 = vmatmul.f32.gmra.mxu0 %v1164
        %v1244 = vpop.f32.mrf.mxu0
        %v1245 = vadd.f32 %v1222, %v1244
        %1246 = vdwg.mxu0
        %v1247 = vld [vmem:[#allocation2 + $0x2] sm:$0xff]
        %v1248 = vld [vmem:[#allocation2 + $0xa] sm:$0xff]
        %s1249 = scalar_lea.vmem [#allocation11], 2944
        %v1250 = vld [vmem:[%s1249] sm:$0xff]
        %v1251 = vld [vmem:[%s1249 + $0x8] sm:$0xff]
        %v1252 = vld [vmem:[%s1249 + $0x10] sm:$0xff]
        %v1253 = vld [vmem:[%s1249 + $0x18] sm:$0xff]
        %v1254 = vld [vmem:[%s1249 + $0x20] sm:$0xff]
        %v1255 = vld [vmem:[%s1249 + $0x28] sm:$0xff]
        %v1256 = vld [vmem:[%s1249 + $0x30] sm:$0xff]
        %v1257 = vld [vmem:[%s1249 + $0x38] sm:$0xff]
        %v1258 = vld [vmem:[%s1249 + $0x40] sm:$0xff]
        %v1259 = vld [vmem:[%s1249 + $0x48] sm:$0xff]
        %v1260 = vld [vmem:[%s1249 + $0x50] sm:$0xff]
        %v1261 = vld [vmem:[%s1249 + $0x58] sm:$0xff]
        %v1262 = vld [vmem:[%s1249 + $0x60] sm:$0xff]
        %v1263 = vld [vmem:[%s1249 + $0x68] sm:$0xff]
        %v1264 = vld [vmem:[%s1249 + $0x70] sm:$0xff]
        %v1265 = vld [vmem:[%s1249 + $0x78] sm:$0xff]
        %1266 = vmatpush.msra.mxu0 %v1265
        %1267 = vmatpush.msra.mxu0 %v1264
        %1268 = vmatpush.msra.mxu0 %v1263
        %1269 = vmatpush.msra.mxu0 %v1262
        %1270 = vmatpush.msra.mxu0 %v1261
        %1271 = vmatpush.msra.mxu0 %v1260
        %1272 = vmatpush.msra.mxu0 %v1259
        %1273 = vmatpush.msra.mxu0 %v1258
        %1274 = vmatpush.msra.mxu0 %v1257
        %1275 = vmatpush.msra.mxu0 %v1256
        %1276 = vmatpush.msra.mxu0 %v1255
        %1277 = vmatpush.msra.mxu0 %v1254
        %1278 = vmatpush.msra.mxu0 %v1253
        %1279 = vmatpush.msra.mxu0 %v1252
        %1280 = vmatpush.msra.mxu0 %v1251
        %1281 = vmatpush.msra.mxu0 %v1250
        %1282 = vmatmul.f32.gmra.mxu0 %v1247
        %v1283 = vpop.f32.mrf.mxu0
        %v1284 = vadd.f32 0.0, %v1283
        %1285 = vmatmul.f32.gmra.mxu0 %v1248
        %v1286 = vpop.f32.mrf.mxu0
        %v1287 = vadd.f32 0.0, %v1286
        %1288 = vdwg.mxu0
        %v1289 = vadd.f32 %v1242, %v1284
        %v1290 = vadd.f32 %v1245, %v1287
        %v1291 = vld [vmem:[#allocation5] sm:$0xff]
        %v1292 = vld [vmem:[#allocation5 + $0x8] sm:$0xff]
        %s1293 = scalar_lea.vmem [#allocation11], 3072
        %v1294 = vld [vmem:[%s1293] sm:$0xff]
        %v1295 = vld [vmem:[%s1293 + $0x8] sm:$0xff]
        %v1296 = vld [vmem:[%s1293 + $0x10] sm:$0xff]
        %v1297 = vld [vmem:[%s1293 + $0x18] sm:$0xff]
        %v1298 = vld [vmem:[%s1293 + $0x20] sm:$0xff]
        %v1299 = vld [vmem:[%s1293 + $0x28] sm:$0xff]
        %v1300 = vld [vmem:[%s1293 + $0x30] sm:$0xff]
        %v1301 = vld [vmem:[%s1293 + $0x38] sm:$0xff]
        %v1302 = vld [vmem:[%s1293 + $0x40] sm:$0xff]
        %v1303 = vld [vmem:[%s1293 + $0x48] sm:$0xff]
        %v1304 = vld [vmem:[%s1293 + $0x50] sm:$0xff]
        %v1305 = vld [vmem:[%s1293 + $0x58] sm:$0xff]
        %v1306 = vld [vmem:[%s1293 + $0x60] sm:$0xff]
        %v1307 = vld [vmem:[%s1293 + $0x68] sm:$0xff]
        %v1308 = vld [vmem:[%s1293 + $0x70] sm:$0xff]
        %v1309 = vld [vmem:[%s1293 + $0x78] sm:$0xff]
        %1310 = vmatpush.msra.mxu0 %v1309
        %1311 = vmatpush.msra.mxu0 %v1308
        %1312 = vmatpush.msra.mxu0 %v1307
        %1313 = vmatpush.msra.mxu0 %v1306
        %1314 = vmatpush.msra.mxu0 %v1305
        %1315 = vmatpush.msra.mxu0 %v1304
        %1316 = vmatpush.msra.mxu0 %v1303
        %1317 = vmatpush.msra.mxu0 %v1302
        %1318 = vmatpush.msra.mxu0 %v1301
        %1319 = vmatpush.msra.mxu0 %v1300
        %1320 = vmatpush.msra.mxu0 %v1299
        %1321 = vmatpush.msra.mxu0 %v1298
        %1322 = vmatpush.msra.mxu0 %v1297
        %1323 = vmatpush.msra.mxu0 %v1296
        %1324 = vmatpush.msra.mxu0 %v1295
        %1325 = vmatpush.msra.mxu0 %v1294
        %1326 = vmatmul.f32.gmra.mxu0 %v1291
        %v1327 = vpop.f32.mrf.mxu0
        %v1328 = vadd.f32 0.0, %v1327
        %1329 = vmatmul.f32.gmra.mxu0 %v1292
        %v1330 = vpop.f32.mrf.mxu0
        %v1331 = vadd.f32 0.0, %v1330
        %1332 = vdwg.mxu0
        %v1333 = vadd.f32 %v1289, %v1328
        %v1334 = vadd.f32 %v1290, %v1331
        %v1335 = vld [vmem:[#allocation5 + $0x1] sm:$0xff]
        %v1336 = vld [vmem:[#allocation5 + $0x9] sm:$0xff]
        %s1337 = scalar_lea.vmem [#allocation11], 3200
        %v1338 = vld [vmem:[%s1337] sm:$0xff]
        %v1339 = vld [vmem:[%s1337 + $0x8] sm:$0xff]
        %v1340 = vld [vmem:[%s1337 + $0x10] sm:$0xff]
        %v1341 = vld [vmem:[%s1337 + $0x18] sm:$0xff]
        %v1342 = vld [vmem:[%s1337 + $0x20] sm:$0xff]
        %v1343 = vld [vmem:[%s1337 + $0x28] sm:$0xff]
        %v1344 = vld [vmem:[%s1337 + $0x30] sm:$0xff]
        %v1345 = vld [vmem:[%s1337 + $0x38] sm:$0xff]
        %v1346 = vld [vmem:[%s1337 + $0x40] sm:$0xff]
        %v1347 = vld [vmem:[%s1337 + $0x48] sm:$0xff]
        %v1348 = vld [vmem:[%s1337 + $0x50] sm:$0xff]
        %v1349 = vld [vmem:[%s1337 + $0x58] sm:$0xff]
        %v1350 = vld [vmem:[%s1337 + $0x60] sm:$0xff]
        %v1351 = vld [vmem:[%s1337 + $0x68] sm:$0xff]
        %v1352 = vld [vmem:[%s1337 + $0x70] sm:$0xff]
        %v1353 = vld [vmem:[%s1337 + $0x78] sm:$0xff]
        %1354 = vmatpush.msra.mxu0 %v1353
        %1355 = vmatpush.msra.mxu0 %v1352
        %1356 = vmatpush.msra.mxu0 %v1351
        %1357 = vmatpush.msra.mxu0 %v1350
        %1358 = vmatpush.msra.mxu0 %v1349
        %1359 = vmatpush.msra.mxu0 %v1348
        %1360 = vmatpush.msra.mxu0 %v1347
        %1361 = vmatpush.msra.mxu0 %v1346
        %1362 = vmatpush.msra.mxu0 %v1345
        %1363 = vmatpush.msra.mxu0 %v1344
        %1364 = vmatpush.msra.mxu0 %v1343
        %1365 = vmatpush.msra.mxu0 %v1342
        %1366 = vmatpush.msra.mxu0 %v1341
        %1367 = vmatpush.msra.mxu0 %v1340
        %1368 = vmatpush.msra.mxu0 %v1339
        %1369 = vmatpush.msra.mxu0 %v1338
        %1370 = vmatmul.f32.gmra.mxu0 %v1335
        %v1371 = vpop.f32.mrf.mxu0
        %v1372 = vadd.f32 0.0, %v1371
        %1373 = vmatmul.f32.gmra.mxu0 %v1336
        %v1374 = vpop.f32.mrf.mxu0
        %v1375 = vadd.f32 0.0, %v1374
        %1376 = vdwg.mxu0
        %v1377 = vadd.f32 %v1333, %v1372
        %v1378 = vadd.f32 %v1334, %v1375
        %v1379 = vld [vmem:[#allocation5 + $0x2] sm:$0xff]
        %v1380 = vld [vmem:[#allocation5 + $0xa] sm:$0xff]
        %s1381 = scalar_lea.vmem [#allocation11], 3328
        %v1382 = vld [vmem:[%s1381] sm:$0xff]
        %v1383 = vld [vmem:[%s1381 + $0x8] sm:$0xff]
        %v1384 = vld [vmem:[%s1381 + $0x10] sm:$0xff]
        %v1385 = vld [vmem:[%s1381 + $0x18] sm:$0xff]
        %v1386 = vld [vmem:[%s1381 + $0x20] sm:$0xff]
        %v1387 = vld [vmem:[%s1381 + $0x28] sm:$0xff]
        %v1388 = vld [vmem:[%s1381 + $0x30] sm:$0xff]
        %v1389 = vld [vmem:[%s1381 + $0x38] sm:$0xff]
        %v1390 = vld [vmem:[%s1381 + $0x40] sm:$0xff]
        %v1391 = vld [vmem:[%s1381 + $0x48] sm:$0xff]
        %v1392 = vld [vmem:[%s1381 + $0x50] sm:$0xff]
        %v1393 = vld [vmem:[%s1381 + $0x58] sm:$0xff]
        %v1394 = vld [vmem:[%s1381 + $0x60] sm:$0xff]
        %v1395 = vld [vmem:[%s1381 + $0x68] sm:$0xff]
        %v1396 = vld [vmem:[%s1381 + $0x70] sm:$0xff]
        %v1397 = vld [vmem:[%s1381 + $0x78] sm:$0xff]
        %1398 = vmatpush.msra.mxu0 %v1397
        %1399 = vmatpush.msra.mxu0 %v1396
        %1400 = vmatpush.msra.mxu0 %v1395
        %1401 = vmatpush.msra.mxu0 %v1394
        %1402 = vmatpush.msra.mxu0 %v1393
        %1403 = vmatpush.msra.mxu0 %v1392
        %1404 = vmatpush.msra.mxu0 %v1391
        %1405 = vmatpush.msra.mxu0 %v1390
        %1406 = vmatpush.msra.mxu0 %v1389
        %1407 = vmatpush.msra.mxu0 %v1388
        %1408 = vmatpush.msra.mxu0 %v1387
        %1409 = vmatpush.msra.mxu0 %v1386
        %1410 = vmatpush.msra.mxu0 %v1385
        %1411 = vmatpush.msra.mxu0 %v1384
        %1412 = vmatpush.msra.mxu0 %v1383
        %1413 = vmatpush.msra.mxu0 %v1382
        %1414 = vmatmul.f32.gmra.mxu0 %v1379
        %v1415 = vpop.f32.mrf.mxu0
        %v1416 = vadd.f32 0.0, %v1415
        %1417 = vmatmul.f32.gmra.mxu0 %v1380
        %v1418 = vpop.f32.mrf.mxu0
        %v1419 = vadd.f32 0.0, %v1418
        %1420 = vdwg.mxu0
        %v1421 = vadd.f32 %v1377, %v1416
        %v1422 = vadd.f32 %v1378, %v1419
        %v1423 = vld [vmem:[#allocation10] sm:$0xff]
        %v1424 = vld [vmem:[#allocation10 + $0x8] sm:$0xff]
        %s1425 = scalar_lea.vmem [#allocation11], 3456
        %v1426 = vld [vmem:[%s1425] sm:$0xff]
        %v1427 = vld [vmem:[%s1425 + $0x8] sm:$0xff]
        %v1428 = vld [vmem:[%s1425 + $0x10] sm:$0xff]
        %v1429 = vld [vmem:[%s1425 + $0x18] sm:$0xff]
        %v1430 = vld [vmem:[%s1425 + $0x20] sm:$0xff]
        %v1431 = vld [vmem:[%s1425 + $0x28] sm:$0xff]
        %v1432 = vld [vmem:[%s1425 + $0x30] sm:$0xff]
        %v1433 = vld [vmem:[%s1425 + $0x38] sm:$0xff]
        %v1434 = vld [vmem:[%s1425 + $0x40] sm:$0xff]
        %v1435 = vld [vmem:[%s1425 + $0x48] sm:$0xff]
        %v1436 = vld [vmem:[%s1425 + $0x50] sm:$0xff]
        %v1437 = vld [vmem:[%s1425 + $0x58] sm:$0xff]
        %v1438 = vld [vmem:[%s1425 + $0x60] sm:$0xff]
        %v1439 = vld [vmem:[%s1425 + $0x68] sm:$0xff]
        %v1440 = vld [vmem:[%s1425 + $0x70] sm:$0xff]
        %v1441 = vld [vmem:[%s1425 + $0x78] sm:$0xff]
        %1442 = vmatpush.msra.mxu0 %v1441
        %1443 = vmatpush.msra.mxu0 %v1440
        %1444 = vmatpush.msra.mxu0 %v1439
        %1445 = vmatpush.msra.mxu0 %v1438
        %1446 = vmatpush.msra.mxu0 %v1437
        %1447 = vmatpush.msra.mxu0 %v1436
        %1448 = vmatpush.msra.mxu0 %v1435
        %1449 = vmatpush.msra.mxu0 %v1434
        %1450 = vmatpush.msra.mxu0 %v1433
        %1451 = vmatpush.msra.mxu0 %v1432
        %1452 = vmatpush.msra.mxu0 %v1431
        %1453 = vmatpush.msra.mxu0 %v1430
        %1454 = vmatpush.msra.mxu0 %v1429
        %1455 = vmatpush.msra.mxu0 %v1428
        %1456 = vmatpush.msra.mxu0 %v1427
        %1457 = vmatpush.msra.mxu0 %v1426
        %1458 = vmatmul.f32.gmra.mxu0 %v1423
        %v1459 = vpop.f32.mrf.mxu0
        %v1460 = vadd.f32 0.0, %v1459
        %1461 = vmatmul.f32.gmra.mxu0 %v1424
        %v1462 = vpop.f32.mrf.mxu0
        %v1463 = vadd.f32 0.0, %v1462
        %1464 = vdwg.mxu0
        %v1465 = vadd.f32 %v1421, %v1460
        %v1466 = vadd.f32 %v1422, %v1463
        %v1467 = vld [vmem:[#allocation10 + $0x1] sm:$0xff]
        %v1468 = vld [vmem:[#allocation10 + $0x9] sm:$0xff]
        %s1469 = scalar_lea.vmem [#allocation11], 3584
        %v1470 = vld [vmem:[%s1469] sm:$0xff]
        %v1471 = vld [vmem:[%s1469 + $0x8] sm:$0xff]
        %v1472 = vld [vmem:[%s1469 + $0x10] sm:$0xff]
        %v1473 = vld [vmem:[%s1469 + $0x18] sm:$0xff]
        %v1474 = vld [vmem:[%s1469 + $0x20] sm:$0xff]
        %v1475 = vld [vmem:[%s1469 + $0x28] sm:$0xff]
        %v1476 = vld [vmem:[%s1469 + $0x30] sm:$0xff]
        %v1477 = vld [vmem:[%s1469 + $0x38] sm:$0xff]
        %v1478 = vld [vmem:[%s1469 + $0x40] sm:$0xff]
        %v1479 = vld [vmem:[%s1469 + $0x48] sm:$0xff]
        %v1480 = vld [vmem:[%s1469 + $0x50] sm:$0xff]
        %v1481 = vld [vmem:[%s1469 + $0x58] sm:$0xff]
        %v1482 = vld [vmem:[%s1469 + $0x60] sm:$0xff]
        %v1483 = vld [vmem:[%s1469 + $0x68] sm:$0xff]
        %v1484 = vld [vmem:[%s1469 + $0x70] sm:$0xff]
        %v1485 = vld [vmem:[%s1469 + $0x78] sm:$0xff]
        %1486 = vmatpush.msra.mxu0 %v1485
        %1487 = vmatpush.msra.mxu0 %v1484
        %1488 = vmatpush.msra.mxu0 %v1483
        %1489 = vmatpush.msra.mxu0 %v1482
        %1490 = vmatpush.msra.mxu0 %v1481
        %1491 = vmatpush.msra.mxu0 %v1480
        %1492 = vmatpush.msra.mxu0 %v1479
        %1493 = vmatpush.msra.mxu0 %v1478
        %1494 = vmatpush.msra.mxu0 %v1477
        %1495 = vmatpush.msra.mxu0 %v1476
        %1496 = vmatpush.msra.mxu0 %v1475
        %1497 = vmatpush.msra.mxu0 %v1474
        %1498 = vmatpush.msra.mxu0 %v1473
        %1499 = vmatpush.msra.mxu0 %v1472
        %1500 = vmatpush.msra.mxu0 %v1471
        %1501 = vmatpush.msra.mxu0 %v1470
        %1502 = vmatmul.f32.gmra.mxu0 %v1467
        %v1503 = vpop.f32.mrf.mxu0
        %v1504 = vadd.f32 0.0, %v1503
        %1505 = vmatmul.f32.gmra.mxu0 %v1468
        %v1506 = vpop.f32.mrf.mxu0
        %v1507 = vadd.f32 0.0, %v1506
        %1508 = vdwg.mxu0
        %v1509 = vadd.f32 %v1465, %v1504
        %v1510 = vadd.f32 %v1466, %v1507
        %v1511 = vld [vmem:[#allocation10 + $0x2] sm:$0xff]
        %v1512 = vld [vmem:[#allocation10 + $0xa] sm:$0xff]
        %s1513 = scalar_lea.vmem [#allocation11], 3712
        %v1514 = vld [vmem:[%s1513] sm:$0xff]
        %v1515 = vld [vmem:[%s1513 + $0x8] sm:$0xff]
        %v1516 = vld [vmem:[%s1513 + $0x10] sm:$0xff]
        %v1517 = vld [vmem:[%s1513 + $0x18] sm:$0xff]
        %v1518 = vld [vmem:[%s1513 + $0x20] sm:$0xff]
        %v1519 = vld [vmem:[%s1513 + $0x28] sm:$0xff]
        %v1520 = vld [vmem:[%s1513 + $0x30] sm:$0xff]
        %v1521 = vld [vmem:[%s1513 + $0x38] sm:$0xff]
        %v1522 = vld [vmem:[%s1513 + $0x40] sm:$0xff]
        %v1523 = vld [vmem:[%s1513 + $0x48] sm:$0xff]
        %v1524 = vld [vmem:[%s1513 + $0x50] sm:$0xff]
        %v1525 = vld [vmem:[%s1513 + $0x58] sm:$0xff]
        %v1526 = vld [vmem:[%s1513 + $0x60] sm:$0xff]
        %v1527 = vld [vmem:[%s1513 + $0x68] sm:$0xff]
        %v1528 = vld [vmem:[%s1513 + $0x70] sm:$0xff]
        %v1529 = vld [vmem:[%s1513 + $0x78] sm:$0xff]
        %1530 = vmatpush.msra.mxu0 %v1529
        %1531 = vmatpush.msra.mxu0 %v1528
        %1532 = vmatpush.msra.mxu0 %v1527
        %1533 = vmatpush.msra.mxu0 %v1526
        %1534 = vmatpush.msra.mxu0 %v1525
        %1535 = vmatpush.msra.mxu0 %v1524
        %1536 = vmatpush.msra.mxu0 %v1523
        %1537 = vmatpush.msra.mxu0 %v1522
        %1538 = vmatpush.msra.mxu0 %v1521
        %1539 = vmatpush.msra.mxu0 %v1520
        %1540 = vmatpush.msra.mxu0 %v1519
        %1541 = vmatpush.msra.mxu0 %v1518
        %1542 = vmatpush.msra.mxu0 %v1517
        %1543 = vmatpush.msra.mxu0 %v1516
        %1544 = vmatpush.msra.mxu0 %v1515
        %1545 = vmatpush.msra.mxu0 %v1514
        %1546 = vmatmul.f32.gmra.mxu0 %v1511
        %v1547 = vpop.f32.mrf.mxu0
        %v1548 = vadd.f32 0.0, %v1547
        %1549 = vmatmul.f32.gmra.mxu0 %v1512
        %v1550 = vpop.f32.mrf.mxu0
        %v1551 = vadd.f32 0.0, %v1550
        %1552 = vdwg.mxu0
        %v1553 = vadd.f32 %v1509, %v1548
        %v1554 = vadd.f32 %v1510, %v1551
        %v1555 = vld [vmem:[#allocation13 + $0x5] sm:$0x1]
        %v1556 = vperm.slane %v1555, 0
        %v1557 = vadd.f32 %v1553, %v1556
        %v1558 = vadd.f32 %v1554, %v1556
        %v1559 = vmax.f32 %v1557, 0.0
        %v1560 = vmax.f32 %v1558, 0.0
        %1561 = vst [vmem:[#allocation7 + $0x1] sm:$0xff] %v1559
        %1562 = vst [vmem:[#allocation7 + $0x9] sm:$0xff] %v1560
        %1563 = vst [vmem:[#allocation7] sm:$0x1] 0.0
        %1564 = vst [vmem:[#allocation7 + $0x11] sm:$0x1] 0.0
        %v1565 = vld [vmem:[#allocation7] sm:$0xff]
        %v1566 = vld [vmem:[#allocation7 + $0x8] sm:$0xff]
        %s1567 = scalar_lea.vmem [#allocation11], 3840
        %v1568 = vld [vmem:[%s1567] sm:$0xff]
        %v1569 = vld [vmem:[%s1567 + $0x8] sm:$0xff]
        %v1570 = vld [vmem:[%s1567 + $0x10] sm:$0xff]
        %v1571 = vld [vmem:[%s1567 + $0x18] sm:$0xff]
        %v1572 = vld [vmem:[%s1567 + $0x20] sm:$0xff]
        %v1573 = vld [vmem:[%s1567 + $0x28] sm:$0xff]
        %v1574 = vld [vmem:[%s1567 + $0x30] sm:$0xff]
        %v1575 = vld [vmem:[%s1567 + $0x38] sm:$0xff]
        %v1576 = vld [vmem:[%s1567 + $0x40] sm:$0xff]
        %v1577 = vld [vmem:[%s1567 + $0x48] sm:$0xff]
        %v1578 = vld [vmem:[%s1567 + $0x50] sm:$0xff]
        %v1579 = vld [vmem:[%s1567 + $0x58] sm:$0xff]
        %v1580 = vld [vmem:[%s1567 + $0x60] sm:$0xff]
        %v1581 = vld [vmem:[%s1567 + $0x68] sm:$0xff]
        %v1582 = vld [vmem:[%s1567 + $0x70] sm:$0xff]
        %v1583 = vld [vmem:[%s1567 + $0x78] sm:$0xff]
        %v1584 = vld [vmem:[#allocation7 + $0x1] sm:$0xff]
        %v1585 = vld [vmem:[#allocation7 + $0x9] sm:$0xff]
        %s1586 = scalar_lea.vmem [#allocation11], 3968
        %v1587 = vld [vmem:[%s1586] sm:$0xff]
        %v1588 = vld [vmem:[%s1586 + $0x8] sm:$0xff]
        %v1589 = vld [vmem:[%s1586 + $0x10] sm:$0xff]
        %v1590 = vld [vmem:[%s1586 + $0x18] sm:$0xff]
        %v1591 = vld [vmem:[%s1586 + $0x20] sm:$0xff]
        %v1592 = vld [vmem:[%s1586 + $0x28] sm:$0xff]
        %v1593 = vld [vmem:[%s1586 + $0x30] sm:$0xff]
        %v1594 = vld [vmem:[%s1586 + $0x38] sm:$0xff]
        %v1595 = vld [vmem:[%s1586 + $0x40] sm:$0xff]
        %v1596 = vld [vmem:[%s1586 + $0x48] sm:$0xff]
        %v1597 = vld [vmem:[%s1586 + $0x50] sm:$0xff]
        %v1598 = vld [vmem:[%s1586 + $0x58] sm:$0xff]
        %v1599 = vld [vmem:[%s1586 + $0x60] sm:$0xff]
        %v1600 = vld [vmem:[%s1586 + $0x68] sm:$0xff]
        %v1601 = vld [vmem:[%s1586 + $0x70] sm:$0xff]
        %v1602 = vld [vmem:[%s1586 + $0x78] sm:$0xff]
        %1603 = vmatpush.msra.mxu0 %v1602
        %1604 = vmatpush.msra.mxu0 %v1601
        %1605 = vmatpush.msra.mxu0 %v1600
        %1606 = vmatpush.msra.mxu0 %v1599
        %1607 = vmatpush.msra.mxu0 %v1598
        %1608 = vmatpush.msra.mxu0 %v1597
        %1609 = vmatpush.msra.mxu0 %v1596
        %1610 = vmatpush.msra.mxu0 %v1595
        %1611 = vmatpush.msra.mxu0 %v1594
        %1612 = vmatpush.msra.mxu0 %v1593
        %1613 = vmatpush.msra.mxu0 %v1592
        %1614 = vmatpush.msra.mxu0 %v1591
        %1615 = vmatpush.msra.mxu0 %v1590
        %1616 = vmatpush.msra.mxu0 %v1589
        %1617 = vmatpush.msra.mxu0 %v1588
        %1618 = vmatpush.msra.mxu0 %v1587
        %1619 = vmatmul.f32.gmra.mxu0 %v1584
        %v1620 = vpop.f32.mrf.mxu0
        %v1621 = vadd.f32 0.0, %v1620
        %1622 = vmatmul.f32.gmra.mxu0 %v1585
        %v1623 = vpop.f32.mrf.mxu0
        %v1624 = vadd.f32 0.0, %v1623
        %1625 = vdwg.mxu0
        %1626 = vmatpush.msra.mxu0 %v1583
        %1627 = vmatpush.msra.mxu0 %v1582
        %1628 = vmatpush.msra.mxu0 %v1581
        %1629 = vmatpush.msra.mxu0 %v1580
        %1630 = vmatpush.msra.mxu0 %v1579
        %1631 = vmatpush.msra.mxu0 %v1578
        %1632 = vmatpush.msra.mxu0 %v1577
        %1633 = vmatpush.msra.mxu0 %v1576
        %1634 = vmatpush.msra.mxu0 %v1575
        %1635 = vmatpush.msra.mxu0 %v1574
        %1636 = vmatpush.msra.mxu0 %v1573
        %1637 = vmatpush.msra.mxu0 %v1572
        %1638 = vmatpush.msra.mxu0 %v1571
        %1639 = vmatpush.msra.mxu0 %v1570
        %1640 = vmatpush.msra.mxu0 %v1569
        %1641 = vmatpush.msra.mxu0 %v1568
        %1642 = vmatmul.f32.gmra.mxu0 %v1565
        %v1643 = vpop.f32.mrf.mxu0
        %v1644 = vadd.f32 %v1621, %v1643
        %1645 = vmatmul.f32.gmra.mxu0 %v1566
        %v1646 = vpop.f32.mrf.mxu0
        %v1647 = vadd.f32 %v1624, %v1646
        %1648 = vdwg.mxu0
        %v1649 = vld [vmem:[#allocation7 + $0x2] sm:$0xff]
        %v1650 = vld [vmem:[#allocation7 + $0xa] sm:$0xff]
        %s1651 = scalar_lea.vmem [#allocation11], 4096
        %v1652 = vld [vmem:[%s1651] sm:$0xff]
        %v1653 = vld [vmem:[%s1651 + $0x8] sm:$0xff]
        %v1654 = vld [vmem:[%s1651 + $0x10] sm:$0xff]
        %v1655 = vld [vmem:[%s1651 + $0x18] sm:$0xff]
        %v1656 = vld [vmem:[%s1651 + $0x20] sm:$0xff]
        %v1657 = vld [vmem:[%s1651 + $0x28] sm:$0xff]
        %v1658 = vld [vmem:[%s1651 + $0x30] sm:$0xff]
        %v1659 = vld [vmem:[%s1651 + $0x38] sm:$0xff]
        %v1660 = vld [vmem:[%s1651 + $0x40] sm:$0xff]
        %v1661 = vld [vmem:[%s1651 + $0x48] sm:$0xff]
        %v1662 = vld [vmem:[%s1651 + $0x50] sm:$0xff]
        %v1663 = vld [vmem:[%s1651 + $0x58] sm:$0xff]
        %v1664 = vld [vmem:[%s1651 + $0x60] sm:$0xff]
        %v1665 = vld [vmem:[%s1651 + $0x68] sm:$0xff]
        %v1666 = vld [vmem:[%s1651 + $0x70] sm:$0xff]
        %v1667 = vld [vmem:[%s1651 + $0x78] sm:$0xff]
        %1668 = vmatpush.msra.mxu0 %v1667
        %1669 = vmatpush.msra.mxu0 %v1666
        %1670 = vmatpush.msra.mxu0 %v1665
        %1671 = vmatpush.msra.mxu0 %v1664
        %1672 = vmatpush.msra.mxu0 %v1663
        %1673 = vmatpush.msra.mxu0 %v1662
        %1674 = vmatpush.msra.mxu0 %v1661
        %1675 = vmatpush.msra.mxu0 %v1660
        %1676 = vmatpush.msra.mxu0 %v1659
        %1677 = vmatpush.msra.mxu0 %v1658
        %1678 = vmatpush.msra.mxu0 %v1657
        %1679 = vmatpush.msra.mxu0 %v1656
        %1680 = vmatpush.msra.mxu0 %v1655
        %1681 = vmatpush.msra.mxu0 %v1654
        %1682 = vmatpush.msra.mxu0 %v1653
        %1683 = vmatpush.msra.mxu0 %v1652
        %1684 = vmatmul.f32.gmra.mxu0 %v1649
        %v1685 = vpop.f32.mrf.mxu0
        %v1686 = vadd.f32 0.0, %v1685
        %1687 = vmatmul.f32.gmra.mxu0 %v1650
        %v1688 = vpop.f32.mrf.mxu0
        %v1689 = vadd.f32 0.0, %v1688
        %1690 = vdwg.mxu0
        %v1691 = vadd.f32 %v1644, %v1686
        %v1692 = vadd.f32 %v1647, %v1689
        %v1693 = vld [vmem:[#allocation13 + $0x6] sm:$0x1]
        %v1694 = vperm.slane %v1693, 0
        %v1695 = vadd.f32 %v1691, %v1694
        %v1696 = vadd.f32 %v1692, %v1694
        %1697 = vst [vmem:[%s202] sm:$0xff] %v1695
        %1698 = vst [vmem:[%s202 + $0x8] sm:$0xff] %v1696
        %p1699 = scmp.lt.s32.totalorder %s16, 1
        %s1700 = scalar_select %p1699, %s16, 1
        %s1701 = smul.addr %s1700, 2
        %s1702 = smul.addr %s1701, 8
        %s1703 = scalar_lea.vmem %s3, %s1702
        // Predicated region
        $region41: #{unetpp_forward.1} parent=31 // pred_check
          %p1704 = pneg %p102
        $region42: #{unetpp_forward.1} parent=31 // pred_check_branch
          %1706 = sbr.rel (%p1704) target = $region44
        $region43: #{unetpp_forward.1} parent=31 // pred_region
          _
        $region44: #{unetpp_forward.1} parent=31 // pred_fallthru
          _
      $region32: #{unetpp_forward.1} parent=5 // pred_fallthru
        _
      %p1707 = scmp.le.s32.totalorder 2, %s11
      // Predicated region
      $region45: #{unetpp_forward.1} parent=5 // pred_check
        %p1708 = pneg %p1707
      $region46: #{unetpp_forward.1} parent=5 // pred_check_branch
        %1710 = sbr.rel (%p1708) target = $region48
      $region47: #{unetpp_forward.1} parent=5 // pred_region
        %s1711 = ssub.s32 %s11, 2
        // Predicated region
        $region49: #{unetpp_forward.1} parent=47 // pred_check
          %p1712 = pneg %p108
        $region50: #{unetpp_forward.1} parent=47 // pred_check_branch
          %1714 = sbr.rel (%p1712) target = $region52
        $region51: #{unetpp_forward.1} parent=47 // pred_region
          %p1715 = scmp.lt.s32.totalorder %s17, 1
          %s1716 = scalar_select %p1715, %s17, 1
          %s1717 = smul.addr %s1716, 2
          %s1718 = smul.addr %s1717, 8
          %s1719 = scalar_lea.vmem %s3, %s1718
        $region52: #{unetpp_forward.1} parent=47 // pred_fallthru
          _
      $region48: #{unetpp_forward.1} parent=5 // pred_fallthru
        _
    $region6: #{unetpp_forward.1} parent=1 // loop_footer
      %s15 = sadd.s32 1, %s11
    $region7: #{unetpp_forward.1} parent=1 // loop_footer_branch
      %10 = sbr.rel target = $region3
    $region8: #{unetpp_forward.1} parent=1 // loop_exit
      _
    %1720 = vsyncpa [#allocation12], 1
    %s1721 = scalar_lea.sflag [#allocation12], 1
    %1722 = vsyncpa %s1721, 1
    %1723 = vsyncpa [#allocation14], 1

</llo_original>
